<compile_context>
chip_gen: v7x
topology: tpu7x:2x2x1
jax: 0.10.0
libtpu: 0.0.40
codegen_flags: <defaults>
</compile_context>

<pallas_src>
import jax
import jax.numpy as jnp
import numpy as np
from jax.experimental import pallas as pl
from jax.experimental.pallas import tpu as pltpu

_LANES = 128


def _round_up(x, m):
    return (x + m - 1) // m * m


def _c2_fused_kernel(x_ref, w1_ref, b1_ref, w2_ref, b2_ref, o_ref):
    """One (batch, h-tile) step: conv1+BN+ReLU -> conv2+BN+ReLU on a halo strip.

    x_ref:  (TH+4, Wp, Cin_p)      bf16 halo input strip (auto-pipelined BlockSpec block)
    w1_ref: (3, 3, Cin_p,  Cmid_p) bf16, BN scale pre-folded
    b1_ref: (1, Cmid_p)            f32 shift
    w2_ref: (3, 3, Cmid_p, Cout_p) bf16, BN scale pre-folded
    b2_ref: (1, Cout_p)            f32 shift
    o_ref:  (TH, Wp, Cout_p)       output tile (full width; cols >= W-4 are cropped later)
    """
    strip_h, width, cin_p = x_ref.shape           # strip_h = TH + 4
    th = o_ref.shape[0]

    rows_in = strip_h * width                     # input rows (flattened h*W + w)
    rows_1 = (th + 2) * width                     # stage-1 rows actually consumed by stage 2
    rows_2 = th * width                           # stage-2 (output) rows

    x0 = x_ref[...].reshape(rows_in, cin_p)       # (rows_in, Cin_p), bf16; Wp % 8 == 0 => free

    def conv_stage(inp, w_ref, n_rows_out, shift_row):
        # 'valid' 3x3 conv over the flattened (rows, C) strip:
        #   * kw column shifts (1, 2) -> two row-rolls of the whole strip (wrap rows only feed
        #     garbage columns that are never consumed downstream / are cropped),
        #   * kh row shifts (0, W, 2W) -> static sublane-aligned slices (W multiple of 8),
        #   * 9 K=128-dense MXU matmuls with f32 accumulation, acc seeded by the first tap.
        # inp has n_rows_out + 2*width rows, so every slice is exactly in bounds.
        # TODO(synk): jnp.roll (known-good lowering) instead of pltpu.roll; revisit if the
        #             two rolls/stage ever show up as relayout cost in the bundle dump.
        acc = None
        for kw in range(3):
            s = inp if kw == 0 else jnp.roll(inp, -kw, axis=0)
            for kh in range(3):
                piece = s[kh * width: kh * width + n_rows_out]
                contrib = jnp.dot(piece, w_ref[kh, kw],
                                  preferred_element_type=jnp.float32)
                acc = contrib if acc is None else acc + contrib
        return jnp.maximum(acc + shift_row, 0.0)

    # Stage 1: conv + folded-BN shift + ReLU, intermediate kept on-chip in bf16.
    y1 = conv_stage(x0, w1_ref, rows_1, b1_ref[...]).astype(jnp.bfloat16)
    # Stage 2: conv + folded-BN shift + ReLU.
    y2 = conv_stage(y1, w2_ref, rows_2, b2_ref[...])

    o_ref[...] = y2.reshape(th, width, o_ref.shape[-1]).astype(o_ref.dtype)


def c2_forward_nchw(x_nchw, w1_hwio, scale1, shift1, w2_hwio, scale2, shift2,
                    *, block_h=32, out_dtype=None):
    """C2 forward (eval-mode BN), PyTorch NCHW in / NCHW out, one fused Pallas kernel."""
    N, cin, H, W = x_nchw.shape
    cmid = w1_hwio.shape[-1]
    cout = w2_hwio.shape[-1]
    Ho, Wo = H - 4, W - 4                         # two stacked 3x3 'valid' convs
    assert Ho >= 1 and Wo >= 1, "input spatial dims too small for two 3x3 valid convs"

    cin_p = _round_up(cin, _LANES)
    cmid_p = _round_up(cmid, _LANES)
    cout_p = _round_up(cout, _LANES)
    w_p = _round_up(W, 8)                         # keep reshapes / stores sublane-aligned

    block_h = max(8, _round_up(block_h, 8))       # th multiple of 8 => aligned slices/stores
    th = min(block_h, _round_up(Ho, 8))           # output rows per H-tile
    n_tiles = -(-Ho // th)
    ho_pad = n_tiles * th
    h_pad = ho_pad + 4

    out_dtype = x_nchw.dtype if out_dtype is None else out_dtype

    # NCHW -> NHWC; zero-pad H (extra valid rows, cropped below), W (to multiple of 8) and
    # channels (to full 128-lane width); cast activations to bf16 for the MXU.
    x = jnp.transpose(x_nchw, (0, 2, 3, 1))
    x = jnp.pad(x, ((0, 0), (0, h_pad - H), (0, w_p - W), (0, cin_p - cin))).astype(jnp.bfloat16)

    # Materialize the (overlapping) halo strips so a plain BlockSpec pipeline can prefetch /
    # double-buffer them (the previous version's manual start()+wait() DMA exposed the full
    # strip-fetch latency on every grid step).
    if n_tiles == 1:
        x_strips = x[:, None]                                          # (N, 1, th+4, Wp, Cin_p)
    else:
        x_strips = jnp.stack([x[:, t * th: t * th + th + 4] for t in range(n_tiles)], axis=1)

    # Fold eval-mode BN scale into conv weights; zero-pad channels; bf16 MXU operands.
    w1 = w1_hwio * scale1[None, None, None, :]
    w1 = jnp.pad(w1, ((0, 0), (0, 0), (0, cin_p - cin), (0, cmid_p - cmid))).astype(jnp.bfloat16)
    w2 = w2_hwio * scale2[None, None, None, :]
    w2 = jnp.pad(w2, ((0, 0), (0, 0), (0, cmid_p - cmid), (0, cout_p - cout))).astype(jnp.bfloat16)
    b1 = jnp.pad(shift1, (0, cmid_p - cmid)).reshape(1, cmid_p).astype(jnp.float32)
    b2 = jnp.pad(shift2, (0, cout_p - cout)).reshape(1, cout_p).astype(jnp.float32)

    out = pl.pallas_call(
        _c2_fused_kernel,
        out_shape=jax.ShapeDtypeStruct((N, ho_pad, w_p, cout_p), out_dtype),
        grid=(N, n_tiles),
        in_specs=[
            pl.BlockSpec((None, None, th + 4, w_p, cin_p), lambda n, t: (n, t, 0, 0, 0)),
            pl.BlockSpec((3, 3, cin_p, cmid_p), lambda n, t: (0, 0, 0, 0)),
            pl.BlockSpec((1, cmid_p), lambda n, t: (0, 0)),
            pl.BlockSpec((3, 3, cmid_p, cout_p), lambda n, t: (0, 0, 0, 0)),
            pl.BlockSpec((1, cout_p), lambda n, t: (0, 0)),
        ],
        out_specs=pl.BlockSpec((None, th, w_p, cout_p), lambda n, t: (n, t, 0, 0)),
        compiler_params=pltpu.CompilerParams(
            dimension_semantics=("parallel", "parallel"),   # megacore shards (batch x h-tile)
            vmem_limit_bytes=48 * 1024 * 1024,              # headroom on v7x's 64 MiB VMEM
        ),
    )(x_strips, w1, b1, w2, b2)

    # Crop padded rows / wrap columns / padded channels (before the transpose), back to NCHW.
    out = out[:, :Ho, :Wo, :cout]
    return jnp.transpose(out, (0, 3, 1, 2))


def _fold_bn(conv_bias, gamma, beta, running_mean, running_var, eps=1e-5):
    """Fold conv bias + eval-mode BatchNorm into per-channel scale/shift."""
    scale = gamma / jnp.sqrt(running_var + eps)
    shift = beta + (conv_bias - running_mean) * scale
    return scale.astype(jnp.float32), shift.astype(jnp.float32)


def make_c2_params(key, in_channels, out_channels, mid_channels=None):
    """Deterministic parameter construction mirroring C2.__init__ shapes."""
    if not mid_channels:
        mid_channels = out_channels
    params = []
    cins = [in_channels, mid_channels]
    couts = [mid_channels, out_channels]
    for i in range(2):
        key, kw, kb, kg, kbeta, km, kv = jax.random.split(key, 7)
        cin, cout = cins[i], couts[i]
        # PyTorch conv weight layout (Cout, Cin, KH, KW) -> kernel uses HWIO.
        w_oihw = 0.1 * jax.random.normal(kw, (cout, cin, 3, 3), jnp.float32)
        conv_b = 0.1 * jax.random.normal(kb, (cout,), jnp.float32)
        gamma = 1.0 + 0.1 * jax.random.normal(kg, (cout,), jnp.float32)
        beta = 0.1 * jax.random.normal(kbeta, (cout,), jnp.float32)
        running_mean = 0.1 * jax.random.normal(km, (cout,), jnp.float32)
        running_var = 1.0 + 0.1 * jax.random.uniform(kv, (cout,), jnp.float32)
        w_hwio = jnp.transpose(w_oihw, (2, 3, 1, 0))  # (KH, KW, Cin, Cout)
        scale, shift = _fold_bn(conv_b, gamma, beta, running_mean, running_var)
        params.append((w_hwio, scale, shift))
    return params


def _reference_nchw(x_nchw, w_hwio, scale, shift):
    """Plain-JAX reference with matching precision (bf16 operands, f32 accumulation)."""
    wf = (w_hwio * scale[None, None, None, :]).astype(jnp.bfloat16)
    xb = x_nchw.astype(jnp.bfloat16)
    y = jax.lax.conv_general_dilated(
        xb, wf, window_strides=(1, 1), padding="VALID",
        dimension_numbers=("NCHW", "HWIO", "NCHW"),
        preferred_element_type=jnp.float32)
    y = y + shift[None, :, None, None]
    return jnp.maximum(y, 0.0)


if __name__ == "__main__":
    key = jax.random.PRNGKey(0)
    key, kx = jax.random.split(key)

    N, Cin, H, W = 2, 4, 16, 16
    Cout = 8  # mid_channels defaults to out_channels

    x = jax.random.normal(kx, (N, Cin, H, W), jnp.float32)
    (w1, s1, b1), (w2, s2, b2) = make_c2_params(key, Cin, Cout)

    # Correctness reference: same math / precision (bf16 operands, f32 accumulation).
    ref = _reference_nchw(_reference_nchw(x, w1, s1, b1), w2, s2, b2)

    fwd = jax.jit(c2_forward_nchw, static_argnames=("block_h", "out_dtype"))
    out = None
    for bh in (8, 32):   # bh=8 exercises the multi-tile halo-strip path; bh=32 the default path
        out = jax.block_until_ready(fwd(x, w1, s1, b1, w2, s2, b2, block_h=bh))
        assert out.shape == (N, Cout, H - 4, W - 4), out.shape
        np.testing.assert_allclose(np.asarray(out), np.asarray(ref), rtol=5e-3, atol=5e-3)

    print("KERNEL_OK")
</pallas_src>

<mosaic_0001>
module attributes {stable_mosaic.version = 11 : i64} {
  func.func @_c2_fused_kernel(%arg0: i32, %arg1: i32, %arg2: memref<1x1x12x16x128xbf16, #tpu.memory_space<vmem>>, %arg3: memref<3x3x128x128xbf16, #tpu.memory_space<vmem>>, %arg4: memref<1x128xf32, #tpu.memory_space<vmem>>, %arg5: memref<3x3x128x128xbf16, #tpu.memory_space<vmem>>, %arg6: memref<1x128xf32, #tpu.memory_space<vmem>>, %arg7: memref<1x8x16x128xf32, #tpu.memory_space<vmem>>) attributes {dimension_semantics = [#tpu.dimension_semantics<parallel>, #tpu.dimension_semantics<parallel>], iteration_bounds = array<i64: 2, 2>, scalar_prefetch = 0 : i64, scratch_operands = 0 : i64, tpu.core_type = #tpu.core_type<tc>, window_params = [{transform_indices = @transform_0, window_bounds = array<i64: 1, 1, 12, 16, 128>}, {pipeline_mode = #tpu.pipeline_mode<synchronous>, transform_indices = @transform_1, window_bounds = array<i64: 3, 3, 128, 128>}, {pipeline_mode = #tpu.pipeline_mode<synchronous>, transform_indices = @transform_2, window_bounds = array<i64: 1, 128>}, {pipeline_mode = #tpu.pipeline_mode<synchronous>, transform_indices = @transform_3, window_bounds = array<i64: 3, 3, 128, 128>}, {pipeline_mode = #tpu.pipeline_mode<synchronous>, transform_indices = @transform_4, window_bounds = array<i64: 1, 128>}, {transform_indices = @transform_5, window_bounds = array<i64: 1, 8, 16, 128>}]} {
    %c0 = arith.constant 0 : index
    %c0_0 = arith.constant 0 : index
    %c0_1 = arith.constant 0 : index
    %c0_2 = arith.constant 0 : index
    %c0_3 = arith.constant 0 : index
    %0 = vector.load %arg2[%c0, %c0_0, %c0_1, %c0_2, %c0_3] : memref<1x1x12x16x128xbf16, #tpu.memory_space<vmem>>, vector<1x1x12x16x128xbf16>
    %1 = vector.shape_cast %0 : vector<1x1x12x16x128xbf16> to vector<12x16x128xbf16>
    %2 = vector.shape_cast %1 : vector<12x16x128xbf16> to vector<192x128xbf16>
    %c0_4 = arith.constant 0 : index
    %c0_5 = arith.constant 0 : index
    %3 = vector.load %arg4[%c0_4, %c0_5] : memref<1x128xf32, #tpu.memory_space<vmem>>, vector<1x128xf32>
    %4 = vector.extract_strided_slice %2 {offsets = [0, 0], sizes = [160, 128], strides = [1, 1]} : vector<192x128xbf16> to vector<160x128xbf16>
    %c0_6 = arith.constant 0 : index
    %c0_7 = arith.constant 0 : index
    %c0_8 = arith.constant 0 : index
    %c0_9 = arith.constant 0 : index
    %5 = vector.load %arg3[%c0_6, %c0_7, %c0_8, %c0_9] : memref<3x3x128x128xbf16, #tpu.memory_space<vmem>>, vector<1x1x128x128xbf16>
    %6 = vector.shape_cast %5 : vector<1x1x128x128xbf16> to vector<128x128xbf16>
    %cst = arith.constant dense<0.000000e+00> : vector<160x128xf32>
    %7 = tpu.matmul %4, %6, %cst {dimension_numbers = #tpu.dot_dimension_numbers<[1], [0], [0], [1], [0, 0, 1, 1], [], []>} : vector<160x128xbf16>, vector<128x128xbf16>, vector<160x128xf32> -> vector<160x128xf32>
    %8 = vector.extract_strided_slice %2 {offsets = [16, 0], sizes = [160, 128], strides = [1, 1]} : vector<192x128xbf16> to vector<160x128xbf16>
    %c1 = arith.constant 1 : index
    %c0_10 = arith.constant 0 : index
    %c0_11 = arith.constant 0 : index
    %c0_12 = arith.constant 0 : index
    %9 = vector.load %arg3[%c1, %c0_10, %c0_11, %c0_12] : memref<3x3x128x128xbf16, #tpu.memory_space<vmem>>, vector<1x1x128x128xbf16>
    %10 = vector.shape_cast %9 : vector<1x1x128x128xbf16> to vector<128x128xbf16>
    %cst_13 = arith.constant dense<0.000000e+00> : vector<160x128xf32>
    %11 = tpu.matmul %8, %10, %cst_13 {dimension_numbers = #tpu.dot_dimension_numbers<[1], [0], [0], [1], [0, 0, 1, 1], [], []>} : vector<160x128xbf16>, vector<128x128xbf16>, vector<160x128xf32> -> vector<160x128xf32>
    %12 = arith.addf %7, %11 : vector<160x128xf32>
    %13 = vector.extract_strided_slice %2 {offsets = [32, 0], sizes = [160, 128], strides = [1, 1]} : vector<192x128xbf16> to vector<160x128xbf16>
    %c2 = arith.constant 2 : index
    %c0_14 = arith.constant 0 : index
    %c0_15 = arith.constant 0 : index
    %c0_16 = arith.constant 0 : index
    %14 = vector.load %arg3[%c2, %c0_14, %c0_15, %c0_16] : memref<3x3x128x128xbf16, #tpu.memory_space<vmem>>, vector<1x1x128x128xbf16>
    %15 = vector.shape_cast %14 : vector<1x1x128x128xbf16> to vector<128x128xbf16>
    %cst_17 = arith.constant dense<0.000000e+00> : vector<160x128xf32>
    %16 = tpu.matmul %13, %15, %cst_17 {dimension_numbers = #tpu.dot_dimension_numbers<[1], [0], [0], [1], [0, 0, 1, 1], [], []>} : vector<160x128xbf16>, vector<128x128xbf16>, vector<160x128xf32> -> vector<160x128xf32>
    %17 = arith.addf %12, %16 : vector<160x128xf32>
    %18 = vector.extract_strided_slice %2 {offsets = [1, 0], sizes = [191, 128], strides = [1, 1]} : vector<192x128xbf16> to vector<191x128xbf16>
    %19 = vector.extract_strided_slice %2 {offsets = [0, 0], sizes = [1, 128], strides = [1, 1]} : vector<192x128xbf16> to vector<1x128xbf16>
    %20 = tpu.concatenate %18, %19 in 0 : vector<191x128xbf16>, vector<1x128xbf16> -> vector<192x128xbf16>
    %21 = vector.extract_strided_slice %20 {offsets = [0, 0], sizes = [160, 128], strides = [1, 1]} : vector<192x128xbf16> to vector<160x128xbf16>
    %c0_18 = arith.constant 0 : index
    %c1_19 = arith.constant 1 : index
    %c0_20 = arith.constant 0 : index
    %c0_21 = arith.constant 0 : index
    %22 = vector.load %arg3[%c0_18, %c1_19, %c0_20, %c0_21] : memref<3x3x128x128xbf16, #tpu.memory_space<vmem>>, vector<1x1x128x128xbf16>
    %23 = vector.shape_cast %22 : vector<1x1x128x128xbf16> to vector<128x128xbf16>
    %cst_22 = arith.constant dense<0.000000e+00> : vector<160x128xf32>
    %24 = tpu.matmul %21, %23, %cst_22 {dimension_numbers = #tpu.dot_dimension_numbers<[1], [0], [0], [1], [0, 0, 1, 1], [], []>} : vector<160x128xbf16>, vector<128x128xbf16>, vector<160x128xf32> -> vector<160x128xf32>
    %25 = arith.addf %17, %24 : vector<160x128xf32>
    %26 = vector.extract_strided_slice %20 {offsets = [16, 0], sizes = [160, 128], strides = [1, 1]} : vector<192x128xbf16> to vector<160x128xbf16>
    %c1_23 = arith.constant 1 : index
    %c1_24 = arith.constant 1 : index
    %c0_25 = arith.constant 0 : index
    %c0_26 = arith.constant 0 : index
    %27 = vector.load %arg3[%c1_23, %c1_24, %c0_25, %c0_26] : memref<3x3x128x128xbf16, #tpu.memory_space<vmem>>, vector<1x1x128x128xbf16>
    %28 = vector.shape_cast %27 : vector<1x1x128x128xbf16> to vector<128x128xbf16>
    %cst_27 = arith.constant dense<0.000000e+00> : vector<160x128xf32>
    %29 = tpu.matmul %26, %28, %cst_27 {dimension_numbers = #tpu.dot_dimension_numbers<[1], [0], [0], [1], [0, 0, 1, 1], [], []>} : vector<160x128xbf16>, vector<128x128xbf16>, vector<160x128xf32> -> vector<160x128xf32>
    %30 = arith.addf %25, %29 : vector<160x128xf32>
    %31 = vector.extract_strided_slice %20 {offsets = [32, 0], sizes = [160, 128], strides = [1, 1]} : vector<192x128xbf16> to vector<160x128xbf16>
    %c2_28 = arith.constant 2 : index
    %c1_29 = arith.constant 1 : index
    %c0_30 = arith.constant 0 : index
    %c0_31 = arith.constant 0 : index
    %32 = vector.load %arg3[%c2_28, %c1_29, %c0_30, %c0_31] : memref<3x3x128x128xbf16, #tpu.memory_space<vmem>>, vector<1x1x128x128xbf16>
    %33 = vector.shape_cast %32 : vector<1x1x128x128xbf16> to vector<128x128xbf16>
    %cst_32 = arith.constant dense<0.000000e+00> : vector<160x128xf32>
    %34 = tpu.matmul %31, %33, %cst_32 {dimension_numbers = #tpu.dot_dimension_numbers<[1], [0], [0], [1], [0, 0, 1, 1], [], []>} : vector<160x128xbf16>, vector<128x128xbf16>, vector<160x128xf32> -> vector<160x128xf32>
    %35 = arith.addf %30, %34 : vector<160x128xf32>
    %36 = vector.extract_strided_slice %2 {offsets = [2, 0], sizes = [190, 128], strides = [1, 1]} : vector<192x128xbf16> to vector<190x128xbf16>
    %37 = vector.extract_strided_slice %2 {offsets = [0, 0], sizes = [2, 128], strides = [1, 1]} : vector<192x128xbf16> to vector<2x128xbf16>
    %38 = tpu.concatenate %36, %37 in 0 : vector<190x128xbf16>, vector<2x128xbf16> -> vector<192x128xbf16>
    %39 = vector.extract_strided_slice %38 {offsets = [0, 0], sizes = [160, 128], strides = [1, 1]} : vector<192x128xbf16> to vector<160x128xbf16>
    %c0_33 = arith.constant 0 : index
    %c2_34 = arith.constant 2 : index
    %c0_35 = arith.constant 0 : index
    %c0_36 = arith.constant 0 : index
    %40 = vector.load %arg3[%c0_33, %c2_34, %c0_35, %c0_36] : memref<3x3x128x128xbf16, #tpu.memory_space<vmem>>, vector<1x1x128x128xbf16>
    %41 = vector.shape_cast %40 : vector<1x1x128x128xbf16> to vector<128x128xbf16>
    %cst_37 = arith.constant dense<0.000000e+00> : vector<160x128xf32>
    %42 = tpu.matmul %39, %41, %cst_37 {dimension_numbers = #tpu.dot_dimension_numbers<[1], [0], [0], [1], [0, 0, 1, 1], [], []>} : vector<160x128xbf16>, vector<128x128xbf16>, vector<160x128xf32> -> vector<160x128xf32>
    %43 = arith.addf %35, %42 : vector<160x128xf32>
    %44 = vector.extract_strided_slice %38 {offsets = [16, 0], sizes = [160, 128], strides = [1, 1]} : vector<192x128xbf16> to vector<160x128xbf16>
    %c1_38 = arith.constant 1 : index
    %c2_39 = arith.constant 2 : index
    %c0_40 = arith.constant 0 : index
    %c0_41 = arith.constant 0 : index
    %45 = vector.load %arg3[%c1_38, %c2_39, %c0_40, %c0_41] : memref<3x3x128x128xbf16, #tpu.memory_space<vmem>>, vector<1x1x128x128xbf16>
    %46 = vector.shape_cast %45 : vector<1x1x128x128xbf16> to vector<128x128xbf16>
    %cst_42 = arith.constant dense<0.000000e+00> : vector<160x128xf32>
    %47 = tpu.matmul %44, %46, %cst_42 {dimension_numbers = #tpu.dot_dimension_numbers<[1], [0], [0], [1], [0, 0, 1, 1], [], []>} : vector<160x128xbf16>, vector<128x128xbf16>, vector<160x128xf32> -> vector<160x128xf32>
    %48 = arith.addf %43, %47 : vector<160x128xf32>
    %49 = vector.extract_strided_slice %38 {offsets = [32, 0], sizes = [160, 128], strides = [1, 1]} : vector<192x128xbf16> to vector<160x128xbf16>
    %c2_43 = arith.constant 2 : index
    %c2_44 = arith.constant 2 : index
    %c0_45 = arith.constant 0 : index
    %c0_46 = arith.constant 0 : index
    %50 = vector.load %arg3[%c2_43, %c2_44, %c0_45, %c0_46] : memref<3x3x128x128xbf16, #tpu.memory_space<vmem>>, vector<1x1x128x128xbf16>
    %51 = vector.shape_cast %50 : vector<1x1x128x128xbf16> to vector<128x128xbf16>
    %cst_47 = arith.constant dense<0.000000e+00> : vector<160x128xf32>
    %52 = tpu.matmul %49, %51, %cst_47 {dimension_numbers = #tpu.dot_dimension_numbers<[1], [0], [0], [1], [0, 0, 1, 1], [], []>} : vector<160x128xbf16>, vector<128x128xbf16>, vector<160x128xf32> -> vector<160x128xf32>
    %53 = arith.addf %48, %52 : vector<160x128xf32>
    %54 = vector.broadcast %3 : vector<1x128xf32> to vector<160x128xf32>
    %55 = arith.addf %53, %54 : vector<160x128xf32>
    %cst_48 = arith.constant 0.000000e+00 : f32
    %56 = vector.broadcast %cst_48 : f32 to vector<160x128xf32>
    %57 = arith.maximumf %55, %56 : vector<160x128xf32>
    %58 = arith.truncf %57 : vector<160x128xf32> to vector<160x128xbf16>
    %c0_49 = arith.constant 0 : index
    %c0_50 = arith.constant 0 : index
    %59 = vector.load %arg6[%c0_49, %c0_50] : memref<1x128xf32, #tpu.memory_space<vmem>>, vector<1x128xf32>
    %60 = vector.extract_strided_slice %58 {offsets = [0, 0], sizes = [128, 128], strides = [1, 1]} : vector<160x128xbf16> to vector<128x128xbf16>
    %c0_51 = arith.constant 0 : index
    %c0_52 = arith.constant 0 : index
    %c0_53 = arith.constant 0 : index
    %c0_54 = arith.constant 0 : index
    %61 = vector.load %arg5[%c0_51, %c0_52, %c0_53, %c0_54] : memref<3x3x128x128xbf16, #tpu.memory_space<vmem>>, vector<1x1x128x128xbf16>
    %62 = vector.shape_cast %61 : vector<1x1x128x128xbf16> to vector<128x128xbf16>
    %cst_55 = arith.constant dense<0.000000e+00> : vector<128x128xf32>
    %63 = tpu.matmul %60, %62, %cst_55 {dimension_numbers = #tpu.dot_dimension_numbers<[1], [0], [0], [1], [0, 0, 1, 1], [], []>} : vector<128x128xbf16>, vector<128x128xbf16>, vector<128x128xf32> -> vector<128x128xf32>
    %64 = vector.extract_strided_slice %58 {offsets = [16, 0], sizes = [128, 128], strides = [1, 1]} : vector<160x128xbf16> to vector<128x128xbf16>
    %c1_56 = arith.constant 1 : index
    %c0_57 = arith.constant 0 : index
    %c0_58 = arith.constant 0 : index
    %c0_59 = arith.constant 0 : index
    %65 = vector.load %arg5[%c1_56, %c0_57, %c0_58, %c0_59] : memref<3x3x128x128xbf16, #tpu.memory_space<vmem>>, vector<1x1x128x128xbf16>
    %66 = vector.shape_cast %65 : vector<1x1x128x128xbf16> to vector<128x128xbf16>
    %cst_60 = arith.constant dense<0.000000e+00> : vector<128x128xf32>
    %67 = tpu.matmul %64, %66, %cst_60 {dimension_numbers = #tpu.dot_dimension_numbers<[1], [0], [0], [1], [0, 0, 1, 1], [], []>} : vector<128x128xbf16>, vector<128x128xbf16>, vector<128x128xf32> -> vector<128x128xf32>
    %68 = arith.addf %63, %67 : vector<128x128xf32>
    %69 = vector.extract_strided_slice %58 {offsets = [32, 0], sizes = [128, 128], strides = [1, 1]} : vector<160x128xbf16> to vector<128x128xbf16>
    %c2_61 = arith.constant 2 : index
    %c0_62 = arith.constant 0 : index
    %c0_63 = arith.constant 0 : index
    %c0_64 = arith.constant 0 : index
    %70 = vector.load %arg5[%c2_61, %c0_62, %c0_63, %c0_64] : memref<3x3x128x128xbf16, #tpu.memory_space<vmem>>, vector<1x1x128x128xbf16>
    %71 = vector.shape_cast %70 : vector<1x1x128x128xbf16> to vector<128x128xbf16>
    %cst_65 = arith.constant dense<0.000000e+00> : vector<128x128xf32>
    %72 = tpu.matmul %69, %71, %cst_65 {dimension_numbers = #tpu.dot_dimension_numbers<[1], [0], [0], [1], [0, 0, 1, 1], [], []>} : vector<128x128xbf16>, vector<128x128xbf16>, vector<128x128xf32> -> vector<128x128xf32>
    %73 = arith.addf %68, %72 : vector<128x128xf32>
    %74 = vector.extract_strided_slice %58 {offsets = [1, 0], sizes = [159, 128], strides = [1, 1]} : vector<160x128xbf16> to vector<159x128xbf16>
    %75 = vector.extract_strided_slice %58 {offsets = [0, 0], sizes = [1, 128], strides = [1, 1]} : vector<160x128xbf16> to vector<1x128xbf16>
    %76 = tpu.concatenate %74, %75 in 0 : vector<159x128xbf16>, vector<1x128xbf16> -> vector<160x128xbf16>
    %77 = vector.extract_strided_slice %76 {offsets = [0, 0], sizes = [128, 128], strides = [1, 1]} : vector<160x128xbf16> to vector<128x128xbf16>
    %c0_66 = arith.constant 0 : index
    %c1_67 = arith.constant 1 : index
    %c0_68 = arith.constant 0 : index
    %c0_69 = arith.constant 0 : index
    %78 = vector.load %arg5[%c0_66, %c1_67, %c0_68, %c0_69] : memref<3x3x128x128xbf16, #tpu.memory_space<vmem>>, vector<1x1x128x128xbf16>
    %79 = vector.shape_cast %78 : vector<1x1x128x128xbf16> to vector<128x128xbf16>
    %cst_70 = arith.constant dense<0.000000e+00> : vector<128x128xf32>
    %80 = tpu.matmul %77, %79, %cst_70 {dimension_numbers = #tpu.dot_dimension_numbers<[1], [0], [0], [1], [0, 0, 1, 1], [], []>} : vector<128x128xbf16>, vector<128x128xbf16>, vector<128x128xf32> -> vector<128x128xf32>
    %81 = arith.addf %73, %80 : vector<128x128xf32>
    %82 = vector.extract_strided_slice %76 {offsets = [16, 0], sizes = [128, 128], strides = [1, 1]} : vector<160x128xbf16> to vector<128x128xbf16>
    %c1_71 = arith.constant 1 : index
    %c1_72 = arith.constant 1 : index
    %c0_73 = arith.constant 0 : index
    %c0_74 = arith.constant 0 : index
    %83 = vector.load %arg5[%c1_71, %c1_72, %c0_73, %c0_74] : memref<3x3x128x128xbf16, #tpu.memory_space<vmem>>, vector<1x1x128x128xbf16>
    %84 = vector.shape_cast %83 : vector<1x1x128x128xbf16> to vector<128x128xbf16>
    %cst_75 = arith.constant dense<0.000000e+00> : vector<128x128xf32>
    %85 = tpu.matmul %82, %84, %cst_75 {dimension_numbers = #tpu.dot_dimension_numbers<[1], [0], [0], [1], [0, 0, 1, 1], [], []>} : vector<128x128xbf16>, vector<128x128xbf16>, vector<128x128xf32> -> vector<128x128xf32>
    %86 = arith.addf %81, %85 : vector<128x128xf32>
    %87 = vector.extract_strided_slice %76 {offsets = [32, 0], sizes = [128, 128], strides = [1, 1]} : vector<160x128xbf16> to vector<128x128xbf16>
    %c2_76 = arith.constant 2 : index
    %c1_77 = arith.constant 1 : index
    %c0_78 = arith.constant 0 : index
    %c0_79 = arith.constant 0 : index
    %88 = vector.load %arg5[%c2_76, %c1_77, %c0_78, %c0_79] : memref<3x3x128x128xbf16, #tpu.memory_space<vmem>>, vector<1x1x128x128xbf16>
    %89 = vector.shape_cast %88 : vector<1x1x128x128xbf16> to vector<128x128xbf16>
    %cst_80 = arith.constant dense<0.000000e+00> : vector<128x128xf32>
    %90 = tpu.matmul %87, %89, %cst_80 {dimension_numbers = #tpu.dot_dimension_numbers<[1], [0], [0], [1], [0, 0, 1, 1], [], []>} : vector<128x128xbf16>, vector<128x128xbf16>, vector<128x128xf32> -> vector<128x128xf32>
    %91 = arith.addf %86, %90 : vector<128x128xf32>
    %92 = vector.extract_strided_slice %58 {offsets = [2, 0], sizes = [158, 128], strides = [1, 1]} : vector<160x128xbf16> to vector<158x128xbf16>
    %93 = vector.extract_strided_slice %58 {offsets = [0, 0], sizes = [2, 128], strides = [1, 1]} : vector<160x128xbf16> to vector<2x128xbf16>
    %94 = tpu.concatenate %92, %93 in 0 : vector<158x128xbf16>, vector<2x128xbf16> -> vector<160x128xbf16>
    %95 = vector.extract_strided_slice %94 {offsets = [0, 0], sizes = [128, 128], strides = [1, 1]} : vector<160x128xbf16> to vector<128x128xbf16>
    %c0_81 = arith.constant 0 : index
    %c2_82 = arith.constant 2 : index
    %c0_83 = arith.constant 0 : index
    %c0_84 = arith.constant 0 : index
    %96 = vector.load %arg5[%c0_81, %c2_82, %c0_83, %c0_84] : memref<3x3x128x128xbf16, #tpu.memory_space<vmem>>, vector<1x1x128x128xbf16>
    %97 = vector.shape_cast %96 : vector<1x1x128x128xbf16> to vector<128x128xbf16>
    %cst_85 = arith.constant dense<0.000000e+00> : vector<128x128xf32>
    %98 = tpu.matmul %95, %97, %cst_85 {dimension_numbers = #tpu.dot_dimension_numbers<[1], [0], [0], [1], [0, 0, 1, 1], [], []>} : vector<128x128xbf16>, vector<128x128xbf16>, vector<128x128xf32> -> vector<128x128xf32>
    %99 = arith.addf %91, %98 : vector<128x128xf32>
    %100 = vector.extract_strided_slice %94 {offsets = [16, 0], sizes = [128, 128], strides = [1, 1]} : vector<160x128xbf16> to vector<128x128xbf16>
    %c1_86 = arith.constant 1 : index
    %c2_87 = arith.constant 2 : index
    %c0_88 = arith.constant 0 : index
    %c0_89 = arith.constant 0 : index
    %101 = vector.load %arg5[%c1_86, %c2_87, %c0_88, %c0_89] : memref<3x3x128x128xbf16, #tpu.memory_space<vmem>>, vector<1x1x128x128xbf16>
    %102 = vector.shape_cast %101 : vector<1x1x128x128xbf16> to vector<128x128xbf16>
    %cst_90 = arith.constant dense<0.000000e+00> : vector<128x128xf32>
    %103 = tpu.matmul %100, %102, %cst_90 {dimension_numbers = #tpu.dot_dimension_numbers<[1], [0], [0], [1], [0, 0, 1, 1], [], []>} : vector<128x128xbf16>, vector<128x128xbf16>, vector<128x128xf32> -> vector<128x128xf32>
    %104 = arith.addf %99, %103 : vector<128x128xf32>
    %105 = vector.extract_strided_slice %94 {offsets = [32, 0], sizes = [128, 128], strides = [1, 1]} : vector<160x128xbf16> to vector<128x128xbf16>
    %c2_91 = arith.constant 2 : index
    %c2_92 = arith.constant 2 : index
    %c0_93 = arith.constant 0 : index
    %c0_94 = arith.constant 0 : index
    %106 = vector.load %arg5[%c2_91, %c2_92, %c0_93, %c0_94] : memref<3x3x128x128xbf16, #tpu.memory_space<vmem>>, vector<1x1x128x128xbf16>
    %107 = vector.shape_cast %106 : vector<1x1x128x128xbf16> to vector<128x128xbf16>
    %cst_95 = arith.constant dense<0.000000e+00> : vector<128x128xf32>
    %108 = tpu.matmul %105, %107, %cst_95 {dimension_numbers = #tpu.dot_dimension_numbers<[1], [0], [0], [1], [0, 0, 1, 1], [], []>} : vector<128x128xbf16>, vector<128x128xbf16>, vector<128x128xf32> -> vector<128x128xf32>
    %109 = arith.addf %104, %108 : vector<128x128xf32>
    %110 = vector.broadcast %59 : vector<1x128xf32> to vector<128x128xf32>
    %111 = arith.addf %109, %110 : vector<128x128xf32>
    %cst_96 = arith.constant 0.000000e+00 : f32
    %112 = vector.broadcast %cst_96 : f32 to vector<128x128xf32>
    %113 = arith.maximumf %111, %112 : vector<128x128xf32>
    %114 = vector.shape_cast %113 : vector<128x128xf32> to vector<8x16x128xf32>
    %c0_97 = arith.constant 0 : index
    %c0_98 = arith.constant 0 : index
    %c0_99 = arith.constant 0 : index
    %c0_100 = arith.constant 0 : index
    %115 = vector.load %arg7[%c0_97, %c0_98, %c0_99, %c0_100] : memref<1x8x16x128xf32, #tpu.memory_space<vmem>>, vector<1x8x16x128xf32>
    %116 = vector.shape_cast %115 : vector<1x8x16x128xf32> to vector<8x16x128xf32>
    %117 = vector.shape_cast %114 : vector<8x16x128xf32> to vector<1x8x16x128xf32>
    tpu.vector_store %arg7[%c0_97, %c0_98, %c0_99, %c0_100], %117 {strides = array<i32>} : memref<1x8x16x128xf32, #tpu.memory_space<vmem>>, vector<1x8x16x128xf32>,
    return
  }
  func.func @transform_0(%arg0: i32, %arg1: i32) -> (i32, i32, i32, i32, i32) {
    %c0_i32 = arith.constant 0 : i32
    %c0_i32_0 = arith.constant 0 : i32
    %c0_i32_1 = arith.constant 0 : i32
    %c0_i32_2 = arith.constant 0 : i32
    return %arg0, %arg1, %c0_i32, %c0_i32_0, %c0_i32_1 : i32, i32, i32, i32, i32
  }
  func.func @transform_1(%arg0: i32, %arg1: i32) -> (i32, i32, i32, i32) {
    %c0_i32 = arith.constant 0 : i32
    %c0_i32_0 = arith.constant 0 : i32
    %c0_i32_1 = arith.constant 0 : i32
    %c0_i32_2 = arith.constant 0 : i32
    %c0_i32_3 = arith.constant 0 : i32
    return %c0_i32, %c0_i32_0, %c0_i32_1, %c0_i32_2 : i32, i32, i32, i32
  }
  func.func @transform_2(%arg0: i32, %arg1: i32) -> (i32, i32) {
    %c0_i32 = arith.constant 0 : i32
    %c0_i32_0 = arith.constant 0 : i32
    %c0_i32_1 = arith.constant 0 : i32
    return %c0_i32, %c0_i32_0 : i32, i32
  }
  func.func @transform_3(%arg0: i32, %arg1: i32) -> (i32, i32, i32, i32) {
    %c0_i32 = arith.constant 0 : i32
    %c0_i32_0 = arith.constant 0 : i32
    %c0_i32_1 = arith.constant 0 : i32
    %c0_i32_2 = arith.constant 0 : i32
    %c0_i32_3 = arith.constant 0 : i32
    return %c0_i32, %c0_i32_0, %c0_i32_1, %c0_i32_2 : i32, i32, i32, i32
  }
  func.func @transform_4(%arg0: i32, %arg1: i32) -> (i32, i32) {
    %c0_i32 = arith.constant 0 : i32
    %c0_i32_0 = arith.constant 0 : i32
    %c0_i32_1 = arith.constant 0 : i32
    return %c0_i32, %c0_i32_0 : i32, i32
  }
  func.func @transform_5(%arg0: i32, %arg1: i32) -> (i32, i32, i32, i32) {
    %c0_i32 = arith.constant 0 : i32
    %c0_i32_0 = arith.constant 0 : i32
    %c0_i32_1 = arith.constant 0 : i32
    return %arg0, %arg1, %c0_i32, %c0_i32_0 : i32, i32, i32, i32
  }
}

</mosaic_0001>

<llo_original>
// kernel: c2_forward_nchw.1
$region0: #{c2_forward_nchw.1}
  #allocation0 [shape = 'u32[]', space=smem, size = 0x4, offset = 0x4, fixed_abs, tag = 'smem constant byte address 0x4 - core index']
  #allocation1 [shape = 'u32[144,128]{1,0:T(1,128)}', space=vmem, size = 0x12000, scoped, tag = 'internal scratch']
  %s0 = inlined_call_operand.vmem [shape: bf16[2,2,12,16,128], index: 0, kind: input, shape index: {}]
  %s1 = inlined_call_operand.vmem [shape: bf16[3,3,128,128], index: 1, kind: input, shape index: {}]
  %s2 = inlined_call_operand.vmem [shape: f32[1,128], index: 2, kind: input, shape index: {}]
  %s3 = inlined_call_operand.vmem [shape: bf16[3,3,128,128], index: 3, kind: input, shape index: {}]
  %s4 = inlined_call_operand.vmem [shape: f32[1,128], index: 4, kind: input, shape index: {}]
  %s5 = inlined_call_operand.vmem [shape: f32[2,16,16,128], index: 5, kind: output, shape index: {}]
  %s6 = sld [smem:[#allocation0]]
  $region53: #{c2_forward_nchw.1} parent=0
    _
  %s8 = ssub.s32 1, %s6
  %s9 = scalar_select 0, %s8, %s6
  loop: start=0, step=1, limit=6
  $region2: #{c2_forward_nchw.1} parent=0 // loop_pre_header
    _
  $region3: #{c2_forward_nchw.1} parent=0 // loop_header
    %s11 = sphi 0, %s15
    %p12 = scmp.ge.s32.totalorder %s11, 6
    %s18 = sphi 0, %s30
    %s19 = sphi 0, %s26
    %s20 = sphi 0, %s18
    %s21 = sphi 0, %s19
    %s22 = sphi 0, %s20
    %s23 = sphi 0, %s21
    %s35 = sphi 0, %s37
    %s38 = sphi 0, %s35
    %s39 = sphi 0, %s38
    %s55 = sphi 0, %s39
    %s59 = sphi 0, %s59
    %s61 = sphi 0, %s59
    %s62 = sphi 0, %s61
    %s76 = sphi 0, %s62
    %s80 = sphi 0, %s80
    %s82 = sphi 0, %s80
    %s83 = sphi 0, %s82
    %s97 = sphi 0, %s83
    %s101 = sphi 0, %s101
    %s103 = sphi 0, %s101
    %s104 = sphi 0, %s103
    %s118 = sphi 0, %s104
    %s122 = sphi 0, %s122
    %s124 = sphi 0, %s122
    %s125 = sphi 0, %s124
    %s139 = sphi 0, %s125
    %s147 = sphi 0, %s149
    %s150 = sphi 0, %s147
    %s151 = sphi 0, %s150
    %s167 = sphi 0, %s151
  $region4: #{c2_forward_nchw.1} parent=0 // loop_header_branch
    %14 = sbr.rel (%p12) target = $region8
  $region5: #{c2_forward_nchw.1} parent=0 // loop_body
    %s16 = ssub.s32 %s11, 1
    %s17 = ssub.s32 %s11, 2
    %s24 = sadd.s32 1, %s19
    %p25 = scmp.ge.s32.totalorder %s24, 2
    %s26 = scalar_select %p25, 0, %s24
    %s27 = sadd.s32 1, %s18
    %s28 = scalar_select %p25, %s27, %s18
    %p29 = scmp.ge.s32.totalorder %s28, 2
    %s30 = scalar_select %p29, 0, %s28
    %s31 = ssub.s32 %s18, %s30
    %s32 = ssub.s32 %s19, %s26
    %s33 = sor.u32 %s31, %s32
    %p34 = scmp.eq.s32.totalorder %s33, 0
    %s36 = sadd.s32 %s35, 1
    %s37 = scalar_select %p34, %s35, %s36
    %p40 = pneg %p34
    %p41 = scmp.eq.s32.totalorder %s11, 3
    %p42 = por %p40, %p41
    %p43 = scmp.ne.s32.totalorder %s35, %s38
    %p44 = scmp.eq.s32.totalorder %s11, 0
    %p45 = por %p43, %p44
    %p46 = scmp.ne.s32.totalorder %s35, %s38
    %p47 = scmp.eq.s32.totalorder %s16, 3
    %p48 = por %p46, %p47
    %p49 = scmp.ne.s32.totalorder %s38, %s39
    %p50 = scmp.eq.s32.totalorder %s16, 0
    %p51 = por %p49, %p50
    %p52 = scmp.ne.s32.totalorder %s38, %s39
    %p53 = scmp.eq.s32.totalorder %s17, 3
    %p54 = por %p52, %p53
    %p56 = scmp.ne.s32.totalorder %s39, %s55
    %p57 = scmp.eq.s32.totalorder %s17, 0
    %p58 = por %p56, %p57
    %s60 = sadd.s32 %s59, 1
    %p63 = scmp.eq.s32.totalorder %s11, 3
    %p64 = scmp.ne.s32.totalorder %s59, %s61
    %p65 = scmp.eq.s32.totalorder %s11, 0
    %p66 = por %p64, %p65
    %p67 = scmp.ne.s32.totalorder %s59, %s61
    %p68 = scmp.eq.s32.totalorder %s16, 3
    %p69 = por %p67, %p68
    %p70 = scmp.ne.s32.totalorder %s61, %s62
    %p71 = scmp.eq.s32.totalorder %s16, 0
    %p72 = por %p70, %p71
    %p73 = scmp.ne.s32.totalorder %s61, %s62
    %p74 = scmp.eq.s32.totalorder %s17, 3
    %p75 = por %p73, %p74
    %p77 = scmp.ne.s32.totalorder %s62, %s76
    %p78 = scmp.eq.s32.totalorder %s17, 0
    %p79 = por %p77, %p78
    %s81 = sadd.s32 %s80, 1
    %p84 = scmp.eq.s32.totalorder %s11, 3
    %p85 = scmp.ne.s32.totalorder %s80, %s82
    %p86 = scmp.eq.s32.totalorder %s11, 0
    %p87 = por %p85, %p86
    %p88 = scmp.ne.s32.totalorder %s80, %s82
    %p89 = scmp.eq.s32.totalorder %s16, 3
    %p90 = por %p88, %p89
    %p91 = scmp.ne.s32.totalorder %s82, %s83
    %p92 = scmp.eq.s32.totalorder %s16, 0
    %p93 = por %p91, %p92
    %p94 = scmp.ne.s32.totalorder %s82, %s83
    %p95 = scmp.eq.s32.totalorder %s17, 3
    %p96 = por %p94, %p95
    %p98 = scmp.ne.s32.totalorder %s83, %s97
    %p99 = scmp.eq.s32.totalorder %s17, 0
    %p100 = por %p98, %p99
    %s102 = sadd.s32 %s101, 1
    %p105 = scmp.eq.s32.totalorder %s11, 3
    %p106 = scmp.ne.s32.totalorder %s101, %s103
    %p107 = scmp.eq.s32.totalorder %s11, 0
    %p108 = por %p106, %p107
    %p109 = scmp.ne.s32.totalorder %s101, %s103
    %p110 = scmp.eq.s32.totalorder %s16, 3
    %p111 = por %p109, %p110
    %p112 = scmp.ne.s32.totalorder %s103, %s104
    %p113 = scmp.eq.s32.totalorder %s16, 0
    %p114 = por %p112, %p113
    %p115 = scmp.ne.s32.totalorder %s103, %s104
    %p116 = scmp.eq.s32.totalorder %s17, 3
    %p117 = por %p115, %p116
    %p119 = scmp.ne.s32.totalorder %s104, %s118
    %p120 = scmp.eq.s32.totalorder %s17, 0
    %p121 = por %p119, %p120
    %s123 = sadd.s32 %s122, 1
    %p126 = scmp.eq.s32.totalorder %s11, 3
    %p127 = scmp.ne.s32.totalorder %s122, %s124
    %p128 = scmp.eq.s32.totalorder %s11, 0
    %p129 = por %p127, %p128
    %p130 = scmp.ne.s32.totalorder %s122, %s124
    %p131 = scmp.eq.s32.totalorder %s16, 3
    %p132 = por %p130, %p131
    %p133 = scmp.ne.s32.totalorder %s124, %s125
    %p134 = scmp.eq.s32.totalorder %s16, 0
    %p135 = por %p133, %p134
    %p136 = scmp.ne.s32.totalorder %s124, %s125
    %p137 = scmp.eq.s32.totalorder %s17, 3
    %p138 = por %p136, %p137
    %p140 = scmp.ne.s32.totalorder %s125, %s139
    %p141 = scmp.eq.s32.totalorder %s17, 0
    %p142 = por %p140, %p141
    %s143 = ssub.s32 %s18, %s30
    %s144 = ssub.s32 %s19, %s26
    %s145 = sor.u32 %s143, %s144
    %p146 = scmp.eq.s32.totalorder %s145, 0
    %s148 = sadd.s32 %s147, 1
    %s149 = scalar_select %p146, %s147, %s148
    %p152 = pneg %p146
    %p153 = scmp.eq.s32.totalorder %s11, 3
    %p154 = por %p152, %p153
    %p155 = scmp.ne.s32.totalorder %s147, %s150
    %p156 = scmp.eq.s32.totalorder %s11, 0
    %p157 = por %p155, %p156
    %p158 = scmp.ne.s32.totalorder %s147, %s150
    %p159 = scmp.eq.s32.totalorder %s16, 3
    %p160 = por %p158, %p159
    %p161 = scmp.ne.s32.totalorder %s150, %s151
    %p162 = scmp.eq.s32.totalorder %s16, 0
    %p163 = por %p161, %p162
    %p164 = scmp.ne.s32.totalorder %s150, %s151
    %p165 = scmp.eq.s32.totalorder %s17, 3
    %p166 = por %p164, %p165
    %p168 = scmp.ne.s32.totalorder %s151, %s167
    %p169 = scmp.eq.s32.totalorder %s17, 0
    %p170 = por %p168, %p169
    %p171 = scmp.le.s32.totalorder 1, %s11
    %p172 = scmp.lt.s32.totalorder %s11, 5
    %p173 = pnand %p171, %p172
    %p174 = pneg %p173
    // Predicated region
    $region9: #{c2_forward_nchw.1} parent=5 // pred_check
      _
    $region10: #{c2_forward_nchw.1} parent=5 // pred_check_branch
      %176 = sbr.rel (%p173) target = $region12
    $region11: #{c2_forward_nchw.1} parent=5 // pred_region
      %s177 = ssub.s32 %s11, 1
      // Predicated region
      $region13: #{c2_forward_nchw.1} parent=11 // pred_check
        %p178 = pneg %p72
      $region14: #{c2_forward_nchw.1} parent=11 // pred_check_branch
        %180 = sbr.rel (%p178) target = $region16
      $region15: #{c2_forward_nchw.1} parent=11 // pred_region
        _
      $region16: #{c2_forward_nchw.1} parent=11 // pred_fallthru
        _
      // Predicated region
      $region17: #{c2_forward_nchw.1} parent=11 // pred_check
        %p181 = pneg %p93
      $region18: #{c2_forward_nchw.1} parent=11 // pred_check_branch
        %183 = sbr.rel (%p181) target = $region20
      $region19: #{c2_forward_nchw.1} parent=11 // pred_region
        _
      $region20: #{c2_forward_nchw.1} parent=11 // pred_fallthru
        _
      // Predicated region
      $region21: #{c2_forward_nchw.1} parent=11 // pred_check
        %p184 = pneg %p114
      $region22: #{c2_forward_nchw.1} parent=11 // pred_check_branch
        %186 = sbr.rel (%p184) target = $region24
      $region23: #{c2_forward_nchw.1} parent=11 // pred_region
        _
      $region24: #{c2_forward_nchw.1} parent=11 // pred_fallthru
        _
      // Predicated region
      $region25: #{c2_forward_nchw.1} parent=11 // pred_check
        %p187 = pneg %p135
      $region26: #{c2_forward_nchw.1} parent=11 // pred_check_branch
        %189 = sbr.rel (%p187) target = $region28
      $region27: #{c2_forward_nchw.1} parent=11 // pred_region
        _
      $region28: #{c2_forward_nchw.1} parent=11 // pred_fallthru
        _
    $region12: #{c2_forward_nchw.1} parent=5 // pred_fallthru
      _
    %p190 = scmp.lt.s32.totalorder %s11, 4
    // Predicated region
    $region29: #{c2_forward_nchw.1} parent=5 // pred_check
      %p191 = pneg %p190
    $region30: #{c2_forward_nchw.1} parent=5 // pred_check_branch
      %193 = sbr.rel (%p191) target = $region32
    $region31: #{c2_forward_nchw.1} parent=5 // pred_region
      // Predicated region
      $region33: #{c2_forward_nchw.1} parent=31 // pred_check
        %p194 = pneg %p45
      $region34: #{c2_forward_nchw.1} parent=31 // pred_check_branch
        %196 = sbr.rel (%p194) target = $region36
      $region35: #{c2_forward_nchw.1} parent=31 // pred_region
        %p197 = scmp.lt.s32.totalorder %s18, 1
        %s198 = scalar_select %p197, %s18, 1
        %p199 = scmp.lt.s32.totalorder %s19, 1
        %s200 = scalar_select %p199, %s19, 1
        %s201 = smul.addr %s200, 24
        %s202 = smul.addr %s198, 48
        %s203 = sadd.s32 %s201, %s202
        %s204 = smul.addr %s203, 4
        %s205 = scalar_lea.vmem %s0, %s204
      $region36: #{c2_forward_nchw.1} parent=31 // pred_fallthru
        _
    $region32: #{c2_forward_nchw.1} parent=5 // pred_fallthru
      _
    %p206 = scmp.le.s32.totalorder 1, %s11
    %p207 = scmp.lt.s32.totalorder %s11, 5
    %p208 = pnand %p206, %p207
    %p209 = pneg %p208
    // Predicated region
    $region37: #{c2_forward_nchw.1} parent=5 // pred_check
      _
    $region38: #{c2_forward_nchw.1} parent=5 // pred_check_branch
      %211 = sbr.rel (%p208) target = $region40
    $region39: #{c2_forward_nchw.1} parent=5 // pred_region
      %s212 = ssub.s32 %s11, 1
      %p213 = scmp.lt.s32.totalorder %s20, 1
      %s214 = scalar_select %p213, %s20, 1
      %p215 = scmp.lt.s32.totalorder %s21, 1
      %s216 = scalar_select %p215, %s21, 1
      %s217 = smul.addr %s216, 24
      %s218 = smul.addr %s214, 48
      %s219 = sadd.s32 %s217, %s218
      %s220 = smul.addr %s219, 4
      %s221 = scalar_lea.vmem %s0, %s220
      %p222 = pneg %p51
      %p223 = pneg %p48
      %p224 = pneg %p72
      %p225 = pneg %p69
      %p226 = pneg %p93
      %p227 = pneg %p90
      %p228 = pneg %p114
      %p229 = pneg %p111
      %p230 = pneg %p135
      %p231 = pneg %p132
      %p232 = pneg %p163
      %p233 = pneg %p160
      %s234 = smul.u32 8, %s21
      %p235 = scmp.lt.s32.totalorder %s20, 1
      %s236 = scalar_select %p235, %s20, 1
      %p237 = scmp.lt.s32.totalorder %s234, 15
      %s238 = scalar_select %p237, %s234, 15
      %s239 = smul.addr %s238, 2
      %s240 = smul.addr %s236, 32
      %s241 = sadd.s32 %s239, %s240
      %s242 = smul.addr %s241, 8
      %s243 = scalar_lea.vmem %s5, %s242
      %p244 = scmp.lt.s32.totalorder %s20, 1
      %s245 = scalar_select %p244, %s20, 1
      %p246 = scmp.lt.s32.totalorder %s21, 1
      %s247 = scalar_select %p246, %s21, 1
      %s248 = smul.addr %s247, 24
      %s249 = smul.addr %s245, 48
      %s250 = sadd.s32 %s248, %s249
      %s251 = smul.addr %s250, 4
      %s252 = scalar_lea.vmem %s0, %s251
      %s253 = smul.u32 8, %s21
      %p254 = scmp.lt.s32.totalorder %s20, 1
      %s255 = scalar_select %p254, %s20, 1
      %p256 = scmp.lt.s32.totalorder %s253, 15
      %s257 = scalar_select %p256, %s253, 15
      %s258 = smul.addr %s257, 2
      %s259 = smul.addr %s255, 32
      %s260 = sadd.s32 %s258, %s259
      %s261 = smul.addr %s260, 8
      %s262 = scalar_lea.vmem %s5, %s261
      %s263 = smul.u32 8, %s21
      %v265 = vld [vmem:[%s252] sm:$0xf]
      %v266 = vld [vmem:[%s252 + $0x4] sm:$0xf]
      %v267 = vld [vmem:[%s252 + $0x8] sm:$0xf]
      %v268 = vld [vmem:[%s252 + $0xc] sm:$0xf]
      %v269 = vld [vmem:[%s252 + $0x10] sm:$0xf]
      %v270 = vld [vmem:[%s252 + $0x14] sm:$0xf]
      %v271 = vld [vmem:[%s252 + $0x18] sm:$0xf]
      %v272 = vld [vmem:[%s252 + $0x1c] sm:$0xf]
      %v273 = vld [vmem:[%s252 + $0x20] sm:$0xf]
      %v274 = vld [vmem:[%s252 + $0x24] sm:$0xf]
      %v275 = vld [vmem:[%s252 + $0x28] sm:$0xf]
      %v276 = vld [vmem:[%s252 + $0x2c] sm:$0xf]
      %v277 = vld [vmem:[%s252 + $0x30] sm:$0xf]
      %v278 = vld [vmem:[%s252 + $0x34] sm:$0xf]
      %v279 = vld [vmem:[%s252 + $0x38] sm:$0xf]
      %v280 = vld [vmem:[%s252 + $0x3c] sm:$0xf]
      %v281 = vld [vmem:[%s252 + $0x40] sm:$0xf]
      %v282 = vld [vmem:[%s252 + $0x44] sm:$0xf]
      %v283 = vld [vmem:[%s252 + $0x48] sm:$0xf]
      %v284 = vld [vmem:[%s252 + $0x4c] sm:$0xf]
      %v285 = vld [vmem:[%s252 + $0x50] sm:$0xf]
      %v286 = vld [vmem:[%s252 + $0x54] sm:$0xf]
      %v287 = vld [vmem:[%s252 + $0x58] sm:$0xf]
      %v288 = vld [vmem:[%s252 + $0x5c] sm:$0xf]
      %v289 = vld [vmem:[%s2] sm:$0x1]
      %v290 = vld [vmem:[%s1] sm:$0xf]
      %v291 = vld [vmem:[%s1 + $0x4] sm:$0xf]
      %v292 = vld [vmem:[%s1 + $0x8] sm:$0xf]
      %v293 = vld [vmem:[%s1 + $0xc] sm:$0xf]
      %v294 = vld [vmem:[%s1 + $0x10] sm:$0xf]
      %v295 = vld [vmem:[%s1 + $0x14] sm:$0xf]
      %v296 = vld [vmem:[%s1 + $0x18] sm:$0xf]
      %v297 = vld [vmem:[%s1 + $0x1c] sm:$0xf]
      %v298 = vld [vmem:[%s1 + $0x20] sm:$0xf]
      %v299 = vld [vmem:[%s1 + $0x24] sm:$0xf]
      %v300 = vld [vmem:[%s1 + $0x28] sm:$0xf]
      %v301 = vld [vmem:[%s1 + $0x2c] sm:$0xf]
      %v302 = vld [vmem:[%s1 + $0x30] sm:$0xf]
      %v303 = vld [vmem:[%s1 + $0x34] sm:$0xf]
      %v304 = vld [vmem:[%s1 + $0x38] sm:$0xf]
      %v305 = vld [vmem:[%s1 + $0x3c] sm:$0xf]
      %s306 = scalar_lea.vmem %s1, 192
      %v307 = vld [vmem:[%s306] sm:$0xf]
      %v308 = vld [vmem:[%s306 + $0x4] sm:$0xf]
      %v309 = vld [vmem:[%s306 + $0x8] sm:$0xf]
      %v310 = vld [vmem:[%s306 + $0xc] sm:$0xf]
      %v311 = vld [vmem:[%s306 + $0x10] sm:$0xf]
      %v312 = vld [vmem:[%s306 + $0x14] sm:$0xf]
      %v313 = vld [vmem:[%s306 + $0x18] sm:$0xf]
      %v314 = vld [vmem:[%s306 + $0x1c] sm:$0xf]
      %v315 = vld [vmem:[%s306 + $0x20] sm:$0xf]
      %v316 = vld [vmem:[%s306 + $0x24] sm:$0xf]
      %v317 = vld [vmem:[%s306 + $0x28] sm:$0xf]
      %v318 = vld [vmem:[%s306 + $0x2c] sm:$0xf]
      %v319 = vld [vmem:[%s306 + $0x30] sm:$0xf]
      %v320 = vld [vmem:[%s306 + $0x34] sm:$0xf]
      %v321 = vld [vmem:[%s306 + $0x38] sm:$0xf]
      %v322 = vld [vmem:[%s306 + $0x3c] sm:$0xf]
      %v343 = vunpack.c.l.b16 %v267
      %v344 = vunpack.c.l.b16 %v268
      %v345 = vunpack.c.l.b16 %v269
      %v346 = vunpack.c.l.b16 %v270
      %v347 = vunpack.c.l.b16 %v271
      %v348 = vunpack.c.l.b16 %v272
      %v349 = vunpack.c.l.b16 %v273
      %v350 = vunpack.c.l.b16 %v274
      %v351 = vunpack.c.l.b16 %v275
      %v352 = vunpack.c.l.b16 %v276
      %v353 = vunpack.c.l.b16 %v277
      %v354 = vunpack.c.l.b16 %v278
      %v355 = vunpack.c.l.b16 %v279
      %v356 = vunpack.c.l.b16 %v280
      %v357 = vunpack.c.l.b16 %v281
      %v358 = vunpack.c.l.b16 %v282
      %v359 = vunpack.c.l.b16 %v283
      %v360 = vunpack.c.l.b16 %v284
      %v361 = vunpack.c.l.b16 %v285
      %v362 = vunpack.c.l.b16 %v286
      %v363 = vpack.c.b16 %v344, %v343
      %v364 = vpack.c.b16 %v346, %v345
      %v365 = vpack.c.b16 %v348, %v347
      %v366 = vpack.c.b16 %v350, %v349
      %v367 = vpack.c.b16 %v352, %v351
      %v368 = vpack.c.b16 %v354, %v353
      %v369 = vpack.c.b16 %v356, %v355
      %v370 = vpack.c.b16 %v358, %v357
      %v371 = vpack.c.b16 %v360, %v359
      %v372 = vpack.c.b16 %v362, %v361
      %v399 = vunpack.c.l.b16 %v307
      %v400 = vunpack.c.l.b16 %v308
      %v401 = vunpack.c.l.b16 %v309
      %v402 = vunpack.c.l.b16 %v310
      %v403 = vunpack.c.l.b16 %v311
      %v404 = vunpack.c.l.b16 %v312
      %v405 = vunpack.c.l.b16 %v313
      %v406 = vunpack.c.l.b16 %v314
      %v407 = vunpack.c.l.b16 %v315
      %v408 = vunpack.c.l.b16 %v316
      %v409 = vunpack.c.l.b16 %v317
      %v410 = vunpack.c.l.b16 %v318
      %v411 = vunpack.c.l.b16 %v319
      %v412 = vunpack.c.l.b16 %v320
      %v413 = vunpack.c.l.b16 %v321
      %v414 = vunpack.c.l.b16 %v322
      %v415 = vpack.c.b16 %v400, %v399
      %v416 = vpack.c.b16 %v402, %v401
      %v417 = vpack.c.b16 %v404, %v403
      %v418 = vpack.c.b16 %v406, %v405
      %v419 = vpack.c.b16 %v408, %v407
      %v420 = vpack.c.b16 %v410, %v409
      %v421 = vpack.c.b16 %v412, %v411
      %v422 = vpack.c.b16 %v414, %v413
      %431 = vmatprep.subr.bf16.mxu0 0
      %432 = vmatpush1.bf16.msra.mxu0 %v415
      %433 = vmatprep.subr.bf16.mxu0 0
      %434 = vmatpush1.bf16.msra.mxu0 %v416
      %435 = vmatprep.subr.bf16.mxu0 0
      %436 = vmatpush1.bf16.msra.mxu0 %v417
      %437 = vmatprep.subr.bf16.mxu0 0
      %438 = vmatpush1.bf16.msra.mxu0 %v418
      %439 = vmatprep.subr.bf16.mxu0 0
      %440 = vmatpush1.bf16.msra.mxu0 %v419
      %441 = vmatprep.subr.bf16.mxu0 0
      %442 = vmatpush1.bf16.msra.mxu0 %v420
      %443 = vmatprep.subr.bf16.mxu0 0
      %444 = vmatpush1.bf16.msra.mxu0 %v421
      %445 = vmatprep.subr.bf16.mxu0 0
      %446 = vmatpush1.bf16.msra.mxu0 %v422
      %447 = vmatprep.subr.bf16.mxu0 0
      %448 = vmatpush1.bf16.msra.mxu0 0
      %449 = vmatprep.subr.bf16.mxu0 0
      %450 = vmatpush1.bf16.msra.mxu0 0
      %451 = vmatprep.subr.bf16.mxu0 0
      %452 = vmatpush1.bf16.msra.mxu0 0
      %453 = vmatprep.subr.bf16.mxu0 0
      %454 = vmatpush1.bf16.msra.mxu0 0
      %455 = vmatprep.subr.bf16.mxu0 0
      %456 = vmatpush1.bf16.msra.mxu0 0
      %457 = vmatprep.subr.bf16.mxu0 0
      %458 = vmatpush1.bf16.msra.mxu0 0
      %459 = vmatprep.subr.bf16.mxu0 0
      %460 = vmatpush1.bf16.msra.mxu0 0
      %461 = vmatprep.subr.bf16.mxu0 0
      %462 = vmatpush1.bf16.msra.mxu0 0
      %463 = vmatprep.mubr.bf16.mxu0 0
      %464 = vmatmul.mubr.bf16.gmra.mrb[0].mxu0 %v363
      %v465 = vpop.f32.mrb[0].mxu0
      %v466 = vadd.f32 0.0, %v465
      %v467 = vpop.f32.mrb[0].mxu0
      %v468 = vpop.f32.mrb[0].mxu0
      %v469 = vadd.f32 0.0, %v468
      %v470 = vpop.f32.mrb[0].mxu0
      %471 = vmatprep.mubr.bf16.mxu0 0
      %472 = vmatmul.mubr.bf16.gmra.mrb[0].mxu0 %v364
      %v473 = vpop.f32.mrb[0].mxu0
      %v474 = vadd.f32 0.0, %v473
      %v475 = vpop.f32.mrb[0].mxu0
      %v476 = vpop.f32.mrb[0].mxu0
      %v477 = vadd.f32 0.0, %v476
      %v478 = vpop.f32.mrb[0].mxu0
      %479 = vmatprep.mubr.bf16.mxu0 0
      %480 = vmatmul.mubr.bf16.gmra.mrb[0].mxu0 %v365
      %v481 = vpop.f32.mrb[0].mxu0
      %v482 = vadd.f32 0.0, %v481
      %v483 = vpop.f32.mrb[0].mxu0
      %v484 = vpop.f32.mrb[0].mxu0
      %v485 = vadd.f32 0.0, %v484
      %v486 = vpop.f32.mrb[0].mxu0
      %487 = vmatprep.mubr.bf16.mxu0 0
      %488 = vmatmul.mubr.bf16.gmra.mrb[0].mxu0 %v366
      %v489 = vpop.f32.mrb[0].mxu0
      %v490 = vadd.f32 0.0, %v489
      %v491 = vpop.f32.mrb[0].mxu0
      %v492 = vpop.f32.mrb[0].mxu0
      %v493 = vadd.f32 0.0, %v492
      %v494 = vpop.f32.mrb[0].mxu0
      %495 = vmatprep.mubr.bf16.mxu0 0
      %496 = vmatmul.mubr.bf16.gmra.mrb[0].mxu0 %v367
      %v497 = vpop.f32.mrb[0].mxu0
      %v498 = vadd.f32 0.0, %v497
      %v499 = vpop.f32.mrb[0].mxu0
      %v500 = vpop.f32.mrb[0].mxu0
      %v501 = vadd.f32 0.0, %v500
      %v502 = vpop.f32.mrb[0].mxu0
      %503 = vmatprep.mubr.bf16.mxu0 0
      %504 = vmatmul.mubr.bf16.gmra.mrb[0].mxu0 %v368
      %v505 = vpop.f32.mrb[0].mxu0
      %v506 = vadd.f32 0.0, %v505
      %v507 = vpop.f32.mrb[0].mxu0
      %v508 = vpop.f32.mrb[0].mxu0
      %v509 = vadd.f32 0.0, %v508
      %v510 = vpop.f32.mrb[0].mxu0
      %511 = vmatprep.mubr.bf16.mxu0 0
      %512 = vmatmul.mubr.bf16.gmra.mrb[0].mxu0 %v369
      %v513 = vpop.f32.mrb[0].mxu0
      %v514 = vadd.f32 0.0, %v513
      %v515 = vpop.f32.mrb[0].mxu0
      %v516 = vpop.f32.mrb[0].mxu0
      %v517 = vadd.f32 0.0, %v516
      %v518 = vpop.f32.mrb[0].mxu0
      %519 = vmatprep.mubr.bf16.mxu0 0
      %520 = vmatmul.mubr.bf16.gmra.mrb[0].mxu0 %v370
      %v521 = vpop.f32.mrb[0].mxu0
      %v522 = vadd.f32 0.0, %v521
      %v523 = vpop.f32.mrb[0].mxu0
      %v524 = vpop.f32.mrb[0].mxu0
      %v525 = vadd.f32 0.0, %v524
      %v526 = vpop.f32.mrb[0].mxu0
      %527 = vmatprep.mubr.bf16.mxu0 0
      %528 = vmatmul.mubr.bf16.gmra.mrb[0].mxu0 %v371
      %v529 = vpop.f32.mrb[0].mxu0
      %v530 = vadd.f32 0.0, %v529
      %v531 = vpop.f32.mrb[0].mxu0
      %v532 = vpop.f32.mrb[0].mxu0
      %v533 = vadd.f32 0.0, %v532
      %v534 = vpop.f32.mrb[0].mxu0
      %535 = vmatprep.mubr.bf16.mxu0 0
      %536 = vmatmul.mubr.bf16.gmra.mrb[0].mxu0 %v372
      %v537 = vpop.f32.mrb[0].mxu0
      %v538 = vadd.f32 0.0, %v537
      %v539 = vpop.f32.mrb[0].mxu0
      %v540 = vpop.f32.mrb[0].mxu0
      %v541 = vadd.f32 0.0, %v540
      %v542 = vpop.f32.mrb[0].mxu0
      %543 = vdwg.mxu0
      %v546 = vunpack.c.l.b16 %v265
      %v547 = vunpack.c.l.b16 %v266
      %v548 = vpack.c.b16 %v547, %v546
      %v566 = vunpack.c.l.b16 %v290
      %v567 = vunpack.c.l.b16 %v291
      %v568 = vunpack.c.l.b16 %v292
      %v569 = vunpack.c.l.b16 %v293
      %v570 = vunpack.c.l.b16 %v294
      %v571 = vunpack.c.l.b16 %v295
      %v572 = vunpack.c.l.b16 %v296
      %v573 = vunpack.c.l.b16 %v297
      %v574 = vunpack.c.l.b16 %v298
      %v575 = vunpack.c.l.b16 %v299
      %v576 = vunpack.c.l.b16 %v300
      %v577 = vunpack.c.l.b16 %v301
      %v578 = vunpack.c.l.b16 %v302
      %v579 = vunpack.c.l.b16 %v303
      %v580 = vunpack.c.l.b16 %v304
      %v581 = vunpack.c.l.b16 %v305
      %v582 = vpack.c.b16 %v567, %v566
      %v583 = vpack.c.b16 %v569, %v568
      %v584 = vpack.c.b16 %v571, %v570
      %v585 = vpack.c.b16 %v573, %v572
      %v586 = vpack.c.b16 %v575, %v574
      %v587 = vpack.c.b16 %v577, %v576
      %v588 = vpack.c.b16 %v579, %v578
      %v589 = vpack.c.b16 %v581, %v580
      %598 = vmatprep.subr.bf16.mxu0 0
      %599 = vmatpush1.bf16.msra.mxu0 %v582
      %600 = vmatprep.subr.bf16.mxu0 0
      %601 = vmatpush1.bf16.msra.mxu0 %v583
      %602 = vmatprep.subr.bf16.mxu0 0
      %603 = vmatpush1.bf16.msra.mxu0 %v584
      %604 = vmatprep.subr.bf16.mxu0 0
      %605 = vmatpush1.bf16.msra.mxu0 %v585
      %606 = vmatprep.subr.bf16.mxu0 0
      %607 = vmatpush1.bf16.msra.mxu0 %v586
      %608 = vmatprep.subr.bf16.mxu0 0
      %609 = vmatpush1.bf16.msra.mxu0 %v587
      %610 = vmatprep.subr.bf16.mxu0 0
      %611 = vmatpush1.bf16.msra.mxu0 %v588
      %612 = vmatprep.subr.bf16.mxu0 0
      %613 = vmatpush1.bf16.msra.mxu0 %v589
      %614 = vmatprep.subr.bf16.mxu0 0
      %615 = vmatpush1.bf16.msra.mxu0 0
      %616 = vmatprep.subr.bf16.mxu0 0
      %617 = vmatpush1.bf16.msra.mxu0 0
      %618 = vmatprep.subr.bf16.mxu0 0
      %619 = vmatpush1.bf16.msra.mxu0 0
      %620 = vmatprep.subr.bf16.mxu0 0
      %621 = vmatpush1.bf16.msra.mxu0 0
      %622 = vmatprep.subr.bf16.mxu0 0
      %623 = vmatpush1.bf16.msra.mxu0 0
      %624 = vmatprep.subr.bf16.mxu0 0
      %625 = vmatpush1.bf16.msra.mxu0 0
      %626 = vmatprep.subr.bf16.mxu0 0
      %627 = vmatpush1.bf16.msra.mxu0 0
      %628 = vmatprep.subr.bf16.mxu0 0
      %629 = vmatpush1.bf16.msra.mxu0 0
      %630 = vmatprep.mubr.bf16.mxu0 0
      %631 = vmatmul.mubr.bf16.gmra.mrb[0].mxu0 %v548
      %v632 = vpop.f32.mrb[0].mxu0
      %v633 = vadd.f32 %v466, %v632
      %v634 = vpop.f32.mrb[0].mxu0
      %v635 = vpop.f32.mrb[0].mxu0
      %v636 = vadd.f32 %v469, %v635
      %v637 = vpop.f32.mrb[0].mxu0
      %638 = vmatprep.mubr.bf16.mxu0 0
      %639 = vmatmul.mubr.bf16.gmra.mrb[0].mxu0 %v363
      %v640 = vpop.f32.mrb[0].mxu0
      %v641 = vadd.f32 %v474, %v640
      %v642 = vpop.f32.mrb[0].mxu0
      %v643 = vpop.f32.mrb[0].mxu0
      %v644 = vadd.f32 %v477, %v643
      %v645 = vpop.f32.mrb[0].mxu0
      %646 = vmatprep.mubr.bf16.mxu0 0
      %647 = vmatmul.mubr.bf16.gmra.mrb[0].mxu0 %v364
      %v648 = vpop.f32.mrb[0].mxu0
      %v649 = vadd.f32 %v482, %v648
      %v650 = vpop.f32.mrb[0].mxu0
      %v651 = vpop.f32.mrb[0].mxu0
      %v652 = vadd.f32 %v485, %v651
      %v653 = vpop.f32.mrb[0].mxu0
      %654 = vmatprep.mubr.bf16.mxu0 0
      %655 = vmatmul.mubr.bf16.gmra.mrb[0].mxu0 %v365
      %v656 = vpop.f32.mrb[0].mxu0
      %v657 = vadd.f32 %v490, %v656
      %v658 = vpop.f32.mrb[0].mxu0
      %v659 = vpop.f32.mrb[0].mxu0
      %v660 = vadd.f32 %v493, %v659
      %v661 = vpop.f32.mrb[0].mxu0
      %662 = vmatprep.mubr.bf16.mxu0 0
      %663 = vmatmul.mubr.bf16.gmra.mrb[0].mxu0 %v366
      %v664 = vpop.f32.mrb[0].mxu0
      %v665 = vadd.f32 %v498, %v664
      %v666 = vpop.f32.mrb[0].mxu0
      %v667 = vpop.f32.mrb[0].mxu0
      %v668 = vadd.f32 %v501, %v667
      %v669 = vpop.f32.mrb[0].mxu0
      %670 = vmatprep.mubr.bf16.mxu0 0
      %671 = vmatmul.mubr.bf16.gmra.mrb[0].mxu0 %v367
      %v672 = vpop.f32.mrb[0].mxu0
      %v673 = vadd.f32 %v506, %v672
      %v674 = vpop.f32.mrb[0].mxu0
      %v675 = vpop.f32.mrb[0].mxu0
      %v676 = vadd.f32 %v509, %v675
      %v677 = vpop.f32.mrb[0].mxu0
      %678 = vmatprep.mubr.bf16.mxu0 0
      %679 = vmatmul.mubr.bf16.gmra.mrb[0].mxu0 %v368
      %v680 = vpop.f32.mrb[0].mxu0
      %v681 = vadd.f32 %v514, %v680
      %v682 = vpop.f32.mrb[0].mxu0
      %v683 = vpop.f32.mrb[0].mxu0
      %v684 = vadd.f32 %v517, %v683
      %v685 = vpop.f32.mrb[0].mxu0
      %686 = vmatprep.mubr.bf16.mxu0 0
      %687 = vmatmul.mubr.bf16.gmra.mrb[0].mxu0 %v369
      %v688 = vpop.f32.mrb[0].mxu0
      %v689 = vadd.f32 %v522, %v688
      %v690 = vpop.f32.mrb[0].mxu0
      %v691 = vpop.f32.mrb[0].mxu0
      %v692 = vadd.f32 %v525, %v691
      %v693 = vpop.f32.mrb[0].mxu0
      %694 = vmatprep.mubr.bf16.mxu0 0
      %695 = vmatmul.mubr.bf16.gmra.mrb[0].mxu0 %v370
      %v696 = vpop.f32.mrb[0].mxu0
      %v697 = vadd.f32 %v530, %v696
      %v698 = vpop.f32.mrb[0].mxu0
      %v699 = vpop.f32.mrb[0].mxu0
      %v700 = vadd.f32 %v533, %v699
      %v701 = vpop.f32.mrb[0].mxu0
      %702 = vmatprep.mubr.bf16.mxu0 0
      %703 = vmatmul.mubr.bf16.gmra.mrb[0].mxu0 %v371
      %v704 = vpop.f32.mrb[0].mxu0
      %v705 = vadd.f32 %v538, %v704
      %v706 = vpop.f32.mrb[0].mxu0
      %v707 = vpop.f32.mrb[0].mxu0
      %v708 = vadd.f32 %v541, %v707
      %v709 = vpop.f32.mrb[0].mxu0
      %710 = vdwg.mxu0
      %s711 = scalar_lea.vmem %s1, 384
      %v712 = vld [vmem:[%s711] sm:$0xf]
      %v713 = vld [vmem:[%s711 + $0x4] sm:$0xf]
      %v714 = vld [vmem:[%s711 + $0x8] sm:$0xf]
      %v715 = vld [vmem:[%s711 + $0xc] sm:$0xf]
      %v716 = vld [vmem:[%s711 + $0x10] sm:$0xf]
      %v717 = vld [vmem:[%s711 + $0x14] sm:$0xf]
      %v718 = vld [vmem:[%s711 + $0x18] sm:$0xf]
      %v719 = vld [vmem:[%s711 + $0x1c] sm:$0xf]
      %v720 = vld [vmem:[%s711 + $0x20] sm:$0xf]
      %v721 = vld [vmem:[%s711 + $0x24] sm:$0xf]
      %v722 = vld [vmem:[%s711 + $0x28] sm:$0xf]
      %v723 = vld [vmem:[%s711 + $0x2c] sm:$0xf]
      %v724 = vld [vmem:[%s711 + $0x30] sm:$0xf]
      %v725 = vld [vmem:[%s711 + $0x34] sm:$0xf]
      %v726 = vld [vmem:[%s711 + $0x38] sm:$0xf]
      %v727 = vld [vmem:[%s711 + $0x3c] sm:$0xf]
      %v730 = vunpack.c.l.b16 %v287
      %v731 = vunpack.c.l.b16 %v288
      %v732 = vpack.c.b16 %v731, %v730
      %v750 = vunpack.c.l.b16 %v712
      %v751 = vunpack.c.l.b16 %v713
      %v752 = vunpack.c.l.b16 %v714
      %v753 = vunpack.c.l.b16 %v715
      %v754 = vunpack.c.l.b16 %v716
      %v755 = vunpack.c.l.b16 %v717
      %v756 = vunpack.c.l.b16 %v718
      %v757 = vunpack.c.l.b16 %v719
      %v758 = vunpack.c.l.b16 %v720
      %v759 = vunpack.c.l.b16 %v721
      %v760 = vunpack.c.l.b16 %v722
      %v761 = vunpack.c.l.b16 %v723
      %v762 = vunpack.c.l.b16 %v724
      %v763 = vunpack.c.l.b16 %v725
      %v764 = vunpack.c.l.b16 %v726
      %v765 = vunpack.c.l.b16 %v727
      %v766 = vpack.c.b16 %v751, %v750
      %v767 = vpack.c.b16 %v753, %v752
      %v768 = vpack.c.b16 %v755, %v754
      %v769 = vpack.c.b16 %v757, %v756
      %v770 = vpack.c.b16 %v759, %v758
      %v771 = vpack.c.b16 %v761, %v760
      %v772 = vpack.c.b16 %v763, %v762
      %v773 = vpack.c.b16 %v765, %v764
      %782 = vmatprep.subr.bf16.mxu0 0
      %783 = vmatpush1.bf16.msra.mxu0 %v766
      %784 = vmatprep.subr.bf16.mxu0 0
      %785 = vmatpush1.bf16.msra.mxu0 %v767
      %786 = vmatprep.subr.bf16.mxu0 0
      %787 = vmatpush1.bf16.msra.mxu0 %v768
      %788 = vmatprep.subr.bf16.mxu0 0
      %789 = vmatpush1.bf16.msra.mxu0 %v769
      %790 = vmatprep.subr.bf16.mxu0 0
      %791 = vmatpush1.bf16.msra.mxu0 %v770
      %792 = vmatprep.subr.bf16.mxu0 0
      %793 = vmatpush1.bf16.msra.mxu0 %v771
      %794 = vmatprep.subr.bf16.mxu0 0
      %795 = vmatpush1.bf16.msra.mxu0 %v772
      %796 = vmatprep.subr.bf16.mxu0 0
      %797 = vmatpush1.bf16.msra.mxu0 %v773
      %798 = vmatprep.subr.bf16.mxu0 0
      %799 = vmatpush1.bf16.msra.mxu0 0
      %800 = vmatprep.subr.bf16.mxu0 0
      %801 = vmatpush1.bf16.msra.mxu0 0
      %802 = vmatprep.subr.bf16.mxu0 0
      %803 = vmatpush1.bf16.msra.mxu0 0
      %804 = vmatprep.subr.bf16.mxu0 0
      %805 = vmatpush1.bf16.msra.mxu0 0
      %806 = vmatprep.subr.bf16.mxu0 0
      %807 = vmatpush1.bf16.msra.mxu0 0
      %808 = vmatprep.subr.bf16.mxu0 0
      %809 = vmatpush1.bf16.msra.mxu0 0
      %810 = vmatprep.subr.bf16.mxu0 0
      %811 = vmatpush1.bf16.msra.mxu0 0
      %812 = vmatprep.subr.bf16.mxu0 0
      %813 = vmatpush1.bf16.msra.mxu0 0
      %814 = vmatprep.mubr.bf16.mxu0 0
      %815 = vmatmul.mubr.bf16.gmra.mrb[0].mxu0 %v364
      %v816 = vpop.f32.mrb[0].mxu0
      %v817 = vadd.f32 0.0, %v816
      %v818 = vpop.f32.mrb[0].mxu0
      %v819 = vpop.f32.mrb[0].mxu0
      %v820 = vadd.f32 0.0, %v819
      %v821 = vpop.f32.mrb[0].mxu0
      %822 = vmatprep.mubr.bf16.mxu0 0
      %823 = vmatmul.mubr.bf16.gmra.mrb[0].mxu0 %v365
      %v824 = vpop.f32.mrb[0].mxu0
      %v825 = vadd.f32 0.0, %v824
      %v826 = vpop.f32.mrb[0].mxu0
      %v827 = vpop.f32.mrb[0].mxu0
      %v828 = vadd.f32 0.0, %v827
      %v829 = vpop.f32.mrb[0].mxu0
      %830 = vmatprep.mubr.bf16.mxu0 0
      %831 = vmatmul.mubr.bf16.gmra.mrb[0].mxu0 %v366
      %v832 = vpop.f32.mrb[0].mxu0
      %v833 = vadd.f32 0.0, %v832
      %v834 = vpop.f32.mrb[0].mxu0
      %v835 = vpop.f32.mrb[0].mxu0
      %v836 = vadd.f32 0.0, %v835
      %v837 = vpop.f32.mrb[0].mxu0
      %838 = vmatprep.mubr.bf16.mxu0 0
      %839 = vmatmul.mubr.bf16.gmra.mrb[0].mxu0 %v367
      %v840 = vpop.f32.mrb[0].mxu0
      %v841 = vadd.f32 0.0, %v840
      %v842 = vpop.f32.mrb[0].mxu0
      %v843 = vpop.f32.mrb[0].mxu0
      %v844 = vadd.f32 0.0, %v843
      %v845 = vpop.f32.mrb[0].mxu0
      %846 = vmatprep.mubr.bf16.mxu0 0
      %847 = vmatmul.mubr.bf16.gmra.mrb[0].mxu0 %v368
      %v848 = vpop.f32.mrb[0].mxu0
      %v849 = vadd.f32 0.0, %v848
      %v850 = vpop.f32.mrb[0].mxu0
      %v851 = vpop.f32.mrb[0].mxu0
      %v852 = vadd.f32 0.0, %v851
      %v853 = vpop.f32.mrb[0].mxu0
      %854 = vmatprep.mubr.bf16.mxu0 0
      %855 = vmatmul.mubr.bf16.gmra.mrb[0].mxu0 %v369
      %v856 = vpop.f32.mrb[0].mxu0
      %v857 = vadd.f32 0.0, %v856
      %v858 = vpop.f32.mrb[0].mxu0
      %v859 = vpop.f32.mrb[0].mxu0
      %v860 = vadd.f32 0.0, %v859
      %v861 = vpop.f32.mrb[0].mxu0
      %862 = vmatprep.mubr.bf16.mxu0 0
      %863 = vmatmul.mubr.bf16.gmra.mrb[0].mxu0 %v370
      %v864 = vpop.f32.mrb[0].mxu0
      %v865 = vadd.f32 0.0, %v864
      %v866 = vpop.f32.mrb[0].mxu0
      %v867 = vpop.f32.mrb[0].mxu0
      %v868 = vadd.f32 0.0, %v867
      %v869 = vpop.f32.mrb[0].mxu0
      %870 = vmatprep.mubr.bf16.mxu0 0
      %871 = vmatmul.mubr.bf16.gmra.mrb[0].mxu0 %v371
      %v872 = vpop.f32.mrb[0].mxu0
      %v873 = vadd.f32 0.0, %v872
      %v874 = vpop.f32.mrb[0].mxu0
      %v875 = vpop.f32.mrb[0].mxu0
      %v876 = vadd.f32 0.0, %v875
      %v877 = vpop.f32.mrb[0].mxu0
      %878 = vmatprep.mubr.bf16.mxu0 0
      %879 = vmatmul.mubr.bf16.gmra.mrb[0].mxu0 %v372
      %v880 = vpop.f32.mrb[0].mxu0
      %v881 = vadd.f32 0.0, %v880
      %v882 = vpop.f32.mrb[0].mxu0
      %v883 = vpop.f32.mrb[0].mxu0
      %v884 = vadd.f32 0.0, %v883
      %v885 = vpop.f32.mrb[0].mxu0
      %886 = vmatprep.mubr.bf16.mxu0 0
      %887 = vmatmul.mubr.bf16.gmra.mrb[0].mxu0 %v732
      %v888 = vpop.f32.mrb[0].mxu0
      %v889 = vadd.f32 0.0, %v888
      %v890 = vpop.f32.mrb[0].mxu0
      %v891 = vpop.f32.mrb[0].mxu0
      %v892 = vadd.f32 0.0, %v891
      %v893 = vpop.f32.mrb[0].mxu0
      %894 = vdwg.mxu0
      %v895 = vadd.f32 %v633, %v817
      %v896 = vadd.f32 %v636, %v820
      %v897 = vadd.f32 %v641, %v825
      %v898 = vadd.f32 %v644, %v828
      %v899 = vadd.f32 %v649, %v833
      %v900 = vadd.f32 %v652, %v836
      %v901 = vadd.f32 %v657, %v841
      %v902 = vadd.f32 %v660, %v844
      %v903 = vadd.f32 %v665, %v849
      %v904 = vadd.f32 %v668, %v852
      %v905 = vadd.f32 %v673, %v857
      %v906 = vadd.f32 %v676, %v860
      %v907 = vadd.f32 %v681, %v865
      %v908 = vadd.f32 %v684, %v868
      %v909 = vadd.f32 %v689, %v873
      %v910 = vadd.f32 %v692, %v876
      %v911 = vadd.f32 %v697, %v881
      %v912 = vadd.f32 %v700, %v884
      %v913 = vadd.f32 %v705, %v889
      %v914 = vadd.f32 %v708, %v892
      %vm915 = vsmask.f32 7424
      %v917 = vshrl.u32 %v548, 16
      %v919 = vshll.u32 %v548, 16
      %v921 = vrot.slane %v919, 1
      %v922 = vor.u32 %v917, %v921
      %v924 = vshll.u32 %v363, 16
      %v926 = vrot.slane %v924, 1
      %v927 = vsel %vm915, %v922, %v926
      %v928 = vshrl.u32 %v363, 16
      %v930 = vor.u32 %v928, %v926
      %v932 = vshll.u32 %v364, 16
      %v934 = vrot.slane %v932, 1
      %v935 = vsel %vm915, %v930, %v934
      %v936 = vshrl.u32 %v364, 16
      %v938 = vor.u32 %v936, %v934
      %v940 = vshll.u32 %v365, 16
      %v942 = vrot.slane %v940, 1
      %v943 = vsel %vm915, %v938, %v942
      %v944 = vshrl.u32 %v365, 16
      %v946 = vor.u32 %v944, %v942
      %v948 = vshll.u32 %v366, 16
      %v950 = vrot.slane %v948, 1
      %v951 = vsel %vm915, %v946, %v950
      %v952 = vshrl.u32 %v366, 16
      %v954 = vor.u32 %v952, %v950
      %v956 = vshll.u32 %v367, 16
      %v958 = vrot.slane %v956, 1
      %v959 = vsel %vm915, %v954, %v958
      %v960 = vshrl.u32 %v367, 16
      %v962 = vor.u32 %v960, %v958
      %v964 = vshll.u32 %v368, 16
      %v966 = vrot.slane %v964, 1
      %v967 = vsel %vm915, %v962, %v966
      %v968 = vshrl.u32 %v368, 16
      %v970 = vor.u32 %v968, %v966
      %v972 = vshll.u32 %v369, 16
      %v974 = vrot.slane %v972, 1
      %v975 = vsel %vm915, %v970, %v974
      %v976 = vshrl.u32 %v369, 16
      %v978 = vor.u32 %v976, %v974
      %v980 = vshll.u32 %v370, 16
      %v982 = vrot.slane %v980, 1
      %v983 = vsel %vm915, %v978, %v982
      %v984 = vshrl.u32 %v370, 16
      %v986 = vor.u32 %v984, %v982
      %v988 = vshll.u32 %v371, 16
      %v990 = vrot.slane %v988, 1
      %v991 = vsel %vm915, %v986, %v990
      %v992 = vshrl.u32 %v371, 16
      %v994 = vor.u32 %v992, %v990
      %v996 = vshll.u32 %v372, 16
      %v998 = vrot.slane %v996, 1
      %v999 = vsel %vm915, %v994, %v998
      %v1000 = vshrl.u32 %v372, 16
      %v1002 = vor.u32 %v1000, %v998
      %v1004 = vshll.u32 %v732, 16
      %v1006 = vrot.slane %v1004, 1
      %v1007 = vsel %vm915, %v1002, %v1006
      %v1008 = vshrl.u32 %v732, 16
      %v1010 = vor.u32 %v1008, %v1006
      %v1023 = vpack.c.b16 %v546, %v546
      %v1025 = vshll.u32 %v1023, 16
      %v1027 = vrot.slane %v1025, 1
      %vm1029 = vcmask 1047552
      %vm1030 = vmand %vm1029, %vm915
      %v1031 = vsel %vm1030, %v1010, %v1027
      %s1032 = scalar_lea.vmem %s1, 64
      %v1033 = vld [vmem:[%s1032] sm:$0xf]
      %v1034 = vld [vmem:[%s1032 + $0x4] sm:$0xf]
      %v1035 = vld [vmem:[%s1032 + $0x8] sm:$0xf]
      %v1036 = vld [vmem:[%s1032 + $0xc] sm:$0xf]
      %v1037 = vld [vmem:[%s1032 + $0x10] sm:$0xf]
      %v1038 = vld [vmem:[%s1032 + $0x14] sm:$0xf]
      %v1039 = vld [vmem:[%s1032 + $0x18] sm:$0xf]
      %v1040 = vld [vmem:[%s1032 + $0x1c] sm:$0xf]
      %v1041 = vld [vmem:[%s1032 + $0x20] sm:$0xf]
      %v1042 = vld [vmem:[%s1032 + $0x24] sm:$0xf]
      %v1043 = vld [vmem:[%s1032 + $0x28] sm:$0xf]
      %v1044 = vld [vmem:[%s1032 + $0x2c] sm:$0xf]
      %v1045 = vld [vmem:[%s1032 + $0x30] sm:$0xf]
      %v1046 = vld [vmem:[%s1032 + $0x34] sm:$0xf]
      %v1047 = vld [vmem:[%s1032 + $0x38] sm:$0xf]
      %v1048 = vld [vmem:[%s1032 + $0x3c] sm:$0xf]
      %v1065 = vunpack.c.l.b16 %v1033
      %v1066 = vunpack.c.l.b16 %v1034
      %v1067 = vunpack.c.l.b16 %v1035
      %v1068 = vunpack.c.l.b16 %v1036
      %v1069 = vunpack.c.l.b16 %v1037
      %v1070 = vunpack.c.l.b16 %v1038
      %v1071 = vunpack.c.l.b16 %v1039
      %v1072 = vunpack.c.l.b16 %v1040
      %v1073 = vunpack.c.l.b16 %v1041
      %v1074 = vunpack.c.l.b16 %v1042
      %v1075 = vunpack.c.l.b16 %v1043
      %v1076 = vunpack.c.l.b16 %v1044
      %v1077 = vunpack.c.l.b16 %v1045
      %v1078 = vunpack.c.l.b16 %v1046
      %v1079 = vunpack.c.l.b16 %v1047
      %v1080 = vunpack.c.l.b16 %v1048
      %v1081 = vpack.c.b16 %v1066, %v1065
      %v1082 = vpack.c.b16 %v1068, %v1067
      %v1083 = vpack.c.b16 %v1070, %v1069
      %v1084 = vpack.c.b16 %v1072, %v1071
      %v1085 = vpack.c.b16 %v1074, %v1073
      %v1086 = vpack.c.b16 %v1076, %v1075
      %v1087 = vpack.c.b16 %v1078, %v1077
      %v1088 = vpack.c.b16 %v1080, %v1079
      %1097 = vmatprep.subr.bf16.mxu0 0
      %1098 = vmatpush1.bf16.msra.mxu0 %v1081
      %1099 = vmatprep.subr.bf16.mxu0 0
      %1100 = vmatpush1.bf16.msra.mxu0 %v1082
      %1101 = vmatprep.subr.bf16.mxu0 0
      %1102 = vmatpush1.bf16.msra.mxu0 %v1083
      %1103 = vmatprep.subr.bf16.mxu0 0
      %1104 = vmatpush1.bf16.msra.mxu0 %v1084
      %1105 = vmatprep.subr.bf16.mxu0 0
      %1106 = vmatpush1.bf16.msra.mxu0 %v1085
      %1107 = vmatprep.subr.bf16.mxu0 0
      %1108 = vmatpush1.bf16.msra.mxu0 %v1086
      %1109 = vmatprep.subr.bf16.mxu0 0
      %1110 = vmatpush1.bf16.msra.mxu0 %v1087
      %1111 = vmatprep.subr.bf16.mxu0 0
      %1112 = vmatpush1.bf16.msra.mxu0 %v1088
      %1113 = vmatprep.subr.bf16.mxu0 0
      %1114 = vmatpush1.bf16.msra.mxu0 0
      %1115 = vmatprep.subr.bf16.mxu0 0
      %1116 = vmatpush1.bf16.msra.mxu0 0
      %1117 = vmatprep.subr.bf16.mxu0 0
      %1118 = vmatpush1.bf16.msra.mxu0 0
      %1119 = vmatprep.subr.bf16.mxu0 0
      %1120 = vmatpush1.bf16.msra.mxu0 0
      %1121 = vmatprep.subr.bf16.mxu0 0
      %1122 = vmatpush1.bf16.msra.mxu0 0
      %1123 = vmatprep.subr.bf16.mxu0 0
      %1124 = vmatpush1.bf16.msra.mxu0 0
      %1125 = vmatprep.subr.bf16.mxu0 0
      %1126 = vmatpush1.bf16.msra.mxu0 0
      %1127 = vmatprep.subr.bf16.mxu0 0
      %1128 = vmatpush1.bf16.msra.mxu0 0
      %1129 = vmatprep.mubr.bf16.mxu0 0
      %1130 = vmatmul.mubr.bf16.gmra.mrb[0].mxu0 %v927
      %v1131 = vpop.f32.mrb[0].mxu0
      %v1132 = vadd.f32 0.0, %v1131
      %v1133 = vpop.f32.mrb[0].mxu0
      %v1134 = vpop.f32.mrb[0].mxu0
      %v1135 = vadd.f32 0.0, %v1134
      %v1136 = vpop.f32.mrb[0].mxu0
      %1137 = vmatprep.mubr.bf16.mxu0 0
      %1138 = vmatmul.mubr.bf16.gmra.mrb[0].mxu0 %v935
      %v1139 = vpop.f32.mrb[0].mxu0
      %v1140 = vadd.f32 0.0, %v1139
      %v1141 = vpop.f32.mrb[0].mxu0
      %v1142 = vpop.f32.mrb[0].mxu0
      %v1143 = vadd.f32 0.0, %v1142
      %v1144 = vpop.f32.mrb[0].mxu0
      %1145 = vmatprep.mubr.bf16.mxu0 0
      %1146 = vmatmul.mubr.bf16.gmra.mrb[0].mxu0 %v943
      %v1147 = vpop.f32.mrb[0].mxu0
      %v1148 = vadd.f32 0.0, %v1147
      %v1149 = vpop.f32.mrb[0].mxu0
      %v1150 = vpop.f32.mrb[0].mxu0
      %v1151 = vadd.f32 0.0, %v1150
      %v1152 = vpop.f32.mrb[0].mxu0
      %1153 = vmatprep.mubr.bf16.mxu0 0
      %1154 = vmatmul.mubr.bf16.gmra.mrb[0].mxu0 %v951
      %v1155 = vpop.f32.mrb[0].mxu0
      %v1156 = vadd.f32 0.0, %v1155
      %v1157 = vpop.f32.mrb[0].mxu0
      %v1158 = vpop.f32.mrb[0].mxu0
      %v1159 = vadd.f32 0.0, %v1158
      %v1160 = vpop.f32.mrb[0].mxu0
      %1161 = vmatprep.mubr.bf16.mxu0 0
      %1162 = vmatmul.mubr.bf16.gmra.mrb[0].mxu0 %v959
      %v1163 = vpop.f32.mrb[0].mxu0
      %v1164 = vadd.f32 0.0, %v1163
      %v1165 = vpop.f32.mrb[0].mxu0
      %v1166 = vpop.f32.mrb[0].mxu0
      %v1167 = vadd.f32 0.0, %v1166
      %v1168 = vpop.f32.mrb[0].mxu0
      %1169 = vmatprep.mubr.bf16.mxu0 0
      %1170 = vmatmul.mubr.bf16.gmra.mrb[0].mxu0 %v967
      %v1171 = vpop.f32.mrb[0].mxu0
      %v1172 = vadd.f32 0.0, %v1171
      %v1173 = vpop.f32.mrb[0].mxu0
      %v1174 = vpop.f32.mrb[0].mxu0
      %v1175 = vadd.f32 0.0, %v1174
      %v1176 = vpop.f32.mrb[0].mxu0
      %1177 = vmatprep.mubr.bf16.mxu0 0
      %1178 = vmatmul.mubr.bf16.gmra.mrb[0].mxu0 %v975
      %v1179 = vpop.f32.mrb[0].mxu0
      %v1180 = vadd.f32 0.0, %v1179
      %v1181 = vpop.f32.mrb[0].mxu0
      %v1182 = vpop.f32.mrb[0].mxu0
      %v1183 = vadd.f32 0.0, %v1182
      %v1184 = vpop.f32.mrb[0].mxu0
      %1185 = vmatprep.mubr.bf16.mxu0 0
      %1186 = vmatmul.mubr.bf16.gmra.mrb[0].mxu0 %v983
      %v1187 = vpop.f32.mrb[0].mxu0
      %v1188 = vadd.f32 0.0, %v1187
      %v1189 = vpop.f32.mrb[0].mxu0
      %v1190 = vpop.f32.mrb[0].mxu0
      %v1191 = vadd.f32 0.0, %v1190
      %v1192 = vpop.f32.mrb[0].mxu0
      %1193 = vmatprep.mubr.bf16.mxu0 0
      %1194 = vmatmul.mubr.bf16.gmra.mrb[0].mxu0 %v991
      %v1195 = vpop.f32.mrb[0].mxu0
      %v1196 = vadd.f32 0.0, %v1195
      %v1197 = vpop.f32.mrb[0].mxu0
      %v1198 = vpop.f32.mrb[0].mxu0
      %v1199 = vadd.f32 0.0, %v1198
      %v1200 = vpop.f32.mrb[0].mxu0
      %1201 = vmatprep.mubr.bf16.mxu0 0
      %1202 = vmatmul.mubr.bf16.gmra.mrb[0].mxu0 %v999
      %v1203 = vpop.f32.mrb[0].mxu0
      %v1204 = vadd.f32 0.0, %v1203
      %v1205 = vpop.f32.mrb[0].mxu0
      %v1206 = vpop.f32.mrb[0].mxu0
      %v1207 = vadd.f32 0.0, %v1206
      %v1208 = vpop.f32.mrb[0].mxu0
      %1209 = vdwg.mxu0
      %v1210 = vadd.f32 %v895, %v1132
      %v1211 = vadd.f32 %v896, %v1135
      %v1212 = vadd.f32 %v897, %v1140
      %v1213 = vadd.f32 %v898, %v1143
      %v1214 = vadd.f32 %v899, %v1148
      %v1215 = vadd.f32 %v900, %v1151
      %v1216 = vadd.f32 %v901, %v1156
      %v1217 = vadd.f32 %v902, %v1159
      %v1218 = vadd.f32 %v903, %v1164
      %v1219 = vadd.f32 %v904, %v1167
      %v1220 = vadd.f32 %v905, %v1172
      %v1221 = vadd.f32 %v906, %v1175
      %v1222 = vadd.f32 %v907, %v1180
      %v1223 = vadd.f32 %v908, %v1183
      %v1224 = vadd.f32 %v909, %v1188
      %v1225 = vadd.f32 %v910, %v1191
      %v1226 = vadd.f32 %v911, %v1196
      %v1227 = vadd.f32 %v912, %v1199
      %v1228 = vadd.f32 %v913, %v1204
      %v1229 = vadd.f32 %v914, %v1207
      %s1230 = scalar_lea.vmem %s1, 256
      %v1231 = vld [vmem:[%s1230] sm:$0xf]
      %v1232 = vld [vmem:[%s1230 + $0x4] sm:$0xf]
      %v1233 = vld [vmem:[%s1230 + $0x8] sm:$0xf]
      %v1234 = vld [vmem:[%s1230 + $0xc] sm:$0xf]
      %v1235 = vld [vmem:[%s1230 + $0x10] sm:$0xf]
      %v1236 = vld [vmem:[%s1230 + $0x14] sm:$0xf]
      %v1237 = vld [vmem:[%s1230 + $0x18] sm:$0xf]
      %v1238 = vld [vmem:[%s1230 + $0x1c] sm:$0xf]
      %v1239 = vld [vmem:[%s1230 + $0x20] sm:$0xf]
      %v1240 = vld [vmem:[%s1230 + $0x24] sm:$0xf]
      %v1241 = vld [vmem:[%s1230 + $0x28] sm:$0xf]
      %v1242 = vld [vmem:[%s1230 + $0x2c] sm:$0xf]
      %v1243 = vld [vmem:[%s1230 + $0x30] sm:$0xf]
      %v1244 = vld [vmem:[%s1230 + $0x34] sm:$0xf]
      %v1245 = vld [vmem:[%s1230 + $0x38] sm:$0xf]
      %v1246 = vld [vmem:[%s1230 + $0x3c] sm:$0xf]
      %v1263 = vunpack.c.l.b16 %v1231
      %v1264 = vunpack.c.l.b16 %v1232
      %v1265 = vunpack.c.l.b16 %v1233
      %v1266 = vunpack.c.l.b16 %v1234
      %v1267 = vunpack.c.l.b16 %v1235
      %v1268 = vunpack.c.l.b16 %v1236
      %v1269 = vunpack.c.l.b16 %v1237
      %v1270 = vunpack.c.l.b16 %v1238
      %v1271 = vunpack.c.l.b16 %v1239
      %v1272 = vunpack.c.l.b16 %v1240
      %v1273 = vunpack.c.l.b16 %v1241
      %v1274 = vunpack.c.l.b16 %v1242
      %v1275 = vunpack.c.l.b16 %v1243
      %v1276 = vunpack.c.l.b16 %v1244
      %v1277 = vunpack.c.l.b16 %v1245
      %v1278 = vunpack.c.l.b16 %v1246
      %v1279 = vpack.c.b16 %v1264, %v1263
      %v1280 = vpack.c.b16 %v1266, %v1265
      %v1281 = vpack.c.b16 %v1268, %v1267
      %v1282 = vpack.c.b16 %v1270, %v1269
      %v1283 = vpack.c.b16 %v1272, %v1271
      %v1284 = vpack.c.b16 %v1274, %v1273
      %v1285 = vpack.c.b16 %v1276, %v1275
      %v1286 = vpack.c.b16 %v1278, %v1277
      %1295 = vmatprep.subr.bf16.mxu0 0
      %1296 = vmatpush1.bf16.msra.mxu0 %v1279
      %1297 = vmatprep.subr.bf16.mxu0 0
      %1298 = vmatpush1.bf16.msra.mxu0 %v1280
      %1299 = vmatprep.subr.bf16.mxu0 0
      %1300 = vmatpush1.bf16.msra.mxu0 %v1281
      %1301 = vmatprep.subr.bf16.mxu0 0
      %1302 = vmatpush1.bf16.msra.mxu0 %v1282
      %1303 = vmatprep.subr.bf16.mxu0 0
      %1304 = vmatpush1.bf16.msra.mxu0 %v1283
      %1305 = vmatprep.subr.bf16.mxu0 0
      %1306 = vmatpush1.bf16.msra.mxu0 %v1284
      %1307 = vmatprep.subr.bf16.mxu0 0
      %1308 = vmatpush1.bf16.msra.mxu0 %v1285
      %1309 = vmatprep.subr.bf16.mxu0 0
      %1310 = vmatpush1.bf16.msra.mxu0 %v1286
      %1311 = vmatprep.subr.bf16.mxu0 0
      %1312 = vmatpush1.bf16.msra.mxu0 0
      %1313 = vmatprep.subr.bf16.mxu0 0
      %1314 = vmatpush1.bf16.msra.mxu0 0
      %1315 = vmatprep.subr.bf16.mxu0 0
      %1316 = vmatpush1.bf16.msra.mxu0 0
      %1317 = vmatprep.subr.bf16.mxu0 0
      %1318 = vmatpush1.bf16.msra.mxu0 0
      %1319 = vmatprep.subr.bf16.mxu0 0
      %1320 = vmatpush1.bf16.msra.mxu0 0
      %1321 = vmatprep.subr.bf16.mxu0 0
      %1322 = vmatpush1.bf16.msra.mxu0 0
      %1323 = vmatprep.subr.bf16.mxu0 0
      %1324 = vmatpush1.bf16.msra.mxu0 0
      %1325 = vmatprep.subr.bf16.mxu0 0
      %1326 = vmatpush1.bf16.msra.mxu0 0
      %1327 = vmatprep.mubr.bf16.mxu0 0
      %1328 = vmatmul.mubr.bf16.gmra.mrb[0].mxu0 %v935
      %v1329 = vpop.f32.mrb[0].mxu0
      %v1330 = vadd.f32 0.0, %v1329
      %v1331 = vpop.f32.mrb[0].mxu0
      %v1332 = vpop.f32.mrb[0].mxu0
      %v1333 = vadd.f32 0.0, %v1332
      %v1334 = vpop.f32.mrb[0].mxu0
      %1335 = vmatprep.mubr.bf16.mxu0 0
      %1336 = vmatmul.mubr.bf16.gmra.mrb[0].mxu0 %v943
      %v1337 = vpop.f32.mrb[0].mxu0
      %v1338 = vadd.f32 0.0, %v1337
      %v1339 = vpop.f32.mrb[0].mxu0
      %v1340 = vpop.f32.mrb[0].mxu0
      %v1341 = vadd.f32 0.0, %v1340
      %v1342 = vpop.f32.mrb[0].mxu0
      %1343 = vmatprep.mubr.bf16.mxu0 0
      %1344 = vmatmul.mubr.bf16.gmra.mrb[0].mxu0 %v951
      %v1345 = vpop.f32.mrb[0].mxu0
      %v1346 = vadd.f32 0.0, %v1345
      %v1347 = vpop.f32.mrb[0].mxu0
      %v1348 = vpop.f32.mrb[0].mxu0
      %v1349 = vadd.f32 0.0, %v1348
      %v1350 = vpop.f32.mrb[0].mxu0
      %1351 = vmatprep.mubr.bf16.mxu0 0
      %1352 = vmatmul.mubr.bf16.gmra.mrb[0].mxu0 %v959
      %v1353 = vpop.f32.mrb[0].mxu0
      %v1354 = vadd.f32 0.0, %v1353
      %v1355 = vpop.f32.mrb[0].mxu0
      %v1356 = vpop.f32.mrb[0].mxu0
      %v1357 = vadd.f32 0.0, %v1356
      %v1358 = vpop.f32.mrb[0].mxu0
      %1359 = vmatprep.mubr.bf16.mxu0 0
      %1360 = vmatmul.mubr.bf16.gmra.mrb[0].mxu0 %v967
      %v1361 = vpop.f32.mrb[0].mxu0
      %v1362 = vadd.f32 0.0, %v1361
      %v1363 = vpop.f32.mrb[0].mxu0
      %v1364 = vpop.f32.mrb[0].mxu0
      %v1365 = vadd.f32 0.0, %v1364
      %v1366 = vpop.f32.mrb[0].mxu0
      %1367 = vmatprep.mubr.bf16.mxu0 0
      %1368 = vmatmul.mubr.bf16.gmra.mrb[0].mxu0 %v975
      %v1369 = vpop.f32.mrb[0].mxu0
      %v1370 = vadd.f32 0.0, %v1369
      %v1371 = vpop.f32.mrb[0].mxu0
      %v1372 = vpop.f32.mrb[0].mxu0
      %v1373 = vadd.f32 0.0, %v1372
      %v1374 = vpop.f32.mrb[0].mxu0
      %1375 = vmatprep.mubr.bf16.mxu0 0
      %1376 = vmatmul.mubr.bf16.gmra.mrb[0].mxu0 %v983
      %v1377 = vpop.f32.mrb[0].mxu0
      %v1378 = vadd.f32 0.0, %v1377
      %v1379 = vpop.f32.mrb[0].mxu0
      %v1380 = vpop.f32.mrb[0].mxu0
      %v1381 = vadd.f32 0.0, %v1380
      %v1382 = vpop.f32.mrb[0].mxu0
      %1383 = vmatprep.mubr.bf16.mxu0 0
      %1384 = vmatmul.mubr.bf16.gmra.mrb[0].mxu0 %v991
      %v1385 = vpop.f32.mrb[0].mxu0
      %v1386 = vadd.f32 0.0, %v1385
      %v1387 = vpop.f32.mrb[0].mxu0
      %v1388 = vpop.f32.mrb[0].mxu0
      %v1389 = vadd.f32 0.0, %v1388
      %v1390 = vpop.f32.mrb[0].mxu0
      %1391 = vmatprep.mubr.bf16.mxu0 0
      %1392 = vmatmul.mubr.bf16.gmra.mrb[0].mxu0 %v999
      %v1393 = vpop.f32.mrb[0].mxu0
      %v1394 = vadd.f32 0.0, %v1393
      %v1395 = vpop.f32.mrb[0].mxu0
      %v1396 = vpop.f32.mrb[0].mxu0
      %v1397 = vadd.f32 0.0, %v1396
      %v1398 = vpop.f32.mrb[0].mxu0
      %1399 = vmatprep.mubr.bf16.mxu0 0
      %1400 = vmatmul.mubr.bf16.gmra.mrb[0].mxu0 %v1007
      %v1401 = vpop.f32.mrb[0].mxu0
      %v1402 = vadd.f32 0.0, %v1401
      %v1403 = vpop.f32.mrb[0].mxu0
      %v1404 = vpop.f32.mrb[0].mxu0
      %v1405 = vadd.f32 0.0, %v1404
      %v1406 = vpop.f32.mrb[0].mxu0
      %1407 = vdwg.mxu0
      %v1408 = vadd.f32 %v1210, %v1330
      %v1409 = vadd.f32 %v1211, %v1333
      %v1410 = vadd.f32 %v1212, %v1338
      %v1411 = vadd.f32 %v1213, %v1341
      %v1412 = vadd.f32 %v1214, %v1346
      %v1413 = vadd.f32 %v1215, %v1349
      %v1414 = vadd.f32 %v1216, %v1354
      %v1415 = vadd.f32 %v1217, %v1357
      %v1416 = vadd.f32 %v1218, %v1362
      %v1417 = vadd.f32 %v1219, %v1365
      %v1418 = vadd.f32 %v1220, %v1370
      %v1419 = vadd.f32 %v1221, %v1373
      %v1420 = vadd.f32 %v1222, %v1378
      %v1421 = vadd.f32 %v1223, %v1381
      %v1422 = vadd.f32 %v1224, %v1386
      %v1423 = vadd.f32 %v1225, %v1389
      %v1424 = vadd.f32 %v1226, %v1394
      %v1425 = vadd.f32 %v1227, %v1397
      %v1426 = vadd.f32 %v1228, %v1402
      %v1427 = vadd.f32 %v1229, %v1405
      %s1428 = scalar_lea.vmem %s1, 448
      %v1429 = vld [vmem:[%s1428] sm:$0xf]
      %v1430 = vld [vmem:[%s1428 + $0x4] sm:$0xf]
      %v1431 = vld [vmem:[%s1428 + $0x8] sm:$0xf]
      %v1432 = vld [vmem:[%s1428 + $0xc] sm:$0xf]
      %v1433 = vld [vmem:[%s1428 + $0x10] sm:$0xf]
      %v1434 = vld [vmem:[%s1428 + $0x14] sm:$0xf]
      %v1435 = vld [vmem:[%s1428 + $0x18] sm:$0xf]
      %v1436 = vld [vmem:[%s1428 + $0x1c] sm:$0xf]
      %v1437 = vld [vmem:[%s1428 + $0x20] sm:$0xf]
      %v1438 = vld [vmem:[%s1428 + $0x24] sm:$0xf]
      %v1439 = vld [vmem:[%s1428 + $0x28] sm:$0xf]
      %v1440 = vld [vmem:[%s1428 + $0x2c] sm:$0xf]
      %v1441 = vld [vmem:[%s1428 + $0x30] sm:$0xf]
      %v1442 = vld [vmem:[%s1428 + $0x34] sm:$0xf]
      %v1443 = vld [vmem:[%s1428 + $0x38] sm:$0xf]
      %v1444 = vld [vmem:[%s1428 + $0x3c] sm:$0xf]
      %v1461 = vunpack.c.l.b16 %v1429
      %v1462 = vunpack.c.l.b16 %v1430
      %v1463 = vunpack.c.l.b16 %v1431
      %v1464 = vunpack.c.l.b16 %v1432
      %v1465 = vunpack.c.l.b16 %v1433
      %v1466 = vunpack.c.l.b16 %v1434
      %v1467 = vunpack.c.l.b16 %v1435
      %v1468 = vunpack.c.l.b16 %v1436
      %v1469 = vunpack.c.l.b16 %v1437
      %v1470 = vunpack.c.l.b16 %v1438
      %v1471 = vunpack.c.l.b16 %v1439
      %v1472 = vunpack.c.l.b16 %v1440
      %v1473 = vunpack.c.l.b16 %v1441
      %v1474 = vunpack.c.l.b16 %v1442
      %v1475 = vunpack.c.l.b16 %v1443
      %v1476 = vunpack.c.l.b16 %v1444
      %v1477 = vpack.c.b16 %v1462, %v1461
      %v1478 = vpack.c.b16 %v1464, %v1463
      %v1479 = vpack.c.b16 %v1466, %v1465
      %v1480 = vpack.c.b16 %v1468, %v1467
      %v1481 = vpack.c.b16 %v1470, %v1469
      %v1482 = vpack.c.b16 %v1472, %v1471
      %v1483 = vpack.c.b16 %v1474, %v1473
      %v1484 = vpack.c.b16 %v1476, %v1475
      %1493 = vmatprep.subr.bf16.mxu0 0
      %1494 = vmatpush1.bf16.msra.mxu0 %v1477
      %1495 = vmatprep.subr.bf16.mxu0 0
      %1496 = vmatpush1.bf16.msra.mxu0 %v1478
      %1497 = vmatprep.subr.bf16.mxu0 0
      %1498 = vmatpush1.bf16.msra.mxu0 %v1479
      %1499 = vmatprep.subr.bf16.mxu0 0
      %1500 = vmatpush1.bf16.msra.mxu0 %v1480
      %1501 = vmatprep.subr.bf16.mxu0 0
      %1502 = vmatpush1.bf16.msra.mxu0 %v1481
      %1503 = vmatprep.subr.bf16.mxu0 0
      %1504 = vmatpush1.bf16.msra.mxu0 %v1482
      %1505 = vmatprep.subr.bf16.mxu0 0
      %1506 = vmatpush1.bf16.msra.mxu0 %v1483
      %1507 = vmatprep.subr.bf16.mxu0 0
      %1508 = vmatpush1.bf16.msra.mxu0 %v1484
      %1509 = vmatprep.subr.bf16.mxu0 0
      %1510 = vmatpush1.bf16.msra.mxu0 0
      %1511 = vmatprep.subr.bf16.mxu0 0
      %1512 = vmatpush1.bf16.msra.mxu0 0
      %1513 = vmatprep.subr.bf16.mxu0 0
      %1514 = vmatpush1.bf16.msra.mxu0 0
      %1515 = vmatprep.subr.bf16.mxu0 0
      %1516 = vmatpush1.bf16.msra.mxu0 0
      %1517 = vmatprep.subr.bf16.mxu0 0
      %1518 = vmatpush1.bf16.msra.mxu0 0
      %1519 = vmatprep.subr.bf16.mxu0 0
      %1520 = vmatpush1.bf16.msra.mxu0 0
      %1521 = vmatprep.subr.bf16.mxu0 0
      %1522 = vmatpush1.bf16.msra.mxu0 0
      %1523 = vmatprep.subr.bf16.mxu0 0
      %1524 = vmatpush1.bf16.msra.mxu0 0
      %1525 = vmatprep.mubr.bf16.mxu0 0
      %1526 = vmatmul.mubr.bf16.gmra.mrb[0].mxu0 %v943
      %v1527 = vpop.f32.mrb[0].mxu0
      %v1528 = vadd.f32 0.0, %v1527
      %v1529 = vpop.f32.mrb[0].mxu0
      %v1530 = vpop.f32.mrb[0].mxu0
      %v1531 = vadd.f32 0.0, %v1530
      %v1532 = vpop.f32.mrb[0].mxu0
      %1533 = vmatprep.mubr.bf16.mxu0 0
      %1534 = vmatmul.mubr.bf16.gmra.mrb[0].mxu0 %v951
      %v1535 = vpop.f32.mrb[0].mxu0
      %v1536 = vadd.f32 0.0, %v1535
      %v1537 = vpop.f32.mrb[0].mxu0
      %v1538 = vpop.f32.mrb[0].mxu0
      %v1539 = vadd.f32 0.0, %v1538
      %v1540 = vpop.f32.mrb[0].mxu0
      %1541 = vmatprep.mubr.bf16.mxu0 0
      %1542 = vmatmul.mubr.bf16.gmra.mrb[0].mxu0 %v959
      %v1543 = vpop.f32.mrb[0].mxu0
      %v1544 = vadd.f32 0.0, %v1543
      %v1545 = vpop.f32.mrb[0].mxu0
      %v1546 = vpop.f32.mrb[0].mxu0
      %v1547 = vadd.f32 0.0, %v1546
      %v1548 = vpop.f32.mrb[0].mxu0
      %1549 = vmatprep.mubr.bf16.mxu0 0
      %1550 = vmatmul.mubr.bf16.gmra.mrb[0].mxu0 %v967
      %v1551 = vpop.f32.mrb[0].mxu0
      %v1552 = vadd.f32 0.0, %v1551
      %v1553 = vpop.f32.mrb[0].mxu0
      %v1554 = vpop.f32.mrb[0].mxu0
      %v1555 = vadd.f32 0.0, %v1554
      %v1556 = vpop.f32.mrb[0].mxu0
      %1557 = vmatprep.mubr.bf16.mxu0 0
      %1558 = vmatmul.mubr.bf16.gmra.mrb[0].mxu0 %v975
      %v1559 = vpop.f32.mrb[0].mxu0
      %v1560 = vadd.f32 0.0, %v1559
      %v1561 = vpop.f32.mrb[0].mxu0
      %v1562 = vpop.f32.mrb[0].mxu0
      %v1563 = vadd.f32 0.0, %v1562
      %v1564 = vpop.f32.mrb[0].mxu0
      %1565 = vmatprep.mubr.bf16.mxu0 0
      %1566 = vmatmul.mubr.bf16.gmra.mrb[0].mxu0 %v983
      %v1567 = vpop.f32.mrb[0].mxu0
      %v1568 = vadd.f32 0.0, %v1567
      %v1569 = vpop.f32.mrb[0].mxu0
      %v1570 = vpop.f32.mrb[0].mxu0
      %v1571 = vadd.f32 0.0, %v1570
      %v1572 = vpop.f32.mrb[0].mxu0
      %1573 = vmatprep.mubr.bf16.mxu0 0
      %1574 = vmatmul.mubr.bf16.gmra.mrb[0].mxu0 %v991
      %v1575 = vpop.f32.mrb[0].mxu0
      %v1576 = vadd.f32 0.0, %v1575
      %v1577 = vpop.f32.mrb[0].mxu0
      %v1578 = vpop.f32.mrb[0].mxu0
      %v1579 = vadd.f32 0.0, %v1578
      %v1580 = vpop.f32.mrb[0].mxu0
      %1581 = vmatprep.mubr.bf16.mxu0 0
      %1582 = vmatmul.mubr.bf16.gmra.mrb[0].mxu0 %v999
      %v1583 = vpop.f32.mrb[0].mxu0
      %v1584 = vadd.f32 0.0, %v1583
      %v1585 = vpop.f32.mrb[0].mxu0
      %v1586 = vpop.f32.mrb[0].mxu0
      %v1587 = vadd.f32 0.0, %v1586
      %v1588 = vpop.f32.mrb[0].mxu0
      %1589 = vmatprep.mubr.bf16.mxu0 0
      %1590 = vmatmul.mubr.bf16.gmra.mrb[0].mxu0 %v1007
      %v1591 = vpop.f32.mrb[0].mxu0
      %v1592 = vadd.f32 0.0, %v1591
      %v1593 = vpop.f32.mrb[0].mxu0
      %v1594 = vpop.f32.mrb[0].mxu0
      %v1595 = vadd.f32 0.0, %v1594
      %v1596 = vpop.f32.mrb[0].mxu0
      %1597 = vmatprep.mubr.bf16.mxu0 0
      %1598 = vmatmul.mubr.bf16.gmra.mrb[0].mxu0 %v1031
      %v1599 = vpop.f32.mrb[0].mxu0
      %v1600 = vadd.f32 0.0, %v1599
      %v1601 = vpop.f32.mrb[0].mxu0
      %v1602 = vpop.f32.mrb[0].mxu0
      %v1603 = vadd.f32 0.0, %v1602
      %v1604 = vpop.f32.mrb[0].mxu0
      %1605 = vdwg.mxu0
      %v1606 = vadd.f32 %v1408, %v1528
      %v1607 = vadd.f32 %v1409, %v1531
      %v1608 = vadd.f32 %v1410, %v1536
      %v1609 = vadd.f32 %v1411, %v1539
      %v1610 = vadd.f32 %v1412, %v1544
      %v1611 = vadd.f32 %v1413, %v1547
      %v1612 = vadd.f32 %v1414, %v1552
      %v1613 = vadd.f32 %v1415, %v1555
      %v1614 = vadd.f32 %v1416, %v1560
      %v1615 = vadd.f32 %v1417, %v1563
      %v1616 = vadd.f32 %v1418, %v1568
      %v1617 = vadd.f32 %v1419, %v1571
      %v1618 = vadd.f32 %v1420, %v1576
      %v1619 = vadd.f32 %v1421, %v1579
      %v1620 = vadd.f32 %v1422, %v1584
      %v1621 = vadd.f32 %v1423, %v1587
      %v1622 = vadd.f32 %v1424, %v1592
      %v1623 = vadd.f32 %v1425, %v1595
      %v1624 = vadd.f32 %v1426, %v1600
      %v1625 = vadd.f32 %v1427, %v1603
      %vm1626 = vcmask 1046528
      %v1627 = vrot.slane %v548, 1
      %v1628 = vrot.slane %v363, 1
      %v1629 = vsel %vm1626, %v1627, %v1628
      %v1630 = vrot.slane %v364, 1
      %v1631 = vsel %vm1626, %v1628, %v1630
      %v1632 = vrot.slane %v365, 1
      %v1633 = vsel %vm1626, %v1630, %v1632
      %v1634 = vrot.slane %v366, 1
      %v1635 = vsel %vm1626, %v1632, %v1634
      %v1636 = vrot.slane %v367, 1
      %v1637 = vsel %vm1626, %v1634, %v1636
      %v1638 = vrot.slane %v368, 1
      %v1639 = vsel %vm1626, %v1636, %v1638
      %v1640 = vrot.slane %v369, 1
      %v1641 = vsel %vm1626, %v1638, %v1640
      %v1642 = vrot.slane %v370, 1
      %v1643 = vsel %vm1626, %v1640, %v1642
      %v1644 = vrot.slane %v371, 1
      %v1645 = vsel %vm1626, %v1642, %v1644
      %v1646 = vrot.slane %v372, 1
      %v1647 = vsel %vm1626, %v1644, %v1646
      %v1648 = vrot.slane %v732, 1
      %v1649 = vsel %vm1626, %v1646, %v1648
      %v1661 = vrot.slane %v1023, 1
      %vm1662 = vcmask 1046528
      %v1665 = vsel %vm1662, %v1648, %v1661
      %s1667 = scalar_lea.vmem %s1, 128
      %v1668 = vld [vmem:[%s1667] sm:$0xf]
      %v1669 = vld [vmem:[%s1667 + $0x4] sm:$0xf]
      %v1670 = vld [vmem:[%s1667 + $0x8] sm:$0xf]
      %v1671 = vld [vmem:[%s1667 + $0xc] sm:$0xf]
      %v1672 = vld [vmem:[%s1667 + $0x10] sm:$0xf]
      %v1673 = vld [vmem:[%s1667 + $0x14] sm:$0xf]
      %v1674 = vld [vmem:[%s1667 + $0x18] sm:$0xf]
      %v1675 = vld [vmem:[%s1667 + $0x1c] sm:$0xf]
      %v1676 = vld [vmem:[%s1667 + $0x20] sm:$0xf]
      %v1677 = vld [vmem:[%s1667 + $0x24] sm:$0xf]
      %v1678 = vld [vmem:[%s1667 + $0x28] sm:$0xf]
      %v1679 = vld [vmem:[%s1667 + $0x2c] sm:$0xf]
      %v1680 = vld [vmem:[%s1667 + $0x30] sm:$0xf]
      %v1681 = vld [vmem:[%s1667 + $0x34] sm:$0xf]
      %v1682 = vld [vmem:[%s1667 + $0x38] sm:$0xf]
      %v1683 = vld [vmem:[%s1667 + $0x3c] sm:$0xf]
      %v1700 = vunpack.c.l.b16 %v1668
      %v1701 = vunpack.c.l.b16 %v1669
      %v1702 = vunpack.c.l.b16 %v1670
      %v1703 = vunpack.c.l.b16 %v1671
      %v1704 = vunpack.c.l.b16 %v1672
      %v1705 = vunpack.c.l.b16 %v1673
      %v1706 = vunpack.c.l.b16 %v1674
      %v1707 = vunpack.c.l.b16 %v1675
      %v1708 = vunpack.c.l.b16 %v1676
      %v1709 = vunpack.c.l.b16 %v1677
      %v1710 = vunpack.c.l.b16 %v1678
      %v1711 = vunpack.c.l.b16 %v1679
      %v1712 = vunpack.c.l.b16 %v1680
      %v1713 = vunpack.c.l.b16 %v1681
      %v1714 = vunpack.c.l.b16 %v1682
      %v1715 = vunpack.c.l.b16 %v1683
      %v1716 = vpack.c.b16 %v1701, %v1700
      %v1717 = vpack.c.b16 %v1703, %v1702
      %v1718 = vpack.c.b16 %v1705, %v1704
      %v1719 = vpack.c.b16 %v1707, %v1706
      %v1720 = vpack.c.b16 %v1709, %v1708
      %v1721 = vpack.c.b16 %v1711, %v1710
      %v1722 = vpack.c.b16 %v1713, %v1712
      %v1723 = vpack.c.b16 %v1715, %v1714
      %1732 = vmatprep.subr.bf16.mxu0 0
      %1733 = vmatpush1.bf16.msra.mxu0 %v1716
      %1734 = vmatprep.subr.bf16.mxu0 0
      %1735 = vmatpush1.bf16.msra.mxu0 %v1717
      %1736 = vmatprep.subr.bf16.mxu0 0
      %1737 = vmatpush1.bf16.msra.mxu0 %v1718
      %1738 = vmatprep.subr.bf16.mxu0 0
      %1739 = vmatpush1.bf16.msra.mxu0 %v1719
      %1740 = vmatprep.subr.bf16.mxu0 0
      %1741 = vmatpush1.bf16.msra.mxu0 %v1720
      %1742 = vmatprep.subr.bf16.mxu0 0
      %1743 = vmatpush1.bf16.msra.mxu0 %v1721
      %1744 = vmatprep.subr.bf16.mxu0 0
      %1745 = vmatpush1.bf16.msra.mxu0 %v1722
      %1746 = vmatprep.subr.bf16.mxu0 0
      %1747 = vmatpush1.bf16.msra.mxu0 %v1723
      %1748 = vmatprep.subr.bf16.mxu0 0
      %1749 = vmatpush1.bf16.msra.mxu0 0
      %1750 = vmatprep.subr.bf16.mxu0 0
      %1751 = vmatpush1.bf16.msra.mxu0 0
      %1752 = vmatprep.subr.bf16.mxu0 0
      %1753 = vmatpush1.bf16.msra.mxu0 0
      %1754 = vmatprep.subr.bf16.mxu0 0
      %1755 = vmatpush1.bf16.msra.mxu0 0
      %1756 = vmatprep.subr.bf16.mxu0 0
      %1757 = vmatpush1.bf16.msra.mxu0 0
      %1758 = vmatprep.subr.bf16.mxu0 0
      %1759 = vmatpush1.bf16.msra.mxu0 0
      %1760 = vmatprep.subr.bf16.mxu0 0
      %1761 = vmatpush1.bf16.msra.mxu0 0
      %1762 = vmatprep.subr.bf16.mxu0 0
      %1763 = vmatpush1.bf16.msra.mxu0 0
      %1764 = vmatprep.mubr.bf16.mxu0 0
      %1765 = vmatmul.mubr.bf16.gmra.mrb[0].mxu0 %v1629
      %v1766 = vpop.f32.mrb[0].mxu0
      %v1767 = vadd.f32 0.0, %v1766
      %v1768 = vpop.f32.mrb[0].mxu0
      %v1769 = vpop.f32.mrb[0].mxu0
      %v1770 = vadd.f32 0.0, %v1769
      %v1771 = vpop.f32.mrb[0].mxu0
      %1772 = vmatprep.mubr.bf16.mxu0 0
      %1773 = vmatmul.mubr.bf16.gmra.mrb[0].mxu0 %v1631
      %v1774 = vpop.f32.mrb[0].mxu0
      %v1775 = vadd.f32 0.0, %v1774
      %v1776 = vpop.f32.mrb[0].mxu0
      %v1777 = vpop.f32.mrb[0].mxu0
      %v1778 = vadd.f32 0.0, %v1777
      %v1779 = vpop.f32.mrb[0].mxu0
      %1780 = vmatprep.mubr.bf16.mxu0 0
      %1781 = vmatmul.mubr.bf16.gmra.mrb[0].mxu0 %v1633
      %v1782 = vpop.f32.mrb[0].mxu0
      %v1783 = vadd.f32 0.0, %v1782
      %v1784 = vpop.f32.mrb[0].mxu0
      %v1785 = vpop.f32.mrb[0].mxu0
      %v1786 = vadd.f32 0.0, %v1785
      %v1787 = vpop.f32.mrb[0].mxu0
      %1788 = vmatprep.mubr.bf16.mxu0 0
      %1789 = vmatmul.mubr.bf16.gmra.mrb[0].mxu0 %v1635
      %v1790 = vpop.f32.mrb[0].mxu0
      %v1791 = vadd.f32 0.0, %v1790
      %v1792 = vpop.f32.mrb[0].mxu0
      %v1793 = vpop.f32.mrb[0].mxu0
      %v1794 = vadd.f32 0.0, %v1793
      %v1795 = vpop.f32.mrb[0].mxu0
      %1796 = vmatprep.mubr.bf16.mxu0 0
      %1797 = vmatmul.mubr.bf16.gmra.mrb[0].mxu0 %v1637
      %v1798 = vpop.f32.mrb[0].mxu0
      %v1799 = vadd.f32 0.0, %v1798
      %v1800 = vpop.f32.mrb[0].mxu0
      %v1801 = vpop.f32.mrb[0].mxu0
      %v1802 = vadd.f32 0.0, %v1801
      %v1803 = vpop.f32.mrb[0].mxu0
      %1804 = vmatprep.mubr.bf16.mxu0 0
      %1805 = vmatmul.mubr.bf16.gmra.mrb[0].mxu0 %v1639
      %v1806 = vpop.f32.mrb[0].mxu0
      %v1807 = vadd.f32 0.0, %v1806
      %v1808 = vpop.f32.mrb[0].mxu0
      %v1809 = vpop.f32.mrb[0].mxu0
      %v1810 = vadd.f32 0.0, %v1809
      %v1811 = vpop.f32.mrb[0].mxu0
      %1812 = vmatprep.mubr.bf16.mxu0 0
      %1813 = vmatmul.mubr.bf16.gmra.mrb[0].mxu0 %v1641
      %v1814 = vpop.f32.mrb[0].mxu0
      %v1815 = vadd.f32 0.0, %v1814
      %v1816 = vpop.f32.mrb[0].mxu0
      %v1817 = vpop.f32.mrb[0].mxu0
      %v1818 = vadd.f32 0.0, %v1817
      %v1819 = vpop.f32.mrb[0].mxu0
      %1820 = vmatprep.mubr.bf16.mxu0 0
      %1821 = vmatmul.mubr.bf16.gmra.mrb[0].mxu0 %v1643
      %v1822 = vpop.f32.mrb[0].mxu0
      %v1823 = vadd.f32 0.0, %v1822
      %v1824 = vpop.f32.mrb[0].mxu0
      %v1825 = vpop.f32.mrb[0].mxu0
      %v1826 = vadd.f32 0.0, %v1825
      %v1827 = vpop.f32.mrb[0].mxu0
      %1828 = vmatprep.mubr.bf16.mxu0 0
      %1829 = vmatmul.mubr.bf16.gmra.mrb[0].mxu0 %v1645
      %v1830 = vpop.f32.mrb[0].mxu0
      %v1831 = vadd.f32 0.0, %v1830
      %v1832 = vpop.f32.mrb[0].mxu0
      %v1833 = vpop.f32.mrb[0].mxu0
      %v1834 = vadd.f32 0.0, %v1833
      %v1835 = vpop.f32.mrb[0].mxu0
      %1836 = vmatprep.mubr.bf16.mxu0 0
      %1837 = vmatmul.mubr.bf16.gmra.mrb[0].mxu0 %v1647
      %v1838 = vpop.f32.mrb[0].mxu0
      %v1839 = vadd.f32 0.0, %v1838
      %v1840 = vpop.f32.mrb[0].mxu0
      %v1841 = vpop.f32.mrb[0].mxu0
      %v1842 = vadd.f32 0.0, %v1841
      %v1843 = vpop.f32.mrb[0].mxu0
      %1844 = vdwg.mxu0
      %v1845 = vadd.f32 %v1606, %v1767
      %v1846 = vadd.f32 %v1607, %v1770
      %v1847 = vadd.f32 %v1608, %v1775
      %v1848 = vadd.f32 %v1609, %v1778
      %v1849 = vadd.f32 %v1610, %v1783
      %v1850 = vadd.f32 %v1611, %v1786
      %v1851 = vadd.f32 %v1612, %v1791
      %v1852 = vadd.f32 %v1613, %v1794
      %v1853 = vadd.f32 %v1614, %v1799
      %v1854 = vadd.f32 %v1615, %v1802
      %v1855 = vadd.f32 %v1616, %v1807
      %v1856 = vadd.f32 %v1617, %v1810
      %v1857 = vadd.f32 %v1618, %v1815
      %v1858 = vadd.f32 %v1619, %v1818
      %v1859 = vadd.f32 %v1620, %v1823
      %v1860 = vadd.f32 %v1621, %v1826
      %v1861 = vadd.f32 %v1622, %v1831
      %v1862 = vadd.f32 %v1623, %v1834
      %v1863 = vadd.f32 %v1624, %v1839
      %v1864 = vadd.f32 %v1625, %v1842
      %s1865 = scalar_lea.vmem %s1, 320
      %v1866 = vld [vmem:[%s1865] sm:$0xf]
      %v1867 = vld [vmem:[%s1865 + $0x4] sm:$0xf]
      %v1868 = vld [vmem:[%s1865 + $0x8] sm:$0xf]
      %v1869 = vld [vmem:[%s1865 + $0xc] sm:$0xf]
      %v1870 = vld [vmem:[%s1865 + $0x10] sm:$0xf]
      %v1871 = vld [vmem:[%s1865 + $0x14] sm:$0xf]
      %v1872 = vld [vmem:[%s1865 + $0x18] sm:$0xf]
      %v1873 = vld [vmem:[%s1865 + $0x1c] sm:$0xf]
      %v1874 = vld [vmem:[%s1865 + $0x20] sm:$0xf]
      %v1875 = vld [vmem:[%s1865 + $0x24] sm:$0xf]
      %v1876 = vld [vmem:[%s1865 + $0x28] sm:$0xf]
      %v1877 = vld [vmem:[%s1865 + $0x2c] sm:$0xf]
      %v1878 = vld [vmem:[%s1865 + $0x30] sm:$0xf]
      %v1879 = vld [vmem:[%s1865 + $0x34] sm:$0xf]
      %v1880 = vld [vmem:[%s1865 + $0x38] sm:$0xf]
      %v1881 = vld [vmem:[%s1865 + $0x3c] sm:$0xf]
      %v1898 = vunpack.c.l.b16 %v1866
      %v1899 = vunpack.c.l.b16 %v1867
      %v1900 = vunpack.c.l.b16 %v1868
      %v1901 = vunpack.c.l.b16 %v1869
      %v1902 = vunpack.c.l.b16 %v1870
      %v1903 = vunpack.c.l.b16 %v1871
      %v1904 = vunpack.c.l.b16 %v1872
      %v1905 = vunpack.c.l.b16 %v1873
      %v1906 = vunpack.c.l.b16 %v1874
      %v1907 = vunpack.c.l.b16 %v1875
      %v1908 = vunpack.c.l.b16 %v1876
      %v1909 = vunpack.c.l.b16 %v1877
      %v1910 = vunpack.c.l.b16 %v1878
      %v1911 = vunpack.c.l.b16 %v1879
      %v1912 = vunpack.c.l.b16 %v1880
      %v1913 = vunpack.c.l.b16 %v1881
      %v1914 = vpack.c.b16 %v1899, %v1898
      %v1915 = vpack.c.b16 %v1901, %v1900
      %v1916 = vpack.c.b16 %v1903, %v1902
      %v1917 = vpack.c.b16 %v1905, %v1904
      %v1918 = vpack.c.b16 %v1907, %v1906
      %v1919 = vpack.c.b16 %v1909, %v1908
      %v1920 = vpack.c.b16 %v1911, %v1910
      %v1921 = vpack.c.b16 %v1913, %v1912
      %1930 = vmatprep.subr.bf16.mxu0 0
      %1931 = vmatpush1.bf16.msra.mxu0 %v1914
      %1932 = vmatprep.subr.bf16.mxu0 0
      %1933 = vmatpush1.bf16.msra.mxu0 %v1915
      %1934 = vmatprep.subr.bf16.mxu0 0
      %1935 = vmatpush1.bf16.msra.mxu0 %v1916
      %1936 = vmatprep.subr.bf16.mxu0 0
      %1937 = vmatpush1.bf16.msra.mxu0 %v1917
      %1938 = vmatprep.subr.bf16.mxu0 0
      %1939 = vmatpush1.bf16.msra.mxu0 %v1918
      %1940 = vmatprep.subr.bf16.mxu0 0
      %1941 = vmatpush1.bf16.msra.mxu0 %v1919
      %1942 = vmatprep.subr.bf16.mxu0 0
      %1943 = vmatpush1.bf16.msra.mxu0 %v1920
      %1944 = vmatprep.subr.bf16.mxu0 0
      %1945 = vmatpush1.bf16.msra.mxu0 %v1921
      %1946 = vmatprep.subr.bf16.mxu0 0
      %1947 = vmatpush1.bf16.msra.mxu0 0
      %1948 = vmatprep.subr.bf16.mxu0 0
      %1949 = vmatpush1.bf16.msra.mxu0 0
      %1950 = vmatprep.subr.bf16.mxu0 0
      %1951 = vmatpush1.bf16.msra.mxu0 0
      %1952 = vmatprep.subr.bf16.mxu0 0
      %1953 = vmatpush1.bf16.msra.mxu0 0
      %1954 = vmatprep.subr.bf16.mxu0 0
      %1955 = vmatpush1.bf16.msra.mxu0 0
      %1956 = vmatprep.subr.bf16.mxu0 0
      %1957 = vmatpush1.bf16.msra.mxu0 0
      %1958 = vmatprep.subr.bf16.mxu0 0
      %1959 = vmatpush1.bf16.msra.mxu0 0
      %1960 = vmatprep.subr.bf16.mxu0 0
      %1961 = vmatpush1.bf16.msra.mxu0 0
      %1962 = vmatprep.mubr.bf16.mxu0 0
      %1963 = vmatmul.mubr.bf16.gmra.mrb[0].mxu0 %v1631
      %v1964 = vpop.f32.mrb[0].mxu0
      %v1965 = vadd.f32 0.0, %v1964
      %v1966 = vpop.f32.mrb[0].mxu0
      %v1967 = vpop.f32.mrb[0].mxu0
      %v1968 = vadd.f32 0.0, %v1967
      %v1969 = vpop.f32.mrb[0].mxu0
      %1970 = vmatprep.mubr.bf16.mxu0 0
      %1971 = vmatmul.mubr.bf16.gmra.mrb[0].mxu0 %v1633
      %v1972 = vpop.f32.mrb[0].mxu0
      %v1973 = vadd.f32 0.0, %v1972
      %v1974 = vpop.f32.mrb[0].mxu0
      %v1975 = vpop.f32.mrb[0].mxu0
      %v1976 = vadd.f32 0.0, %v1975
      %v1977 = vpop.f32.mrb[0].mxu0
      %1978 = vmatprep.mubr.bf16.mxu0 0
      %1979 = vmatmul.mubr.bf16.gmra.mrb[0].mxu0 %v1635
      %v1980 = vpop.f32.mrb[0].mxu0
      %v1981 = vadd.f32 0.0, %v1980
      %v1982 = vpop.f32.mrb[0].mxu0
      %v1983 = vpop.f32.mrb[0].mxu0
      %v1984 = vadd.f32 0.0, %v1983
      %v1985 = vpop.f32.mrb[0].mxu0
      %1986 = vmatprep.mubr.bf16.mxu0 0
      %1987 = vmatmul.mubr.bf16.gmra.mrb[0].mxu0 %v1637
      %v1988 = vpop.f32.mrb[0].mxu0
      %v1989 = vadd.f32 0.0, %v1988
      %v1990 = vpop.f32.mrb[0].mxu0
      %v1991 = vpop.f32.mrb[0].mxu0
      %v1992 = vadd.f32 0.0, %v1991
      %v1993 = vpop.f32.mrb[0].mxu0
      %1994 = vmatprep.mubr.bf16.mxu0 0
      %1995 = vmatmul.mubr.bf16.gmra.mrb[0].mxu0 %v1639
      %v1996 = vpop.f32.mrb[0].mxu0
      %v1997 = vadd.f32 0.0, %v1996
      %v1998 = vpop.f32.mrb[0].mxu0
      %v1999 = vpop.f32.mrb[0].mxu0
      %v2000 = vadd.f32 0.0, %v1999
      %v2001 = vpop.f32.mrb[0].mxu0
      %2002 = vmatprep.mubr.bf16.mxu0 0
      %2003 = vmatmul.mubr.bf16.gmra.mrb[0].mxu0 %v1641
      %v2004 = vpop.f32.mrb[0].mxu0
      %v2005 = vadd.f32 0.0, %v2004
      %v2006 = vpop.f32.mrb[0].mxu0
      %v2007 = vpop.f32.mrb[0].mxu0
      %v2008 = vadd.f32 0.0, %v2007
      %v2009 = vpop.f32.mrb[0].mxu0
      %2010 = vmatprep.mubr.bf16.mxu0 0
      %2011 = vmatmul.mubr.bf16.gmra.mrb[0].mxu0 %v1643
      %v2012 = vpop.f32.mrb[0].mxu0
      %v2013 = vadd.f32 0.0, %v2012
      %v2014 = vpop.f32.mrb[0].mxu0
      %v2015 = vpop.f32.mrb[0].mxu0
      %v2016 = vadd.f32 0.0, %v2015
      %v2017 = vpop.f32.mrb[0].mxu0
      %2018 = vmatprep.mubr.bf16.mxu0 0
      %2019 = vmatmul.mubr.bf16.gmra.mrb[0].mxu0 %v1645
      %v2020 = vpop.f32.mrb[0].mxu0
      %v2021 = vadd.f32 0.0, %v2020
      %v2022 = vpop.f32.mrb[0].mxu0
      %v2023 = vpop.f32.mrb[0].mxu0
      %v2024 = vadd.f32 0.0, %v2023
      %v2025 = vpop.f32.mrb[0].mxu0
      %2026 = vmatprep.mubr.bf16.mxu0 0
      %2027 = vmatmul.mubr.bf16.gmra.mrb[0].mxu0 %v1647
      %v2028 = vpop.f32.mrb[0].mxu0
      %v2029 = vadd.f32 0.0, %v2028
      %v2030 = vpop.f32.mrb[0].mxu0
      %v2031 = vpop.f32.mrb[0].mxu0
      %v2032 = vadd.f32 0.0, %v2031
      %v2033 = vpop.f32.mrb[0].mxu0
      %2034 = vmatprep.mubr.bf16.mxu0 0
      %2035 = vmatmul.mubr.bf16.gmra.mrb[0].mxu0 %v1649
      %v2036 = vpop.f32.mrb[0].mxu0
      %v2037 = vadd.f32 0.0, %v2036
      %v2038 = vpop.f32.mrb[0].mxu0
      %v2039 = vpop.f32.mrb[0].mxu0
      %v2040 = vadd.f32 0.0, %v2039
      %v2041 = vpop.f32.mrb[0].mxu0
      %2042 = vdwg.mxu0
      %v2043 = vadd.f32 %v1845, %v1965
      %v2044 = vadd.f32 %v1846, %v1968
      %v2045 = vadd.f32 %v1847, %v1973
      %v2046 = vadd.f32 %v1848, %v1976
      %v2047 = vadd.f32 %v1849, %v1981
      %v2048 = vadd.f32 %v1850, %v1984
      %v2049 = vadd.f32 %v1851, %v1989
      %v2050 = vadd.f32 %v1852, %v1992
      %v2051 = vadd.f32 %v1853, %v1997
      %v2052 = vadd.f32 %v1854, %v2000
      %v2053 = vadd.f32 %v1855, %v2005
      %v2054 = vadd.f32 %v1856, %v2008
      %v2055 = vadd.f32 %v1857, %v2013
      %v2056 = vadd.f32 %v1858, %v2016
      %v2057 = vadd.f32 %v1859, %v2021
      %v2058 = vadd.f32 %v1860, %v2024
      %v2059 = vadd.f32 %v1861, %v2029
      %v2060 = vadd.f32 %v1862, %v2032
      %v2061 = vadd.f32 %v1863, %v2037
      %v2062 = vadd.f32 %v1864, %v2040
      %s2063 = scalar_lea.vmem %s1, 512
      %v2064 = vld [vmem:[%s2063] sm:$0xf]
      %v2065 = vld [vmem:[%s2063 + $0x4] sm:$0xf]
      %v2066 = vld [vmem:[%s2063 + $0x8] sm:$0xf]
      %v2067 = vld [vmem:[%s2063 + $0xc] sm:$0xf]
      %v2068 = vld [vmem:[%s2063 + $0x10] sm:$0xf]
      %v2069 = vld [vmem:[%s2063 + $0x14] sm:$0xf]
      %v2070 = vld [vmem:[%s2063 + $0x18] sm:$0xf]
      %v2071 = vld [vmem:[%s2063 + $0x1c] sm:$0xf]
      %v2072 = vld [vmem:[%s2063 + $0x20] sm:$0xf]
      %v2073 = vld [vmem:[%s2063 + $0x24] sm:$0xf]
      %v2074 = vld [vmem:[%s2063 + $0x28] sm:$0xf]
      %v2075 = vld [vmem:[%s2063 + $0x2c] sm:$0xf]
      %v2076 = vld [vmem:[%s2063 + $0x30] sm:$0xf]
      %v2077 = vld [vmem:[%s2063 + $0x34] sm:$0xf]
      %v2078 = vld [vmem:[%s2063 + $0x38] sm:$0xf]
      %v2079 = vld [vmem:[%s2063 + $0x3c] sm:$0xf]
      %v2096 = vunpack.c.l.b16 %v2064
      %v2097 = vunpack.c.l.b16 %v2065
      %v2098 = vunpack.c.l.b16 %v2066
      %v2099 = vunpack.c.l.b16 %v2067
      %v2100 = vunpack.c.l.b16 %v2068
      %v2101 = vunpack.c.l.b16 %v2069
      %v2102 = vunpack.c.l.b16 %v2070
      %v2103 = vunpack.c.l.b16 %v2071
      %v2104 = vunpack.c.l.b16 %v2072
      %v2105 = vunpack.c.l.b16 %v2073
      %v2106 = vunpack.c.l.b16 %v2074
      %v2107 = vunpack.c.l.b16 %v2075
      %v2108 = vunpack.c.l.b16 %v2076
      %v2109 = vunpack.c.l.b16 %v2077
      %v2110 = vunpack.c.l.b16 %v2078
      %v2111 = vunpack.c.l.b16 %v2079
      %v2112 = vpack.c.b16 %v2097, %v2096
      %v2113 = vpack.c.b16 %v2099, %v2098
      %v2114 = vpack.c.b16 %v2101, %v2100
      %v2115 = vpack.c.b16 %v2103, %v2102
      %v2116 = vpack.c.b16 %v2105, %v2104
      %v2117 = vpack.c.b16 %v2107, %v2106
      %v2118 = vpack.c.b16 %v2109, %v2108
      %v2119 = vpack.c.b16 %v2111, %v2110
      %2128 = vmatprep.subr.bf16.mxu0 0
      %2129 = vmatpush1.bf16.msra.mxu0 %v2112
      %2130 = vmatprep.subr.bf16.mxu0 0
      %2131 = vmatpush1.bf16.msra.mxu0 %v2113
      %2132 = vmatprep.subr.bf16.mxu0 0
      %2133 = vmatpush1.bf16.msra.mxu0 %v2114
      %2134 = vmatprep.subr.bf16.mxu0 0
      %2135 = vmatpush1.bf16.msra.mxu0 %v2115
      %2136 = vmatprep.subr.bf16.mxu0 0
      %2137 = vmatpush1.bf16.msra.mxu0 %v2116
      %2138 = vmatprep.subr.bf16.mxu0 0
      %2139 = vmatpush1.bf16.msra.mxu0 %v2117
      %2140 = vmatprep.subr.bf16.mxu0 0
      %2141 = vmatpush1.bf16.msra.mxu0 %v2118
      %2142 = vmatprep.subr.bf16.mxu0 0
      %2143 = vmatpush1.bf16.msra.mxu0 %v2119
      %2144 = vmatprep.subr.bf16.mxu0 0
      %2145 = vmatpush1.bf16.msra.mxu0 0
      %2146 = vmatprep.subr.bf16.mxu0 0
      %2147 = vmatpush1.bf16.msra.mxu0 0
      %2148 = vmatprep.subr.bf16.mxu0 0
      %2149 = vmatpush1.bf16.msra.mxu0 0
      %2150 = vmatprep.subr.bf16.mxu0 0
      %2151 = vmatpush1.bf16.msra.mxu0 0
      %2152 = vmatprep.subr.bf16.mxu0 0
      %2153 = vmatpush1.bf16.msra.mxu0 0
      %2154 = vmatprep.subr.bf16.mxu0 0
      %2155 = vmatpush1.bf16.msra.mxu0 0
      %2156 = vmatprep.subr.bf16.mxu0 0
      %2157 = vmatpush1.bf16.msra.mxu0 0
      %2158 = vmatprep.subr.bf16.mxu0 0
      %2159 = vmatpush1.bf16.msra.mxu0 0
      %2160 = vmatprep.mubr.bf16.mxu0 0
      %2161 = vmatmul.mubr.bf16.gmra.mrb[0].mxu0 %v1633
      %v2162 = vpop.f32.mrb[0].mxu0
      %v2163 = vadd.f32 0.0, %v2162
      %v2164 = vpop.f32.mrb[0].mxu0
      %v2165 = vpop.f32.mrb[0].mxu0
      %v2166 = vadd.f32 0.0, %v2165
      %v2167 = vpop.f32.mrb[0].mxu0
      %2168 = vmatprep.mubr.bf16.mxu0 0
      %2169 = vmatmul.mubr.bf16.gmra.mrb[0].mxu0 %v1635
      %v2170 = vpop.f32.mrb[0].mxu0
      %v2171 = vadd.f32 0.0, %v2170
      %v2172 = vpop.f32.mrb[0].mxu0
      %v2173 = vpop.f32.mrb[0].mxu0
      %v2174 = vadd.f32 0.0, %v2173
      %v2175 = vpop.f32.mrb[0].mxu0
      %2176 = vmatprep.mubr.bf16.mxu0 0
      %2177 = vmatmul.mubr.bf16.gmra.mrb[0].mxu0 %v1637
      %v2178 = vpop.f32.mrb[0].mxu0
      %v2179 = vadd.f32 0.0, %v2178
      %v2180 = vpop.f32.mrb[0].mxu0
      %v2181 = vpop.f32.mrb[0].mxu0
      %v2182 = vadd.f32 0.0, %v2181
      %v2183 = vpop.f32.mrb[0].mxu0
      %2184 = vmatprep.mubr.bf16.mxu0 0
      %2185 = vmatmul.mubr.bf16.gmra.mrb[0].mxu0 %v1639
      %v2186 = vpop.f32.mrb[0].mxu0
      %v2187 = vadd.f32 0.0, %v2186
      %v2188 = vpop.f32.mrb[0].mxu0
      %v2189 = vpop.f32.mrb[0].mxu0
      %v2190 = vadd.f32 0.0, %v2189
      %v2191 = vpop.f32.mrb[0].mxu0
      %2192 = vmatprep.mubr.bf16.mxu0 0
      %2193 = vmatmul.mubr.bf16.gmra.mrb[0].mxu0 %v1641
      %v2194 = vpop.f32.mrb[0].mxu0
      %v2195 = vadd.f32 0.0, %v2194
      %v2196 = vpop.f32.mrb[0].mxu0
      %v2197 = vpop.f32.mrb[0].mxu0
      %v2198 = vadd.f32 0.0, %v2197
      %v2199 = vpop.f32.mrb[0].mxu0
      %2200 = vmatprep.mubr.bf16.mxu0 0
      %2201 = vmatmul.mubr.bf16.gmra.mrb[0].mxu0 %v1643
      %v2202 = vpop.f32.mrb[0].mxu0
      %v2203 = vadd.f32 0.0, %v2202
      %v2204 = vpop.f32.mrb[0].mxu0
      %v2205 = vpop.f32.mrb[0].mxu0
      %v2206 = vadd.f32 0.0, %v2205
      %v2207 = vpop.f32.mrb[0].mxu0
      %2208 = vmatprep.mubr.bf16.mxu0 0
      %2209 = vmatmul.mubr.bf16.gmra.mrb[0].mxu0 %v1645
      %v2210 = vpop.f32.mrb[0].mxu0
      %v2211 = vadd.f32 0.0, %v2210
      %v2212 = vpop.f32.mrb[0].mxu0
      %v2213 = vpop.f32.mrb[0].mxu0
      %v2214 = vadd.f32 0.0, %v2213
      %v2215 = vpop.f32.mrb[0].mxu0
      %2216 = vmatprep.mubr.bf16.mxu0 0
      %2217 = vmatmul.mubr.bf16.gmra.mrb[0].mxu0 %v1647
      %v2218 = vpop.f32.mrb[0].mxu0
      %v2219 = vadd.f32 0.0, %v2218
      %v2220 = vpop.f32.mrb[0].mxu0
      %v2221 = vpop.f32.mrb[0].mxu0
      %v2222 = vadd.f32 0.0, %v2221
      %v2223 = vpop.f32.mrb[0].mxu0
      %2224 = vmatprep.mubr.bf16.mxu0 0
      %2225 = vmatmul.mubr.bf16.gmra.mrb[0].mxu0 %v1649
      %v2226 = vpop.f32.mrb[0].mxu0
      %v2227 = vadd.f32 0.0, %v2226
      %v2228 = vpop.f32.mrb[0].mxu0
      %v2229 = vpop.f32.mrb[0].mxu0
      %v2230 = vadd.f32 0.0, %v2229
      %v2231 = vpop.f32.mrb[0].mxu0
      %2232 = vmatprep.mubr.bf16.mxu0 0
      %2233 = vmatmul.mubr.bf16.gmra.mrb[0].mxu0 %v1665
      %v2234 = vpop.f32.mrb[0].mxu0
      %v2235 = vadd.f32 0.0, %v2234
      %v2236 = vpop.f32.mrb[0].mxu0
      %v2237 = vpop.f32.mrb[0].mxu0
      %v2238 = vadd.f32 0.0, %v2237
      %v2239 = vpop.f32.mrb[0].mxu0
      %2240 = vdwg.mxu0
      %v2241 = vadd.f32 %v2043, %v2163
      %v2242 = vadd.f32 %v2044, %v2166
      %v2243 = vadd.f32 %v2045, %v2171
      %v2244 = vadd.f32 %v2046, %v2174
      %v2245 = vadd.f32 %v2047, %v2179
      %v2246 = vadd.f32 %v2048, %v2182
      %v2247 = vadd.f32 %v2049, %v2187
      %v2248 = vadd.f32 %v2050, %v2190
      %v2249 = vadd.f32 %v2051, %v2195
      %v2250 = vadd.f32 %v2052, %v2198
      %v2251 = vadd.f32 %v2053, %v2203
      %v2252 = vadd.f32 %v2054, %v2206
      %v2253 = vadd.f32 %v2055, %v2211
      %v2254 = vadd.f32 %v2056, %v2214
      %v2255 = vadd.f32 %v2057, %v2219
      %v2256 = vadd.f32 %v2058, %v2222
      %v2257 = vadd.f32 %v2059, %v2227
      %v2258 = vadd.f32 %v2060, %v2230
      %v2259 = vadd.f32 %v2061, %v2235
      %v2260 = vadd.f32 %v2062, %v2238
      %v2262 = vlaneseq
      %v2263 = vshrl.u32 %v2262, 7
      %v2264 = vsub.s32 0, %v2263
      %v2265 = vrot.slane %v289, %v2264
      %v2267 = vadd.f32 %v2241, %v2265
      %v2268 = vadd.f32 %v2242, %v2265
      %v2269 = vadd.f32 %v2243, %v2265
      %v2270 = vadd.f32 %v2244, %v2265
      %v2271 = vadd.f32 %v2245, %v2265
      %v2272 = vadd.f32 %v2246, %v2265
      %v2273 = vadd.f32 %v2247, %v2265
      %v2274 = vadd.f32 %v2248, %v2265
      %v2275 = vadd.f32 %v2249, %v2265
      %v2276 = vadd.f32 %v2250, %v2265
      %v2277 = vadd.f32 %v2251, %v2265
      %v2278 = vadd.f32 %v2252, %v2265
      %v2279 = vadd.f32 %v2253, %v2265
      %v2280 = vadd.f32 %v2254, %v2265
      %v2281 = vadd.f32 %v2255, %v2265
      %v2282 = vadd.f32 %v2256, %v2265
      %v2283 = vadd.f32 %v2257, %v2265
      %v2284 = vadd.f32 %v2258, %v2265
      %v2285 = vadd.f32 %v2259, %v2265
      %v2286 = vadd.f32 %v2260, %v2265
      %v2287 = vmax.f32 %v2267, 0.0
      %v2288 = vmax.f32 %v2268, 0.0
      %v2289 = vmax.f32 %v2269, 0.0
      %v2290 = vmax.f32 %v2270, 0.0
      %v2291 = vmax.f32 %v2271, 0.0
      %v2292 = vmax.f32 %v2272, 0.0
      %v2293 = vmax.f32 %v2273, 0.0
      %v2294 = vmax.f32 %v2274, 0.0
      %v2295 = vmax.f32 %v2275, 0.0
      %v2296 = vmax.f32 %v2276, 0.0
      %v2297 = vmax.f32 %v2277, 0.0
      %v2298 = vmax.f32 %v2278, 0.0
      %v2299 = vmax.f32 %v2279, 0.0
      %v2300 = vmax.f32 %v2280, 0.0
      %v2301 = vmax.f32 %v2281, 0.0
      %v2302 = vmax.f32 %v2282, 0.0
      %v2303 = vmax.f32 %v2283, 0.0
      %v2304 = vmax.f32 %v2284, 0.0
      %v2305 = vmax.f32 %v2285, 0.0
      %v2306 = vmax.f32 %v2286, 0.0
      %v2307 = vpack.c.bf16 %v2288, %v2287
      %v2308 = vpack.c.bf16 %v2290, %v2289
      %v2309 = vpack.c.bf16 %v2292, %v2291
      %v2310 = vpack.c.bf16 %v2294, %v2293
      %v2311 = vpack.c.bf16 %v2296, %v2295
      %v2312 = vpack.c.bf16 %v2298, %v2297
      %v2313 = vpack.c.bf16 %v2300, %v2299
      %v2314 = vpack.c.bf16 %v2302, %v2301
      %v2315 = vpack.c.bf16 %v2304, %v2303
      %v2316 = vpack.c.bf16 %v2306, %v2305
      %v2317 = vld [vmem:[%s4] sm:$0x1]
      %v2318 = vld [vmem:[%s3] sm:$0xf]
      %v2319 = vld [vmem:[%s3 + $0x4] sm:$0xf]
      %v2320 = vld [vmem:[%s3 + $0x8] sm:$0xf]
      %v2321 = vld [vmem:[%s3 + $0xc] sm:$0xf]
      %v2322 = vld [vmem:[%s3 + $0x10] sm:$0xf]
      %v2323 = vld [vmem:[%s3 + $0x14] sm:$0xf]
      %v2324 = vld [vmem:[%s3 + $0x18] sm:$0xf]
      %v2325 = vld [vmem:[%s3 + $0x1c] sm:$0xf]
      %v2326 = vld [vmem:[%s3 + $0x20] sm:$0xf]
      %v2327 = vld [vmem:[%s3 + $0x24] sm:$0xf]
      %v2328 = vld [vmem:[%s3 + $0x28] sm:$0xf]
      %v2329 = vld [vmem:[%s3 + $0x2c] sm:$0xf]
      %v2330 = vld [vmem:[%s3 + $0x30] sm:$0xf]
      %v2331 = vld [vmem:[%s3 + $0x34] sm:$0xf]
      %v2332 = vld [vmem:[%s3 + $0x38] sm:$0xf]
      %v2333 = vld [vmem:[%s3 + $0x3c] sm:$0xf]
      %s2334 = scalar_lea.vmem %s3, 192
      %v2335 = vld [vmem:[%s2334] sm:$0xf]
      %v2336 = vld [vmem:[%s2334 + $0x4] sm:$0xf]
      %v2337 = vld [vmem:[%s2334 + $0x8] sm:$0xf]
      %v2338 = vld [vmem:[%s2334 + $0xc] sm:$0xf]
      %v2339 = vld [vmem:[%s2334 + $0x10] sm:$0xf]
      %v2340 = vld [vmem:[%s2334 + $0x14] sm:$0xf]
      %v2341 = vld [vmem:[%s2334 + $0x18] sm:$0xf]
      %v2342 = vld [vmem:[%s2334 + $0x1c] sm:$0xf]
      %v2343 = vld [vmem:[%s2334 + $0x20] sm:$0xf]
      %v2344 = vld [vmem:[%s2334 + $0x24] sm:$0xf]
      %v2345 = vld [vmem:[%s2334 + $0x28] sm:$0xf]
      %v2346 = vld [vmem:[%s2334 + $0x2c] sm:$0xf]
      %v2347 = vld [vmem:[%s2334 + $0x30] sm:$0xf]
      %v2348 = vld [vmem:[%s2334 + $0x34] sm:$0xf]
      %v2349 = vld [vmem:[%s2334 + $0x38] sm:$0xf]
      %v2350 = vld [vmem:[%s2334 + $0x3c] sm:$0xf]
      %v2367 = vunpack.c.l.b16 %v2335
      %v2368 = vunpack.c.l.b16 %v2336
      %v2369 = vunpack.c.l.b16 %v2337
      %v2370 = vunpack.c.l.b16 %v2338
      %v2371 = vunpack.c.l.b16 %v2339
      %v2372 = vunpack.c.l.b16 %v2340
      %v2373 = vunpack.c.l.b16 %v2341
      %v2374 = vunpack.c.l.b16 %v2342
      %v2375 = vunpack.c.l.b16 %v2343
      %v2376 = vunpack.c.l.b16 %v2344
      %v2377 = vunpack.c.l.b16 %v2345
      %v2378 = vunpack.c.l.b16 %v2346
      %v2379 = vunpack.c.l.b16 %v2347
      %v2380 = vunpack.c.l.b16 %v2348
      %v2381 = vunpack.c.l.b16 %v2349
      %v2382 = vunpack.c.l.b16 %v2350
      %v2383 = vpack.c.b16 %v2368, %v2367
      %v2384 = vpack.c.b16 %v2370, %v2369
      %v2385 = vpack.c.b16 %v2372, %v2371
      %v2386 = vpack.c.b16 %v2374, %v2373
      %v2387 = vpack.c.b16 %v2376, %v2375
      %v2388 = vpack.c.b16 %v2378, %v2377
      %v2389 = vpack.c.b16 %v2380, %v2379
      %v2390 = vpack.c.b16 %v2382, %v2381
      %2399 = vmatprep.subr.bf16.mxu0 0
      %2400 = vmatpush1.bf16.msra.mxu0 %v2383
      %2401 = vmatprep.subr.bf16.mxu0 0
      %2402 = vmatpush1.bf16.msra.mxu0 %v2384
      %2403 = vmatprep.subr.bf16.mxu0 0
      %2404 = vmatpush1.bf16.msra.mxu0 %v2385
      %2405 = vmatprep.subr.bf16.mxu0 0
      %2406 = vmatpush1.bf16.msra.mxu0 %v2386
      %2407 = vmatprep.subr.bf16.mxu0 0
      %2408 = vmatpush1.bf16.msra.mxu0 %v2387
      %2409 = vmatprep.subr.bf16.mxu0 0
      %2410 = vmatpush1.bf16.msra.mxu0 %v2388
      %2411 = vmatprep.subr.bf16.mxu0 0
      %2412 = vmatpush1.bf16.msra.mxu0 %v2389
      %2413 = vmatprep.subr.bf16.mxu0 0
      %2414 = vmatpush1.bf16.msra.mxu0 %v2390
      %2415 = vmatprep.subr.bf16.mxu0 0
      %2416 = vmatpush1.bf16.msra.mxu0 0
      %2417 = vmatprep.subr.bf16.mxu0 0
      %2418 = vmatpush1.bf16.msra.mxu0 0
      %2419 = vmatprep.subr.bf16.mxu0 0
      %2420 = vmatpush1.bf16.msra.mxu0 0
      %2421 = vmatprep.subr.bf16.mxu0 0
      %2422 = vmatpush1.bf16.msra.mxu0 0
      %2423 = vmatprep.subr.bf16.mxu0 0
      %2424 = vmatpush1.bf16.msra.mxu0 0
      %2425 = vmatprep.subr.bf16.mxu0 0
      %2426 = vmatpush1.bf16.msra.mxu0 0
      %2427 = vmatprep.subr.bf16.mxu0 0
      %2428 = vmatpush1.bf16.msra.mxu0 0
      %2429 = vmatprep.subr.bf16.mxu0 0
      %2430 = vmatpush1.bf16.msra.mxu0 0
      %2431 = vmatprep.mubr.bf16.mxu0 0
      %2432 = vmatmul.mubr.bf16.gmra.mrb[0].mxu0 %v2308
      %v2433 = vpop.f32.mrb[0].mxu0
      %v2434 = vadd.f32 0.0, %v2433
      %v2435 = vpop.f32.mrb[0].mxu0
      %v2436 = vpop.f32.mrb[0].mxu0
      %v2437 = vadd.f32 0.0, %v2436
      %v2438 = vpop.f32.mrb[0].mxu0
      %2439 = vmatprep.mubr.bf16.mxu0 0
      %2440 = vmatmul.mubr.bf16.gmra.mrb[0].mxu0 %v2309
      %v2441 = vpop.f32.mrb[0].mxu0
      %v2442 = vadd.f32 0.0, %v2441
      %v2443 = vpop.f32.mrb[0].mxu0
      %v2444 = vpop.f32.mrb[0].mxu0
      %v2445 = vadd.f32 0.0, %v2444
      %v2446 = vpop.f32.mrb[0].mxu0
      %2447 = vmatprep.mubr.bf16.mxu0 0
      %2448 = vmatmul.mubr.bf16.gmra.mrb[0].mxu0 %v2310
      %v2449 = vpop.f32.mrb[0].mxu0
      %v2450 = vadd.f32 0.0, %v2449
      %v2451 = vpop.f32.mrb[0].mxu0
      %v2452 = vpop.f32.mrb[0].mxu0
      %v2453 = vadd.f32 0.0, %v2452
      %v2454 = vpop.f32.mrb[0].mxu0
      %2455 = vmatprep.mubr.bf16.mxu0 0
      %2456 = vmatmul.mubr.bf16.gmra.mrb[0].mxu0 %v2311
      %v2457 = vpop.f32.mrb[0].mxu0
      %v2458 = vadd.f32 0.0, %v2457
      %v2459 = vpop.f32.mrb[0].mxu0
      %v2460 = vpop.f32.mrb[0].mxu0
      %v2461 = vadd.f32 0.0, %v2460
      %v2462 = vpop.f32.mrb[0].mxu0
      %2463 = vmatprep.mubr.bf16.mxu0 0
      %2464 = vmatmul.mubr.bf16.gmra.mrb[0].mxu0 %v2312
      %v2465 = vpop.f32.mrb[0].mxu0
      %v2466 = vadd.f32 0.0, %v2465
      %v2467 = vpop.f32.mrb[0].mxu0
      %v2468 = vpop.f32.mrb[0].mxu0
      %v2469 = vadd.f32 0.0, %v2468
      %v2470 = vpop.f32.mrb[0].mxu0
      %2471 = vmatprep.mubr.bf16.mxu0 0
      %2472 = vmatmul.mubr.bf16.gmra.mrb[0].mxu0 %v2313
      %v2473 = vpop.f32.mrb[0].mxu0
      %v2474 = vadd.f32 0.0, %v2473
      %v2475 = vpop.f32.mrb[0].mxu0
      %v2476 = vpop.f32.mrb[0].mxu0
      %v2477 = vadd.f32 0.0, %v2476
      %v2478 = vpop.f32.mrb[0].mxu0
      %2479 = vmatprep.mubr.bf16.mxu0 0
      %2480 = vmatmul.mubr.bf16.gmra.mrb[0].mxu0 %v2314
      %v2481 = vpop.f32.mrb[0].mxu0
      %v2482 = vadd.f32 0.0, %v2481
      %v2483 = vpop.f32.mrb[0].mxu0
      %v2484 = vpop.f32.mrb[0].mxu0
      %v2485 = vadd.f32 0.0, %v2484
      %v2486 = vpop.f32.mrb[0].mxu0
      %2487 = vmatprep.mubr.bf16.mxu0 0
      %2488 = vmatmul.mubr.bf16.gmra.mrb[0].mxu0 %v2315
      %v2489 = vpop.f32.mrb[0].mxu0
      %v2490 = vadd.f32 0.0, %v2489
      %v2491 = vpop.f32.mrb[0].mxu0
      %v2492 = vpop.f32.mrb[0].mxu0
      %v2493 = vadd.f32 0.0, %v2492
      %v2494 = vpop.f32.mrb[0].mxu0
      %2495 = vdwg.mxu0
      %v2512 = vunpack.c.l.b16 %v2318
      %v2513 = vunpack.c.l.b16 %v2319
      %v2514 = vunpack.c.l.b16 %v2320
      %v2515 = vunpack.c.l.b16 %v2321
      %v2516 = vunpack.c.l.b16 %v2322
      %v2517 = vunpack.c.l.b16 %v2323
      %v2518 = vunpack.c.l.b16 %v2324
      %v2519 = vunpack.c.l.b16 %v2325
      %v2520 = vunpack.c.l.b16 %v2326
      %v2521 = vunpack.c.l.b16 %v2327
      %v2522 = vunpack.c.l.b16 %v2328
      %v2523 = vunpack.c.l.b16 %v2329
      %v2524 = vunpack.c.l.b16 %v2330
      %v2525 = vunpack.c.l.b16 %v2331
      %v2526 = vunpack.c.l.b16 %v2332
      %v2527 = vunpack.c.l.b16 %v2333
      %v2528 = vpack.c.b16 %v2513, %v2512
      %v2529 = vpack.c.b16 %v2515, %v2514
      %v2530 = vpack.c.b16 %v2517, %v2516
      %v2531 = vpack.c.b16 %v2519, %v2518
      %v2532 = vpack.c.b16 %v2521, %v2520
      %v2533 = vpack.c.b16 %v2523, %v2522
      %v2534 = vpack.c.b16 %v2525, %v2524
      %v2535 = vpack.c.b16 %v2527, %v2526
      %2544 = vmatprep.subr.bf16.mxu0 0
      %2545 = vmatpush1.bf16.msra.mxu0 %v2528
      %2546 = vmatprep.subr.bf16.mxu0 0
      %2547 = vmatpush1.bf16.msra.mxu0 %v2529
      %2548 = vmatprep.subr.bf16.mxu0 0
      %2549 = vmatpush1.bf16.msra.mxu0 %v2530
      %2550 = vmatprep.subr.bf16.mxu0 0
      %2551 = vmatpush1.bf16.msra.mxu0 %v2531
      %2552 = vmatprep.subr.bf16.mxu0 0
      %2553 = vmatpush1.bf16.msra.mxu0 %v2532
      %2554 = vmatprep.subr.bf16.mxu0 0
      %2555 = vmatpush1.bf16.msra.mxu0 %v2533
      %2556 = vmatprep.subr.bf16.mxu0 0
      %2557 = vmatpush1.bf16.msra.mxu0 %v2534
      %2558 = vmatprep.subr.bf16.mxu0 0
      %2559 = vmatpush1.bf16.msra.mxu0 %v2535
      %2560 = vmatprep.subr.bf16.mxu0 0
      %2561 = vmatpush1.bf16.msra.mxu0 0
      %2562 = vmatprep.subr.bf16.mxu0 0
      %2563 = vmatpush1.bf16.msra.mxu0 0
      %2564 = vmatprep.subr.bf16.mxu0 0
      %2565 = vmatpush1.bf16.msra.mxu0 0
      %2566 = vmatprep.subr.bf16.mxu0 0
      %2567 = vmatpush1.bf16.msra.mxu0 0
      %2568 = vmatprep.subr.bf16.mxu0 0
      %2569 = vmatpush1.bf16.msra.mxu0 0
      %2570 = vmatprep.subr.bf16.mxu0 0
      %2571 = vmatpush1.bf16.msra.mxu0 0
      %2572 = vmatprep.subr.bf16.mxu0 0
      %2573 = vmatpush1.bf16.msra.mxu0 0
      %2574 = vmatprep.subr.bf16.mxu0 0
      %2575 = vmatpush1.bf16.msra.mxu0 0
      %2576 = vmatprep.mubr.bf16.mxu0 0
      %2577 = vmatmul.mubr.bf16.gmra.mrb[0].mxu0 %v2307
      %v2578 = vpop.f32.mrb[0].mxu0
      %v2579 = vadd.f32 %v2434, %v2578
      %v2580 = vpop.f32.mrb[0].mxu0
      %v2581 = vpop.f32.mrb[0].mxu0
      %v2582 = vadd.f32 %v2437, %v2581
      %v2583 = vpop.f32.mrb[0].mxu0
      %2584 = vmatprep.mubr.bf16.mxu0 0
      %2585 = vmatmul.mubr.bf16.gmra.mrb[0].mxu0 %v2308
      %v2586 = vpop.f32.mrb[0].mxu0
      %v2587 = vadd.f32 %v2442, %v2586
      %v2588 = vpop.f32.mrb[0].mxu0
      %v2589 = vpop.f32.mrb[0].mxu0
      %v2590 = vadd.f32 %v2445, %v2589
      %v2591 = vpop.f32.mrb[0].mxu0
      %2592 = vmatprep.mubr.bf16.mxu0 0
      %2593 = vmatmul.mubr.bf16.gmra.mrb[0].mxu0 %v2309
      %v2594 = vpop.f32.mrb[0].mxu0
      %v2595 = vadd.f32 %v2450, %v2594
      %v2596 = vpop.f32.mrb[0].mxu0
      %v2597 = vpop.f32.mrb[0].mxu0
      %v2598 = vadd.f32 %v2453, %v2597
      %v2599 = vpop.f32.mrb[0].mxu0
      %2600 = vmatprep.mubr.bf16.mxu0 0
      %2601 = vmatmul.mubr.bf16.gmra.mrb[0].mxu0 %v2310
      %v2602 = vpop.f32.mrb[0].mxu0
      %v2603 = vadd.f32 %v2458, %v2602
      %v2604 = vpop.f32.mrb[0].mxu0
      %v2605 = vpop.f32.mrb[0].mxu0
      %v2606 = vadd.f32 %v2461, %v2605
      %v2607 = vpop.f32.mrb[0].mxu0
      %2608 = vmatprep.mubr.bf16.mxu0 0
      %2609 = vmatmul.mubr.bf16.gmra.mrb[0].mxu0 %v2311
      %v2610 = vpop.f32.mrb[0].mxu0
      %v2611 = vadd.f32 %v2466, %v2610
      %v2612 = vpop.f32.mrb[0].mxu0
      %v2613 = vpop.f32.mrb[0].mxu0
      %v2614 = vadd.f32 %v2469, %v2613
      %v2615 = vpop.f32.mrb[0].mxu0
      %2616 = vmatprep.mubr.bf16.mxu0 0
      %2617 = vmatmul.mubr.bf16.gmra.mrb[0].mxu0 %v2312
      %v2618 = vpop.f32.mrb[0].mxu0
      %v2619 = vadd.f32 %v2474, %v2618
      %v2620 = vpop.f32.mrb[0].mxu0
      %v2621 = vpop.f32.mrb[0].mxu0
      %v2622 = vadd.f32 %v2477, %v2621
      %v2623 = vpop.f32.mrb[0].mxu0
      %2624 = vmatprep.mubr.bf16.mxu0 0
      %2625 = vmatmul.mubr.bf16.gmra.mrb[0].mxu0 %v2313
      %v2626 = vpop.f32.mrb[0].mxu0
      %v2627 = vadd.f32 %v2482, %v2626
      %v2628 = vpop.f32.mrb[0].mxu0
      %v2629 = vpop.f32.mrb[0].mxu0
      %v2630 = vadd.f32 %v2485, %v2629
      %v2631 = vpop.f32.mrb[0].mxu0
      %2632 = vmatprep.mubr.bf16.mxu0 0
      %2633 = vmatmul.mubr.bf16.gmra.mrb[0].mxu0 %v2314
      %v2634 = vpop.f32.mrb[0].mxu0
      %v2635 = vadd.f32 %v2490, %v2634
      %v2636 = vpop.f32.mrb[0].mxu0
      %v2637 = vpop.f32.mrb[0].mxu0
      %v2638 = vadd.f32 %v2493, %v2637
      %v2639 = vpop.f32.mrb[0].mxu0
      %2640 = vdwg.mxu0
      %s2641 = scalar_lea.vmem %s3, 384
      %v2642 = vld [vmem:[%s2641] sm:$0xf]
      %v2643 = vld [vmem:[%s2641 + $0x4] sm:$0xf]
      %v2644 = vld [vmem:[%s2641 + $0x8] sm:$0xf]
      %v2645 = vld [vmem:[%s2641 + $0xc] sm:$0xf]
      %v2646 = vld [vmem:[%s2641 + $0x10] sm:$0xf]
      %v2647 = vld [vmem:[%s2641 + $0x14] sm:$0xf]
      %v2648 = vld [vmem:[%s2641 + $0x18] sm:$0xf]
      %v2649 = vld [vmem:[%s2641 + $0x1c] sm:$0xf]
      %v2650 = vld [vmem:[%s2641 + $0x20] sm:$0xf]
      %v2651 = vld [vmem:[%s2641 + $0x24] sm:$0xf]
      %v2652 = vld [vmem:[%s2641 + $0x28] sm:$0xf]
      %v2653 = vld [vmem:[%s2641 + $0x2c] sm:$0xf]
      %v2654 = vld [vmem:[%s2641 + $0x30] sm:$0xf]
      %v2655 = vld [vmem:[%s2641 + $0x34] sm:$0xf]
      %v2656 = vld [vmem:[%s2641 + $0x38] sm:$0xf]
      %v2657 = vld [vmem:[%s2641 + $0x3c] sm:$0xf]
      %v2674 = vunpack.c.l.b16 %v2642
      %v2675 = vunpack.c.l.b16 %v2643
      %v2676 = vunpack.c.l.b16 %v2644
      %v2677 = vunpack.c.l.b16 %v2645
      %v2678 = vunpack.c.l.b16 %v2646
      %v2679 = vunpack.c.l.b16 %v2647
      %v2680 = vunpack.c.l.b16 %v2648
      %v2681 = vunpack.c.l.b16 %v2649
      %v2682 = vunpack.c.l.b16 %v2650
      %v2683 = vunpack.c.l.b16 %v2651
      %v2684 = vunpack.c.l.b16 %v2652
      %v2685 = vunpack.c.l.b16 %v2653
      %v2686 = vunpack.c.l.b16 %v2654
      %v2687 = vunpack.c.l.b16 %v2655
      %v2688 = vunpack.c.l.b16 %v2656
      %v2689 = vunpack.c.l.b16 %v2657
      %v2690 = vpack.c.b16 %v2675, %v2674
      %v2691 = vpack.c.b16 %v2677, %v2676
      %v2692 = vpack.c.b16 %v2679, %v2678
      %v2693 = vpack.c.b16 %v2681, %v2680
      %v2694 = vpack.c.b16 %v2683, %v2682
      %v2695 = vpack.c.b16 %v2685, %v2684
      %v2696 = vpack.c.b16 %v2687, %v2686
      %v2697 = vpack.c.b16 %v2689, %v2688
      %2706 = vmatprep.subr.bf16.mxu0 0
      %2707 = vmatpush1.bf16.msra.mxu0 %v2690
      %2708 = vmatprep.subr.bf16.mxu0 0
      %2709 = vmatpush1.bf16.msra.mxu0 %v2691
      %2710 = vmatprep.subr.bf16.mxu0 0
      %2711 = vmatpush1.bf16.msra.mxu0 %v2692
      %2712 = vmatprep.subr.bf16.mxu0 0
      %2713 = vmatpush1.bf16.msra.mxu0 %v2693
      %2714 = vmatprep.subr.bf16.mxu0 0
      %2715 = vmatpush1.bf16.msra.mxu0 %v2694
      %2716 = vmatprep.subr.bf16.mxu0 0
      %2717 = vmatpush1.bf16.msra.mxu0 %v2695
      %2718 = vmatprep.subr.bf16.mxu0 0
      %2719 = vmatpush1.bf16.msra.mxu0 %v2696
      %2720 = vmatprep.subr.bf16.mxu0 0
      %2721 = vmatpush1.bf16.msra.mxu0 %v2697
      %2722 = vmatprep.subr.bf16.mxu0 0
      %2723 = vmatpush1.bf16.msra.mxu0 0
      %2724 = vmatprep.subr.bf16.mxu0 0
      %2725 = vmatpush1.bf16.msra.mxu0 0
      %2726 = vmatprep.subr.bf16.mxu0 0
      %2727 = vmatpush1.bf16.msra.mxu0 0
      %2728 = vmatprep.subr.bf16.mxu0 0
      %2729 = vmatpush1.bf16.msra.mxu0 0
      %2730 = vmatprep.subr.bf16.mxu0 0
      %2731 = vmatpush1.bf16.msra.mxu0 0
      %2732 = vmatprep.subr.bf16.mxu0 0
      %2733 = vmatpush1.bf16.msra.mxu0 0
      %2734 = vmatprep.subr.bf16.mxu0 0
      %2735 = vmatpush1.bf16.msra.mxu0 0
      %2736 = vmatprep.subr.bf16.mxu0 0
      %2737 = vmatpush1.bf16.msra.mxu0 0
      %2738 = vmatprep.mubr.bf16.mxu0 0
      %2739 = vmatmul.mubr.bf16.gmra.mrb[0].mxu0 %v2309
      %v2740 = vpop.f32.mrb[0].mxu0
      %v2741 = vadd.f32 0.0, %v2740
      %v2742 = vpop.f32.mrb[0].mxu0
      %v2743 = vpop.f32.mrb[0].mxu0
      %v2744 = vadd.f32 0.0, %v2743
      %v2745 = vpop.f32.mrb[0].mxu0
      %2746 = vmatprep.mubr.bf16.mxu0 0
      %2747 = vmatmul.mubr.bf16.gmra.mrb[0].mxu0 %v2310
      %v2748 = vpop.f32.mrb[0].mxu0
      %v2749 = vadd.f32 0.0, %v2748
      %v2750 = vpop.f32.mrb[0].mxu0
      %v2751 = vpop.f32.mrb[0].mxu0
      %v2752 = vadd.f32 0.0, %v2751
      %v2753 = vpop.f32.mrb[0].mxu0
      %2754 = vmatprep.mubr.bf16.mxu0 0
      %2755 = vmatmul.mubr.bf16.gmra.mrb[0].mxu0 %v2311
      %v2756 = vpop.f32.mrb[0].mxu0
      %v2757 = vadd.f32 0.0, %v2756
      %v2758 = vpop.f32.mrb[0].mxu0
      %v2759 = vpop.f32.mrb[0].mxu0
      %v2760 = vadd.f32 0.0, %v2759
      %v2761 = vpop.f32.mrb[0].mxu0
      %2762 = vmatprep.mubr.bf16.mxu0 0
      %2763 = vmatmul.mubr.bf16.gmra.mrb[0].mxu0 %v2312
      %v2764 = vpop.f32.mrb[0].mxu0
      %v2765 = vadd.f32 0.0, %v2764
      %v2766 = vpop.f32.mrb[0].mxu0
      %v2767 = vpop.f32.mrb[0].mxu0
      %v2768 = vadd.f32 0.0, %v2767
      %v2769 = vpop.f32.mrb[0].mxu0
      %2770 = vmatprep.mubr.bf16.mxu0 0
      %2771 = vmatmul.mubr.bf16.gmra.mrb[0].mxu0 %v2313
      %v2772 = vpop.f32.mrb[0].mxu0
      %v2773 = vadd.f32 0.0, %v2772
      %v2774 = vpop.f32.mrb[0].mxu0
      %v2775 = vpop.f32.mrb[0].mxu0
      %v2776 = vadd.f32 0.0, %v2775
      %v2777 = vpop.f32.mrb[0].mxu0
      %2778 = vmatprep.mubr.bf16.mxu0 0
      %2779 = vmatmul.mubr.bf16.gmra.mrb[0].mxu0 %v2314
      %v2780 = vpop.f32.mrb[0].mxu0
      %v2781 = vadd.f32 0.0, %v2780
      %v2782 = vpop.f32.mrb[0].mxu0
      %v2783 = vpop.f32.mrb[0].mxu0
      %v2784 = vadd.f32 0.0, %v2783
      %v2785 = vpop.f32.mrb[0].mxu0
      %2786 = vmatprep.mubr.bf16.mxu0 0
      %2787 = vmatmul.mubr.bf16.gmra.mrb[0].mxu0 %v2315
      %v2788 = vpop.f32.mrb[0].mxu0
      %v2789 = vadd.f32 0.0, %v2788
      %v2790 = vpop.f32.mrb[0].mxu0
      %v2791 = vpop.f32.mrb[0].mxu0
      %v2792 = vadd.f32 0.0, %v2791
      %v2793 = vpop.f32.mrb[0].mxu0
      %2794 = vmatprep.mubr.bf16.mxu0 0
      %2795 = vmatmul.mubr.bf16.gmra.mrb[0].mxu0 %v2316
      %v2796 = vpop.f32.mrb[0].mxu0
      %v2797 = vadd.f32 0.0, %v2796
      %v2798 = vpop.f32.mrb[0].mxu0
      %v2799 = vpop.f32.mrb[0].mxu0
      %v2800 = vadd.f32 0.0, %v2799
      %v2801 = vpop.f32.mrb[0].mxu0
      %2802 = vdwg.mxu0
      %v2803 = vadd.f32 %v2579, %v2741
      %v2804 = vadd.f32 %v2582, %v2744
      %v2805 = vadd.f32 %v2587, %v2749
      %v2806 = vadd.f32 %v2590, %v2752
      %v2807 = vadd.f32 %v2595, %v2757
      %v2808 = vadd.f32 %v2598, %v2760
      %v2809 = vadd.f32 %v2603, %v2765
      %v2810 = vadd.f32 %v2606, %v2768
      %v2811 = vadd.f32 %v2611, %v2773
      %v2812 = vadd.f32 %v2614, %v2776
      %v2813 = vadd.f32 %v2619, %v2781
      %v2814 = vadd.f32 %v2622, %v2784
      %v2815 = vadd.f32 %v2627, %v2789
      %v2816 = vadd.f32 %v2630, %v2792
      %v2817 = vadd.f32 %v2635, %v2797
      %v2818 = vadd.f32 %v2638, %v2800
      %v2820 = vshrl.u32 %v2307, 16
      %v2822 = vshll.u32 %v2307, 16
      %v2824 = vrot.slane %v2822, 1
      %v2825 = vor.u32 %v2820, %v2824
      %v2827 = vshll.u32 %v2308, 16
      %v2829 = vrot.slane %v2827, 1
      %v2830 = vsel %vm915, %v2825, %v2829
      %v2831 = vshrl.u32 %v2308, 16
      %v2833 = vor.u32 %v2831, %v2829
      %v2835 = vshll.u32 %v2309, 16
      %v2837 = vrot.slane %v2835, 1
      %v2838 = vsel %vm915, %v2833, %v2837
      %v2839 = vshrl.u32 %v2309, 16
      %v2841 = vor.u32 %v2839, %v2837
      %v2843 = vshll.u32 %v2310, 16
      %v2845 = vrot.slane %v2843, 1
      %v2846 = vsel %vm915, %v2841, %v2845
      %v2847 = vshrl.u32 %v2310, 16
      %v2849 = vor.u32 %v2847, %v2845
      %v2851 = vshll.u32 %v2311, 16
      %v2853 = vrot.slane %v2851, 1
      %v2854 = vsel %vm915, %v2849, %v2853
      %v2855 = vshrl.u32 %v2311, 16
      %v2857 = vor.u32 %v2855, %v2853
      %v2859 = vshll.u32 %v2312, 16
      %v2861 = vrot.slane %v2859, 1
      %v2862 = vsel %vm915, %v2857, %v2861
      %v2863 = vshrl.u32 %v2312, 16
      %v2865 = vor.u32 %v2863, %v2861
      %v2867 = vshll.u32 %v2313, 16
      %v2869 = vrot.slane %v2867, 1
      %v2870 = vsel %vm915, %v2865, %v2869
      %v2871 = vshrl.u32 %v2313, 16
      %v2873 = vor.u32 %v2871, %v2869
      %v2875 = vshll.u32 %v2314, 16
      %v2877 = vrot.slane %v2875, 1
      %v2878 = vsel %vm915, %v2873, %v2877
      %v2879 = vshrl.u32 %v2314, 16
      %v2881 = vor.u32 %v2879, %v2877
      %v2883 = vshll.u32 %v2315, 16
      %v2885 = vrot.slane %v2883, 1
      %v2886 = vsel %vm915, %v2881, %v2885
      %v2887 = vshrl.u32 %v2315, 16
      %v2889 = vor.u32 %v2887, %v2885
      %v2891 = vshll.u32 %v2316, 16
      %v2893 = vrot.slane %v2891, 1
      %v2894 = vsel %vm915, %v2889, %v2893
      %v2895 = vshrl.u32 %v2316, 16
      %v2897 = vor.u32 %v2895, %v2893
      %v2909 = vsel %vm1030, %v2897, %v2824
      %s2910 = scalar_lea.vmem %s3, 64
      %v2911 = vld [vmem:[%s2910] sm:$0xf]
      %v2912 = vld [vmem:[%s2910 + $0x4] sm:$0xf]
      %v2913 = vld [vmem:[%s2910 + $0x8] sm:$0xf]
      %v2914 = vld [vmem:[%s2910 + $0xc] sm:$0xf]
      %v2915 = vld [vmem:[%s2910 + $0x10] sm:$0xf]
      %v2916 = vld [vmem:[%s2910 + $0x14] sm:$0xf]
      %v2917 = vld [vmem:[%s2910 + $0x18] sm:$0xf]
      %v2918 = vld [vmem:[%s2910 + $0x1c] sm:$0xf]
      %v2919 = vld [vmem:[%s2910 + $0x20] sm:$0xf]
      %v2920 = vld [vmem:[%s2910 + $0x24] sm:$0xf]
      %v2921 = vld [vmem:[%s2910 + $0x28] sm:$0xf]
      %v2922 = vld [vmem:[%s2910 + $0x2c] sm:$0xf]
      %v2923 = vld [vmem:[%s2910 + $0x30] sm:$0xf]
      %v2924 = vld [vmem:[%s2910 + $0x34] sm:$0xf]
      %v2925 = vld [vmem:[%s2910 + $0x38] sm:$0xf]
      %v2926 = vld [vmem:[%s2910 + $0x3c] sm:$0xf]
      %v2943 = vunpack.c.l.b16 %v2911
      %v2944 = vunpack.c.l.b16 %v2912
      %v2945 = vunpack.c.l.b16 %v2913
      %v2946 = vunpack.c.l.b16 %v2914
      %v2947 = vunpack.c.l.b16 %v2915
      %v2948 = vunpack.c.l.b16 %v2916
      %v2949 = vunpack.c.l.b16 %v2917
      %v2950 = vunpack.c.l.b16 %v2918
      %v2951 = vunpack.c.l.b16 %v2919
      %v2952 = vunpack.c.l.b16 %v2920
      %v2953 = vunpack.c.l.b16 %v2921
      %v2954 = vunpack.c.l.b16 %v2922
      %v2955 = vunpack.c.l.b16 %v2923
      %v2956 = vunpack.c.l.b16 %v2924
      %v2957 = vunpack.c.l.b16 %v2925
      %v2958 = vunpack.c.l.b16 %v2926
      %v2959 = vpack.c.b16 %v2944, %v2943
      %v2960 = vpack.c.b16 %v2946, %v2945
      %v2961 = vpack.c.b16 %v2948, %v2947
      %v2962 = vpack.c.b16 %v2950, %v2949
      %v2963 = vpack.c.b16 %v2952, %v2951
      %v2964 = vpack.c.b16 %v2954, %v2953
      %v2965 = vpack.c.b16 %v2956, %v2955
      %v2966 = vpack.c.b16 %v2958, %v2957
      %2975 = vmatprep.subr.bf16.mxu0 0
      %2976 = vmatpush1.bf16.msra.mxu0 %v2959
      %2977 = vmatprep.subr.bf16.mxu0 0
      %2978 = vmatpush1.bf16.msra.mxu0 %v2960
      %2979 = vmatprep.subr.bf16.mxu0 0
      %2980 = vmatpush1.bf16.msra.mxu0 %v2961
      %2981 = vmatprep.subr.bf16.mxu0 0
      %2982 = vmatpush1.bf16.msra.mxu0 %v2962
      %2983 = vmatprep.subr.bf16.mxu0 0
      %2984 = vmatpush1.bf16.msra.mxu0 %v2963
      %2985 = vmatprep.subr.bf16.mxu0 0
      %2986 = vmatpush1.bf16.msra.mxu0 %v2964
      %2987 = vmatprep.subr.bf16.mxu0 0
      %2988 = vmatpush1.bf16.msra.mxu0 %v2965
      %2989 = vmatprep.subr.bf16.mxu0 0
      %2990 = vmatpush1.bf16.msra.mxu0 %v2966
      %2991 = vmatprep.subr.bf16.mxu0 0
      %2992 = vmatpush1.bf16.msra.mxu0 0
      %2993 = vmatprep.subr.bf16.mxu0 0
      %2994 = vmatpush1.bf16.msra.mxu0 0
      %2995 = vmatprep.subr.bf16.mxu0 0
      %2996 = vmatpush1.bf16.msra.mxu0 0
      %2997 = vmatprep.subr.bf16.mxu0 0
      %2998 = vmatpush1.bf16.msra.mxu0 0
      %2999 = vmatprep.subr.bf16.mxu0 0
      %3000 = vmatpush1.bf16.msra.mxu0 0
      %3001 = vmatprep.subr.bf16.mxu0 0
      %3002 = vmatpush1.bf16.msra.mxu0 0
      %3003 = vmatprep.subr.bf16.mxu0 0
      %3004 = vmatpush1.bf16.msra.mxu0 0
      %3005 = vmatprep.subr.bf16.mxu0 0
      %3006 = vmatpush1.bf16.msra.mxu0 0
      %3007 = vmatprep.mubr.bf16.mxu0 0
      %3008 = vmatmul.mubr.bf16.gmra.mrb[0].mxu0 %v2830
      %v3009 = vpop.f32.mrb[0].mxu0
      %v3010 = vadd.f32 0.0, %v3009
      %v3011 = vpop.f32.mrb[0].mxu0
      %v3012 = vpop.f32.mrb[0].mxu0
      %v3013 = vadd.f32 0.0, %v3012
      %v3014 = vpop.f32.mrb[0].mxu0
      %3015 = vmatprep.mubr.bf16.mxu0 0
      %3016 = vmatmul.mubr.bf16.gmra.mrb[0].mxu0 %v2838
      %v3017 = vpop.f32.mrb[0].mxu0
      %v3018 = vadd.f32 0.0, %v3017
      %v3019 = vpop.f32.mrb[0].mxu0
      %v3020 = vpop.f32.mrb[0].mxu0
      %v3021 = vadd.f32 0.0, %v3020
      %v3022 = vpop.f32.mrb[0].mxu0
      %3023 = vmatprep.mubr.bf16.mxu0 0
      %3024 = vmatmul.mubr.bf16.gmra.mrb[0].mxu0 %v2846
      %v3025 = vpop.f32.mrb[0].mxu0
      %v3026 = vadd.f32 0.0, %v3025
      %v3027 = vpop.f32.mrb[0].mxu0
      %v3028 = vpop.f32.mrb[0].mxu0
      %v3029 = vadd.f32 0.0, %v3028
      %v3030 = vpop.f32.mrb[0].mxu0
      %3031 = vmatprep.mubr.bf16.mxu0 0
      %3032 = vmatmul.mubr.bf16.gmra.mrb[0].mxu0 %v2854
      %v3033 = vpop.f32.mrb[0].mxu0
      %v3034 = vadd.f32 0.0, %v3033
      %v3035 = vpop.f32.mrb[0].mxu0
      %v3036 = vpop.f32.mrb[0].mxu0
      %v3037 = vadd.f32 0.0, %v3036
      %v3038 = vpop.f32.mrb[0].mxu0
      %3039 = vmatprep.mubr.bf16.mxu0 0
      %3040 = vmatmul.mubr.bf16.gmra.mrb[0].mxu0 %v2862
      %v3041 = vpop.f32.mrb[0].mxu0
      %v3042 = vadd.f32 0.0, %v3041
      %v3043 = vpop.f32.mrb[0].mxu0
      %v3044 = vpop.f32.mrb[0].mxu0
      %v3045 = vadd.f32 0.0, %v3044
      %v3046 = vpop.f32.mrb[0].mxu0
      %3047 = vmatprep.mubr.bf16.mxu0 0
      %3048 = vmatmul.mubr.bf16.gmra.mrb[0].mxu0 %v2870
      %v3049 = vpop.f32.mrb[0].mxu0
      %v3050 = vadd.f32 0.0, %v3049
      %v3051 = vpop.f32.mrb[0].mxu0
      %v3052 = vpop.f32.mrb[0].mxu0
      %v3053 = vadd.f32 0.0, %v3052
      %v3054 = vpop.f32.mrb[0].mxu0
      %3055 = vmatprep.mubr.bf16.mxu0 0
      %3056 = vmatmul.mubr.bf16.gmra.mrb[0].mxu0 %v2878
      %v3057 = vpop.f32.mrb[0].mxu0
      %v3058 = vadd.f32 0.0, %v3057
      %v3059 = vpop.f32.mrb[0].mxu0
      %v3060 = vpop.f32.mrb[0].mxu0
      %v3061 = vadd.f32 0.0, %v3060
      %v3062 = vpop.f32.mrb[0].mxu0
      %3063 = vmatprep.mubr.bf16.mxu0 0
      %3064 = vmatmul.mubr.bf16.gmra.mrb[0].mxu0 %v2886
      %v3065 = vpop.f32.mrb[0].mxu0
      %v3066 = vadd.f32 0.0, %v3065
      %v3067 = vpop.f32.mrb[0].mxu0
      %v3068 = vpop.f32.mrb[0].mxu0
      %v3069 = vadd.f32 0.0, %v3068
      %v3070 = vpop.f32.mrb[0].mxu0
      %3071 = vdwg.mxu0
      %v3072 = vadd.f32 %v2803, %v3010
      %v3073 = vadd.f32 %v2804, %v3013
      %v3074 = vadd.f32 %v2805, %v3018
      %v3075 = vadd.f32 %v2806, %v3021
      %v3076 = vadd.f32 %v2807, %v3026
      %v3077 = vadd.f32 %v2808, %v3029
      %v3078 = vadd.f32 %v2809, %v3034
      %v3079 = vadd.f32 %v2810, %v3037
      %v3080 = vadd.f32 %v2811, %v3042
      %v3081 = vadd.f32 %v2812, %v3045
      %v3082 = vadd.f32 %v2813, %v3050
      %v3083 = vadd.f32 %v2814, %v3053
      %v3084 = vadd.f32 %v2815, %v3058
      %v3085 = vadd.f32 %v2816, %v3061
      %v3086 = vadd.f32 %v2817, %v3066
      %v3087 = vadd.f32 %v2818, %v3069
      %s3088 = scalar_lea.vmem %s3, 256
      %v3089 = vld [vmem:[%s3088] sm:$0xf]
      %v3090 = vld [vmem:[%s3088 + $0x4] sm:$0xf]
      %v3091 = vld [vmem:[%s3088 + $0x8] sm:$0xf]
      %v3092 = vld [vmem:[%s3088 + $0xc] sm:$0xf]
      %v3093 = vld [vmem:[%s3088 + $0x10] sm:$0xf]
      %v3094 = vld [vmem:[%s3088 + $0x14] sm:$0xf]
      %v3095 = vld [vmem:[%s3088 + $0x18] sm:$0xf]
      %v3096 = vld [vmem:[%s3088 + $0x1c] sm:$0xf]
      %v3097 = vld [vmem:[%s3088 + $0x20] sm:$0xf]
      %v3098 = vld [vmem:[%s3088 + $0x24] sm:$0xf]
      %v3099 = vld [vmem:[%s3088 + $0x28] sm:$0xf]
      %v3100 = vld [vmem:[%s3088 + $0x2c] sm:$0xf]
      %v3101 = vld [vmem:[%s3088 + $0x30] sm:$0xf]
      %v3102 = vld [vmem:[%s3088 + $0x34] sm:$0xf]
      %v3103 = vld [vmem:[%s3088 + $0x38] sm:$0xf]
      %v3104 = vld [vmem:[%s3088 + $0x3c] sm:$0xf]
      %v3121 = vunpack.c.l.b16 %v3089
      %v3122 = vunpack.c.l.b16 %v3090
      %v3123 = vunpack.c.l.b16 %v3091
      %v3124 = vunpack.c.l.b16 %v3092
      %v3125 = vunpack.c.l.b16 %v3093
      %v3126 = vunpack.c.l.b16 %v3094
      %v3127 = vunpack.c.l.b16 %v3095
      %v3128 = vunpack.c.l.b16 %v3096
      %v3129 = vunpack.c.l.b16 %v3097
      %v3130 = vunpack.c.l.b16 %v3098
      %v3131 = vunpack.c.l.b16 %v3099
      %v3132 = vunpack.c.l.b16 %v3100
      %v3133 = vunpack.c.l.b16 %v3101
      %v3134 = vunpack.c.l.b16 %v3102
      %v3135 = vunpack.c.l.b16 %v3103
      %v3136 = vunpack.c.l.b16 %v3104
      %v3137 = vpack.c.b16 %v3122, %v3121
      %v3138 = vpack.c.b16 %v3124, %v3123
      %v3139 = vpack.c.b16 %v3126, %v3125
      %v3140 = vpack.c.b16 %v3128, %v3127
      %v3141 = vpack.c.b16 %v3130, %v3129
      %v3142 = vpack.c.b16 %v3132, %v3131
      %v3143 = vpack.c.b16 %v3134, %v3133
      %v3144 = vpack.c.b16 %v3136, %v3135
      %3153 = vmatprep.subr.bf16.mxu0 0
      %3154 = vmatpush1.bf16.msra.mxu0 %v3137
      %3155 = vmatprep.subr.bf16.mxu0 0
      %3156 = vmatpush1.bf16.msra.mxu0 %v3138
      %3157 = vmatprep.subr.bf16.mxu0 0
      %3158 = vmatpush1.bf16.msra.mxu0 %v3139
      %3159 = vmatprep.subr.bf16.mxu0 0
      %3160 = vmatpush1.bf16.msra.mxu0 %v3140
      %3161 = vmatprep.subr.bf16.mxu0 0
      %3162 = vmatpush1.bf16.msra.mxu0 %v3141
      %3163 = vmatprep.subr.bf16.mxu0 0
      %3164 = vmatpush1.bf16.msra.mxu0 %v3142
      %3165 = vmatprep.subr.bf16.mxu0 0
      %3166 = vmatpush1.bf16.msra.mxu0 %v3143
      %3167 = vmatprep.subr.bf16.mxu0 0
      %3168 = vmatpush1.bf16.msra.mxu0 %v3144
      %3169 = vmatprep.subr.bf16.mxu0 0
      %3170 = vmatpush1.bf16.msra.mxu0 0
      %3171 = vmatprep.subr.bf16.mxu0 0
      %3172 = vmatpush1.bf16.msra.mxu0 0
      %3173 = vmatprep.subr.bf16.mxu0 0
      %3174 = vmatpush1.bf16.msra.mxu0 0
      %3175 = vmatprep.subr.bf16.mxu0 0
      %3176 = vmatpush1.bf16.msra.mxu0 0
      %3177 = vmatprep.subr.bf16.mxu0 0
      %3178 = vmatpush1.bf16.msra.mxu0 0
      %3179 = vmatprep.subr.bf16.mxu0 0
      %3180 = vmatpush1.bf16.msra.mxu0 0
      %3181 = vmatprep.subr.bf16.mxu0 0
      %3182 = vmatpush1.bf16.msra.mxu0 0
      %3183 = vmatprep.subr.bf16.mxu0 0
      %3184 = vmatpush1.bf16.msra.mxu0 0
      %3185 = vmatprep.mubr.bf16.mxu0 0
      %3186 = vmatmul.mubr.bf16.gmra.mrb[0].mxu0 %v2838
      %v3187 = vpop.f32.mrb[0].mxu0
      %v3188 = vadd.f32 0.0, %v3187
      %v3189 = vpop.f32.mrb[0].mxu0
      %v3190 = vpop.f32.mrb[0].mxu0
      %v3191 = vadd.f32 0.0, %v3190
      %v3192 = vpop.f32.mrb[0].mxu0
      %3193 = vmatprep.mubr.bf16.mxu0 0
      %3194 = vmatmul.mubr.bf16.gmra.mrb[0].mxu0 %v2846
      %v3195 = vpop.f32.mrb[0].mxu0
      %v3196 = vadd.f32 0.0, %v3195
      %v3197 = vpop.f32.mrb[0].mxu0
      %v3198 = vpop.f32.mrb[0].mxu0
      %v3199 = vadd.f32 0.0, %v3198
      %v3200 = vpop.f32.mrb[0].mxu0
      %3201 = vmatprep.mubr.bf16.mxu0 0
      %3202 = vmatmul.mubr.bf16.gmra.mrb[0].mxu0 %v2854
      %v3203 = vpop.f32.mrb[0].mxu0
      %v3204 = vadd.f32 0.0, %v3203
      %v3205 = vpop.f32.mrb[0].mxu0
      %v3206 = vpop.f32.mrb[0].mxu0
      %v3207 = vadd.f32 0.0, %v3206
      %v3208 = vpop.f32.mrb[0].mxu0
      %3209 = vmatprep.mubr.bf16.mxu0 0
      %3210 = vmatmul.mubr.bf16.gmra.mrb[0].mxu0 %v2862
      %v3211 = vpop.f32.mrb[0].mxu0
      %v3212 = vadd.f32 0.0, %v3211
      %v3213 = vpop.f32.mrb[0].mxu0
      %v3214 = vpop.f32.mrb[0].mxu0
      %v3215 = vadd.f32 0.0, %v3214
      %v3216 = vpop.f32.mrb[0].mxu0
      %3217 = vmatprep.mubr.bf16.mxu0 0
      %3218 = vmatmul.mubr.bf16.gmra.mrb[0].mxu0 %v2870
      %v3219 = vpop.f32.mrb[0].mxu0
      %v3220 = vadd.f32 0.0, %v3219
      %v3221 = vpop.f32.mrb[0].mxu0
      %v3222 = vpop.f32.mrb[0].mxu0
      %v3223 = vadd.f32 0.0, %v3222
      %v3224 = vpop.f32.mrb[0].mxu0
      %3225 = vmatprep.mubr.bf16.mxu0 0
      %3226 = vmatmul.mubr.bf16.gmra.mrb[0].mxu0 %v2878
      %v3227 = vpop.f32.mrb[0].mxu0
      %v3228 = vadd.f32 0.0, %v3227
      %v3229 = vpop.f32.mrb[0].mxu0
      %v3230 = vpop.f32.mrb[0].mxu0
      %v3231 = vadd.f32 0.0, %v3230
      %v3232 = vpop.f32.mrb[0].mxu0
      %3233 = vmatprep.mubr.bf16.mxu0 0
      %3234 = vmatmul.mubr.bf16.gmra.mrb[0].mxu0 %v2886
      %v3235 = vpop.f32.mrb[0].mxu0
      %v3236 = vadd.f32 0.0, %v3235
      %v3237 = vpop.f32.mrb[0].mxu0
      %v3238 = vpop.f32.mrb[0].mxu0
      %v3239 = vadd.f32 0.0, %v3238
      %v3240 = vpop.f32.mrb[0].mxu0
      %3241 = vmatprep.mubr.bf16.mxu0 0
      %3242 = vmatmul.mubr.bf16.gmra.mrb[0].mxu0 %v2894
      %v3243 = vpop.f32.mrb[0].mxu0
      %v3244 = vadd.f32 0.0, %v3243
      %v3245 = vpop.f32.mrb[0].mxu0
      %v3246 = vpop.f32.mrb[0].mxu0
      %v3247 = vadd.f32 0.0, %v3246
      %v3248 = vpop.f32.mrb[0].mxu0
      %3249 = vdwg.mxu0
      %v3250 = vadd.f32 %v3072, %v3188
      %v3251 = vadd.f32 %v3073, %v3191
      %v3252 = vadd.f32 %v3074, %v3196
      %v3253 = vadd.f32 %v3075, %v3199
      %v3254 = vadd.f32 %v3076, %v3204
      %v3255 = vadd.f32 %v3077, %v3207
      %v3256 = vadd.f32 %v3078, %v3212
      %v3257 = vadd.f32 %v3079, %v3215
      %v3258 = vadd.f32 %v3080, %v3220
      %v3259 = vadd.f32 %v3081, %v3223
      %v3260 = vadd.f32 %v3082, %v3228
      %v3261 = vadd.f32 %v3083, %v3231
      %v3262 = vadd.f32 %v3084, %v3236
      %v3263 = vadd.f32 %v3085, %v3239
      %v3264 = vadd.f32 %v3086, %v3244
      %v3265 = vadd.f32 %v3087, %v3247
      %s3266 = scalar_lea.vmem %s3, 448
      %v3267 = vld [vmem:[%s3266] sm:$0xf]
      %v3268 = vld [vmem:[%s3266 + $0x4] sm:$0xf]
      %v3269 = vld [vmem:[%s3266 + $0x8] sm:$0xf]
      %v3270 = vld [vmem:[%s3266 + $0xc] sm:$0xf]
      %v3271 = vld [vmem:[%s3266 + $0x10] sm:$0xf]
      %v3272 = vld [vmem:[%s3266 + $0x14] sm:$0xf]
      %v3273 = vld [vmem:[%s3266 + $0x18] sm:$0xf]
      %v3274 = vld [vmem:[%s3266 + $0x1c] sm:$0xf]
      %v3275 = vld [vmem:[%s3266 + $0x20] sm:$0xf]
      %v3276 = vld [vmem:[%s3266 + $0x24] sm:$0xf]
      %v3277 = vld [vmem:[%s3266 + $0x28] sm:$0xf]
      %v3278 = vld [vmem:[%s3266 + $0x2c] sm:$0xf]
      %v3279 = vld [vmem:[%s3266 + $0x30] sm:$0xf]
      %v3280 = vld [vmem:[%s3266 + $0x34] sm:$0xf]
      %v3281 = vld [vmem:[%s3266 + $0x38] sm:$0xf]
      %v3282 = vld [vmem:[%s3266 + $0x3c] sm:$0xf]
      %v3299 = vunpack.c.l.b16 %v3267
      %v3300 = vunpack.c.l.b16 %v3268
      %v3301 = vunpack.c.l.b16 %v3269
      %v3302 = vunpack.c.l.b16 %v3270
      %v3303 = vunpack.c.l.b16 %v3271
      %v3304 = vunpack.c.l.b16 %v3272
      %v3305 = vunpack.c.l.b16 %v3273
      %v3306 = vunpack.c.l.b16 %v3274
      %v3307 = vunpack.c.l.b16 %v3275
      %v3308 = vunpack.c.l.b16 %v3276
      %v3309 = vunpack.c.l.b16 %v3277
      %v3310 = vunpack.c.l.b16 %v3278
      %v3311 = vunpack.c.l.b16 %v3279
      %v3312 = vunpack.c.l.b16 %v3280
      %v3313 = vunpack.c.l.b16 %v3281
      %v3314 = vunpack.c.l.b16 %v3282
      %v3315 = vpack.c.b16 %v3300, %v3299
      %v3316 = vpack.c.b16 %v3302, %v3301
      %v3317 = vpack.c.b16 %v3304, %v3303
      %v3318 = vpack.c.b16 %v3306, %v3305
      %v3319 = vpack.c.b16 %v3308, %v3307
      %v3320 = vpack.c.b16 %v3310, %v3309
      %v3321 = vpack.c.b16 %v3312, %v3311
      %v3322 = vpack.c.b16 %v3314, %v3313
      %3331 = vmatprep.subr.bf16.mxu0 0
      %3332 = vmatpush1.bf16.msra.mxu0 %v3315
      %3333 = vmatprep.subr.bf16.mxu0 0
      %3334 = vmatpush1.bf16.msra.mxu0 %v3316
      %3335 = vmatprep.subr.bf16.mxu0 0
      %3336 = vmatpush1.bf16.msra.mxu0 %v3317
      %3337 = vmatprep.subr.bf16.mxu0 0
      %3338 = vmatpush1.bf16.msra.mxu0 %v3318
      %3339 = vmatprep.subr.bf16.mxu0 0
      %3340 = vmatpush1.bf16.msra.mxu0 %v3319
      %3341 = vmatprep.subr.bf16.mxu0 0
      %3342 = vmatpush1.bf16.msra.mxu0 %v3320
      %3343 = vmatprep.subr.bf16.mxu0 0
      %3344 = vmatpush1.bf16.msra.mxu0 %v3321
      %3345 = vmatprep.subr.bf16.mxu0 0
      %3346 = vmatpush1.bf16.msra.mxu0 %v3322
      %3347 = vmatprep.subr.bf16.mxu0 0
      %3348 = vmatpush1.bf16.msra.mxu0 0
      %3349 = vmatprep.subr.bf16.mxu0 0
      %3350 = vmatpush1.bf16.msra.mxu0 0
      %3351 = vmatprep.subr.bf16.mxu0 0
      %3352 = vmatpush1.bf16.msra.mxu0 0
      %3353 = vmatprep.subr.bf16.mxu0 0
      %3354 = vmatpush1.bf16.msra.mxu0 0
      %3355 = vmatprep.subr.bf16.mxu0 0
      %3356 = vmatpush1.bf16.msra.mxu0 0
      %3357 = vmatprep.subr.bf16.mxu0 0
      %3358 = vmatpush1.bf16.msra.mxu0 0
      %3359 = vmatprep.subr.bf16.mxu0 0
      %3360 = vmatpush1.bf16.msra.mxu0 0
      %3361 = vmatprep.subr.bf16.mxu0 0
      %3362 = vmatpush1.bf16.msra.mxu0 0
      %3363 = vmatprep.mubr.bf16.mxu0 0
      %3364 = vmatmul.mubr.bf16.gmra.mrb[0].mxu0 %v2846
      %v3365 = vpop.f32.mrb[0].mxu0
      %v3366 = vadd.f32 0.0, %v3365
      %v3367 = vpop.f32.mrb[0].mxu0
      %v3368 = vpop.f32.mrb[0].mxu0
      %v3369 = vadd.f32 0.0, %v3368
      %v3370 = vpop.f32.mrb[0].mxu0
      %3371 = vmatprep.mubr.bf16.mxu0 0
      %3372 = vmatmul.mubr.bf16.gmra.mrb[0].mxu0 %v2854
      %v3373 = vpop.f32.mrb[0].mxu0
      %v3374 = vadd.f32 0.0, %v3373
      %v3375 = vpop.f32.mrb[0].mxu0
      %v3376 = vpop.f32.mrb[0].mxu0
      %v3377 = vadd.f32 0.0, %v3376
      %v3378 = vpop.f32.mrb[0].mxu0
      %3379 = vmatprep.mubr.bf16.mxu0 0
      %3380 = vmatmul.mubr.bf16.gmra.mrb[0].mxu0 %v2862
      %v3381 = vpop.f32.mrb[0].mxu0
      %v3382 = vadd.f32 0.0, %v3381
      %v3383 = vpop.f32.mrb[0].mxu0
      %v3384 = vpop.f32.mrb[0].mxu0
      %v3385 = vadd.f32 0.0, %v3384
      %v3386 = vpop.f32.mrb[0].mxu0
      %3387 = vmatprep.mubr.bf16.mxu0 0
      %3388 = vmatmul.mubr.bf16.gmra.mrb[0].mxu0 %v2870
      %v3389 = vpop.f32.mrb[0].mxu0
      %v3390 = vadd.f32 0.0, %v3389
      %v3391 = vpop.f32.mrb[0].mxu0
      %v3392 = vpop.f32.mrb[0].mxu0
      %v3393 = vadd.f32 0.0, %v3392
      %v3394 = vpop.f32.mrb[0].mxu0
      %3395 = vmatprep.mubr.bf16.mxu0 0
      %3396 = vmatmul.mubr.bf16.gmra.mrb[0].mxu0 %v2878
      %v3397 = vpop.f32.mrb[0].mxu0
      %v3398 = vadd.f32 0.0, %v3397
      %v3399 = vpop.f32.mrb[0].mxu0
      %v3400 = vpop.f32.mrb[0].mxu0
      %v3401 = vadd.f32 0.0, %v3400
      %v3402 = vpop.f32.mrb[0].mxu0
      %3403 = vmatprep.mubr.bf16.mxu0 0
      %3404 = vmatmul.mubr.bf16.gmra.mrb[0].mxu0 %v2886
      %v3405 = vpop.f32.mrb[0].mxu0
      %v3406 = vadd.f32 0.0, %v3405
      %v3407 = vpop.f32.mrb[0].mxu0
      %v3408 = vpop.f32.mrb[0].mxu0
      %v3409 = vadd.f32 0.0, %v3408
      %v3410 = vpop.f32.mrb[0].mxu0
      %3411 = vmatprep.mubr.bf16.mxu0 0
      %3412 = vmatmul.mubr.bf16.gmra.mrb[0].mxu0 %v2894
      %v3413 = vpop.f32.mrb[0].mxu0
      %v3414 = vadd.f32 0.0, %v3413
      %v3415 = vpop.f32.mrb[0].mxu0
      %v3416 = vpop.f32.mrb[0].mxu0
      %v3417 = vadd.f32 0.0, %v3416
      %v3418 = vpop.f32.mrb[0].mxu0
      %3419 = vmatprep.mubr.bf16.mxu0 0
      %3420 = vmatmul.mubr.bf16.gmra.mrb[0].mxu0 %v2909
      %v3421 = vpop.f32.mrb[0].mxu0
      %v3422 = vadd.f32 0.0, %v3421
      %v3423 = vpop.f32.mrb[0].mxu0
      %v3424 = vpop.f32.mrb[0].mxu0
      %v3425 = vadd.f32 0.0, %v3424
      %v3426 = vpop.f32.mrb[0].mxu0
      %3427 = vdwg.mxu0
      %v3428 = vadd.f32 %v3250, %v3366
      %v3429 = vadd.f32 %v3251, %v3369
      %v3430 = vadd.f32 %v3252, %v3374
      %v3431 = vadd.f32 %v3253, %v3377
      %v3432 = vadd.f32 %v3254, %v3382
      %v3433 = vadd.f32 %v3255, %v3385
      %v3434 = vadd.f32 %v3256, %v3390
      %v3435 = vadd.f32 %v3257, %v3393
      %v3436 = vadd.f32 %v3258, %v3398
      %v3437 = vadd.f32 %v3259, %v3401
      %v3438 = vadd.f32 %v3260, %v3406
      %v3439 = vadd.f32 %v3261, %v3409
      %v3440 = vadd.f32 %v3262, %v3414
      %v3441 = vadd.f32 %v3263, %v3417
      %v3442 = vadd.f32 %v3264, %v3422
      %v3443 = vadd.f32 %v3265, %v3425
      %v3454 = vrot.slane %v2307, 1
      %v3455 = vrot.slane %v2308, 1
      %v3456 = vsel %vm1626, %v3454, %v3455
      %v3457 = vrot.slane %v2309, 1
      %v3458 = vsel %vm1626, %v3455, %v3457
      %v3459 = vrot.slane %v2310, 1
      %v3460 = vsel %vm1626, %v3457, %v3459
      %v3461 = vrot.slane %v2311, 1
      %v3462 = vsel %vm1626, %v3459, %v3461
      %v3463 = vrot.slane %v2312, 1
      %v3464 = vsel %vm1626, %v3461, %v3463
      %v3465 = vrot.slane %v2313, 1
      %v3466 = vsel %vm1626, %v3463, %v3465
      %v3467 = vrot.slane %v2314, 1
      %v3468 = vsel %vm1626, %v3465, %v3467
      %v3469 = vrot.slane %v2315, 1
      %v3470 = vsel %vm1626, %v3467, %v3469
      %v3471 = vrot.slane %v2316, 1
      %v3472 = vsel %vm1626, %v3469, %v3471
      %v3484 = vsel %vm1662, %v3471, %v3454
      %s3486 = scalar_lea.vmem %s3, 128
      %v3487 = vld [vmem:[%s3486] sm:$0xf]
      %v3488 = vld [vmem:[%s3486 + $0x4] sm:$0xf]
      %v3489 = vld [vmem:[%s3486 + $0x8] sm:$0xf]
      %v3490 = vld [vmem:[%s3486 + $0xc] sm:$0xf]
      %v3491 = vld [vmem:[%s3486 + $0x10] sm:$0xf]
      %v3492 = vld [vmem:[%s3486 + $0x14] sm:$0xf]
      %v3493 = vld [vmem:[%s3486 + $0x18] sm:$0xf]
      %v3494 = vld [vmem:[%s3486 + $0x1c] sm:$0xf]
      %v3495 = vld [vmem:[%s3486 + $0x20] sm:$0xf]
      %v3496 = vld [vmem:[%s3486 + $0x24] sm:$0xf]
      %v3497 = vld [vmem:[%s3486 + $0x28] sm:$0xf]
      %v3498 = vld [vmem:[%s3486 + $0x2c] sm:$0xf]
      %v3499 = vld [vmem:[%s3486 + $0x30] sm:$0xf]
      %v3500 = vld [vmem:[%s3486 + $0x34] sm:$0xf]
      %v3501 = vld [vmem:[%s3486 + $0x38] sm:$0xf]
      %v3502 = vld [vmem:[%s3486 + $0x3c] sm:$0xf]
      %v3519 = vunpack.c.l.b16 %v3487
      %v3520 = vunpack.c.l.b16 %v3488
      %v3521 = vunpack.c.l.b16 %v3489
      %v3522 = vunpack.c.l.b16 %v3490
      %v3523 = vunpack.c.l.b16 %v3491
      %v3524 = vunpack.c.l.b16 %v3492
      %v3525 = vunpack.c.l.b16 %v3493
      %v3526 = vunpack.c.l.b16 %v3494
      %v3527 = vunpack.c.l.b16 %v3495
      %v3528 = vunpack.c.l.b16 %v3496
      %v3529 = vunpack.c.l.b16 %v3497
      %v3530 = vunpack.c.l.b16 %v3498
      %v3531 = vunpack.c.l.b16 %v3499
      %v3532 = vunpack.c.l.b16 %v3500
      %v3533 = vunpack.c.l.b16 %v3501
      %v3534 = vunpack.c.l.b16 %v3502
      %v3535 = vpack.c.b16 %v3520, %v3519
      %v3536 = vpack.c.b16 %v3522, %v3521
      %v3537 = vpack.c.b16 %v3524, %v3523
      %v3538 = vpack.c.b16 %v3526, %v3525
      %v3539 = vpack.c.b16 %v3528, %v3527
      %v3540 = vpack.c.b16 %v3530, %v3529
      %v3541 = vpack.c.b16 %v3532, %v3531
      %v3542 = vpack.c.b16 %v3534, %v3533
      %3551 = vmatprep.subr.bf16.mxu0 0
      %3552 = vmatpush1.bf16.msra.mxu0 %v3535
      %3553 = vmatprep.subr.bf16.mxu0 0
      %3554 = vmatpush1.bf16.msra.mxu0 %v3536
      %3555 = vmatprep.subr.bf16.mxu0 0
      %3556 = vmatpush1.bf16.msra.mxu0 %v3537
      %3557 = vmatprep.subr.bf16.mxu0 0
      %3558 = vmatpush1.bf16.msra.mxu0 %v3538
      %3559 = vmatprep.subr.bf16.mxu0 0
      %3560 = vmatpush1.bf16.msra.mxu0 %v3539
      %3561 = vmatprep.subr.bf16.mxu0 0
      %3562 = vmatpush1.bf16.msra.mxu0 %v3540
      %3563 = vmatprep.subr.bf16.mxu0 0
      %3564 = vmatpush1.bf16.msra.mxu0 %v3541
      %3565 = vmatprep.subr.bf16.mxu0 0
      %3566 = vmatpush1.bf16.msra.mxu0 %v3542
      %3567 = vmatprep.subr.bf16.mxu0 0
      %3568 = vmatpush1.bf16.msra.mxu0 0
      %3569 = vmatprep.subr.bf16.mxu0 0
      %3570 = vmatpush1.bf16.msra.mxu0 0
      %3571 = vmatprep.subr.bf16.mxu0 0
      %3572 = vmatpush1.bf16.msra.mxu0 0
      %3573 = vmatprep.subr.bf16.mxu0 0
      %3574 = vmatpush1.bf16.msra.mxu0 0
      %3575 = vmatprep.subr.bf16.mxu0 0
      %3576 = vmatpush1.bf16.msra.mxu0 0
      %3577 = vmatprep.subr.bf16.mxu0 0
      %3578 = vmatpush1.bf16.msra.mxu0 0
      %3579 = vmatprep.subr.bf16.mxu0 0
      %3580 = vmatpush1.bf16.msra.mxu0 0
      %3581 = vmatprep.subr.bf16.mxu0 0
      %3582 = vmatpush1.bf16.msra.mxu0 0
      %3583 = vmatprep.mubr.bf16.mxu0 0
      %3584 = vmatmul.mubr.bf16.gmra.mrb[0].mxu0 %v3456
      %v3585 = vpop.f32.mrb[0].mxu0
      %v3586 = vadd.f32 0.0, %v3585
      %v3587 = vpop.f32.mrb[0].mxu0
      %v3588 = vpop.f32.mrb[0].mxu0
      %v3589 = vadd.f32 0.0, %v3588
      %v3590 = vpop.f32.mrb[0].mxu0
      %3591 = vmatprep.mubr.bf16.mxu0 0
      %3592 = vmatmul.mubr.bf16.gmra.mrb[0].mxu0 %v3458
      %v3593 = vpop.f32.mrb[0].mxu0
      %v3594 = vadd.f32 0.0, %v3593
      %v3595 = vpop.f32.mrb[0].mxu0
      %v3596 = vpop.f32.mrb[0].mxu0
      %v3597 = vadd.f32 0.0, %v3596
      %v3598 = vpop.f32.mrb[0].mxu0
      %3599 = vmatprep.mubr.bf16.mxu0 0
      %3600 = vmatmul.mubr.bf16.gmra.mrb[0].mxu0 %v3460
      %v3601 = vpop.f32.mrb[0].mxu0
      %v3602 = vadd.f32 0.0, %v3601
      %v3603 = vpop.f32.mrb[0].mxu0
      %v3604 = vpop.f32.mrb[0].mxu0
      %v3605 = vadd.f32 0.0, %v3604
      %v3606 = vpop.f32.mrb[0].mxu0
      %3607 = vmatprep.mubr.bf16.mxu0 0
      %3608 = vmatmul.mubr.bf16.gmra.mrb[0].mxu0 %v3462
      %v3609 = vpop.f32.mrb[0].mxu0
      %v3610 = vadd.f32 0.0, %v3609
      %v3611 = vpop.f32.mrb[0].mxu0
      %v3612 = vpop.f32.mrb[0].mxu0
      %v3613 = vadd.f32 0.0, %v3612
      %v3614 = vpop.f32.mrb[0].mxu0
      %3615 = vmatprep.mubr.bf16.mxu0 0
      %3616 = vmatmul.mubr.bf16.gmra.mrb[0].mxu0 %v3464
      %v3617 = vpop.f32.mrb[0].mxu0
      %v3618 = vadd.f32 0.0, %v3617
      %v3619 = vpop.f32.mrb[0].mxu0
      %v3620 = vpop.f32.mrb[0].mxu0
      %v3621 = vadd.f32 0.0, %v3620
      %v3622 = vpop.f32.mrb[0].mxu0
      %3623 = vmatprep.mubr.bf16.mxu0 0
      %3624 = vmatmul.mubr.bf16.gmra.mrb[0].mxu0 %v3466
      %v3625 = vpop.f32.mrb[0].mxu0
      %v3626 = vadd.f32 0.0, %v3625
      %v3627 = vpop.f32.mrb[0].mxu0
      %v3628 = vpop.f32.mrb[0].mxu0
      %v3629 = vadd.f32 0.0, %v3628
      %v3630 = vpop.f32.mrb[0].mxu0
      %3631 = vmatprep.mubr.bf16.mxu0 0
      %3632 = vmatmul.mubr.bf16.gmra.mrb[0].mxu0 %v3468
      %v3633 = vpop.f32.mrb[0].mxu0
      %v3634 = vadd.f32 0.0, %v3633
      %v3635 = vpop.f32.mrb[0].mxu0
      %v3636 = vpop.f32.mrb[0].mxu0
      %v3637 = vadd.f32 0.0, %v3636
      %v3638 = vpop.f32.mrb[0].mxu0
      %3639 = vmatprep.mubr.bf16.mxu0 0
      %3640 = vmatmul.mubr.bf16.gmra.mrb[0].mxu0 %v3470
      %v3641 = vpop.f32.mrb[0].mxu0
      %v3642 = vadd.f32 0.0, %v3641
      %v3643 = vpop.f32.mrb[0].mxu0
      %v3644 = vpop.f32.mrb[0].mxu0
      %v3645 = vadd.f32 0.0, %v3644
      %v3646 = vpop.f32.mrb[0].mxu0
      %3647 = vdwg.mxu0
      %v3648 = vadd.f32 %v3428, %v3586
      %v3649 = vadd.f32 %v3429, %v3589
      %v3650 = vadd.f32 %v3430, %v3594
      %v3651 = vadd.f32 %v3431, %v3597
      %v3652 = vadd.f32 %v3432, %v3602
      %v3653 = vadd.f32 %v3433, %v3605
      %v3654 = vadd.f32 %v3434, %v3610
      %v3655 = vadd.f32 %v3435, %v3613
      %v3656 = vadd.f32 %v3436, %v3618
      %v3657 = vadd.f32 %v3437, %v3621
      %v3658 = vadd.f32 %v3438, %v3626
      %v3659 = vadd.f32 %v3439, %v3629
      %v3660 = vadd.f32 %v3440, %v3634
      %v3661 = vadd.f32 %v3441, %v3637
      %v3662 = vadd.f32 %v3442, %v3642
      %v3663 = vadd.f32 %v3443, %v3645
      %s3664 = scalar_lea.vmem %s3, 320
      %v3665 = vld [vmem:[%s3664] sm:$0xf]
      %v3666 = vld [vmem:[%s3664 + $0x4] sm:$0xf]
      %v3667 = vld [vmem:[%s3664 + $0x8] sm:$0xf]
      %v3668 = vld [vmem:[%s3664 + $0xc] sm:$0xf]
      %v3669 = vld [vmem:[%s3664 + $0x10] sm:$0xf]
      %v3670 = vld [vmem:[%s3664 + $0x14] sm:$0xf]
      %v3671 = vld [vmem:[%s3664 + $0x18] sm:$0xf]
      %v3672 = vld [vmem:[%s3664 + $0x1c] sm:$0xf]
      %v3673 = vld [vmem:[%s3664 + $0x20] sm:$0xf]
      %v3674 = vld [vmem:[%s3664 + $0x24] sm:$0xf]
      %v3675 = vld [vmem:[%s3664 + $0x28] sm:$0xf]
      %v3676 = vld [vmem:[%s3664 + $0x2c] sm:$0xf]
      %v3677 = vld [vmem:[%s3664 + $0x30] sm:$0xf]
      %v3678 = vld [vmem:[%s3664 + $0x34] sm:$0xf]
      %v3679 = vld [vmem:[%s3664 + $0x38] sm:$0xf]
      %v3680 = vld [vmem:[%s3664 + $0x3c] sm:$0xf]
      %v3697 = vunpack.c.l.b16 %v3665
      %v3698 = vunpack.c.l.b16 %v3666
      %v3699 = vunpack.c.l.b16 %v3667
      %v3700 = vunpack.c.l.b16 %v3668
      %v3701 = vunpack.c.l.b16 %v3669
      %v3702 = vunpack.c.l.b16 %v3670
      %v3703 = vunpack.c.l.b16 %v3671
      %v3704 = vunpack.c.l.b16 %v3672
      %v3705 = vunpack.c.l.b16 %v3673
      %v3706 = vunpack.c.l.b16 %v3674
      %v3707 = vunpack.c.l.b16 %v3675
      %v3708 = vunpack.c.l.b16 %v3676
      %v3709 = vunpack.c.l.b16 %v3677
      %v3710 = vunpack.c.l.b16 %v3678
      %v3711 = vunpack.c.l.b16 %v3679
      %v3712 = vunpack.c.l.b16 %v3680
      %v3713 = vpack.c.b16 %v3698, %v3697
      %v3714 = vpack.c.b16 %v3700, %v3699
      %v3715 = vpack.c.b16 %v3702, %v3701
      %v3716 = vpack.c.b16 %v3704, %v3703
      %v3717 = vpack.c.b16 %v3706, %v3705
      %v3718 = vpack.c.b16 %v3708, %v3707
      %v3719 = vpack.c.b16 %v3710, %v3709
      %v3720 = vpack.c.b16 %v3712, %v3711
      %3729 = vmatprep.subr.bf16.mxu0 0
      %3730 = vmatpush1.bf16.msra.mxu0 %v3713
      %3731 = vmatprep.subr.bf16.mxu0 0
      %3732 = vmatpush1.bf16.msra.mxu0 %v3714
      %3733 = vmatprep.subr.bf16.mxu0 0
      %3734 = vmatpush1.bf16.msra.mxu0 %v3715
      %3735 = vmatprep.subr.bf16.mxu0 0
      %3736 = vmatpush1.bf16.msra.mxu0 %v3716
      %3737 = vmatprep.subr.bf16.mxu0 0
      %3738 = vmatpush1.bf16.msra.mxu0 %v3717
      %3739 = vmatprep.subr.bf16.mxu0 0
      %3740 = vmatpush1.bf16.msra.mxu0 %v3718
      %3741 = vmatprep.subr.bf16.mxu0 0
      %3742 = vmatpush1.bf16.msra.mxu0 %v3719
      %3743 = vmatprep.subr.bf16.mxu0 0
      %3744 = vmatpush1.bf16.msra.mxu0 %v3720
      %3745 = vmatprep.subr.bf16.mxu0 0
      %3746 = vmatpush1.bf16.msra.mxu0 0
      %3747 = vmatprep.subr.bf16.mxu0 0
      %3748 = vmatpush1.bf16.msra.mxu0 0
      %3749 = vmatprep.subr.bf16.mxu0 0
      %3750 = vmatpush1.bf16.msra.mxu0 0
      %3751 = vmatprep.subr.bf16.mxu0 0
      %3752 = vmatpush1.bf16.msra.mxu0 0
      %3753 = vmatprep.subr.bf16.mxu0 0
      %3754 = vmatpush1.bf16.msra.mxu0 0
      %3755 = vmatprep.subr.bf16.mxu0 0
      %3756 = vmatpush1.bf16.msra.mxu0 0
      %3757 = vmatprep.subr.bf16.mxu0 0
      %3758 = vmatpush1.bf16.msra.mxu0 0
      %3759 = vmatprep.subr.bf16.mxu0 0
      %3760 = vmatpush1.bf16.msra.mxu0 0
      %3761 = vmatprep.mubr.bf16.mxu0 0
      %3762 = vmatmul.mubr.bf16.gmra.mrb[0].mxu0 %v3458
      %v3763 = vpop.f32.mrb[0].mxu0
      %v3764 = vadd.f32 0.0, %v3763
      %v3765 = vpop.f32.mrb[0].mxu0
      %v3766 = vpop.f32.mrb[0].mxu0
      %v3767 = vadd.f32 0.0, %v3766
      %v3768 = vpop.f32.mrb[0].mxu0
      %3769 = vmatprep.mubr.bf16.mxu0 0
      %3770 = vmatmul.mubr.bf16.gmra.mrb[0].mxu0 %v3460
      %v3771 = vpop.f32.mrb[0].mxu0
      %v3772 = vadd.f32 0.0, %v3771
      %v3773 = vpop.f32.mrb[0].mxu0
      %v3774 = vpop.f32.mrb[0].mxu0
      %v3775 = vadd.f32 0.0, %v3774
      %v3776 = vpop.f32.mrb[0].mxu0
      %3777 = vmatprep.mubr.bf16.mxu0 0
      %3778 = vmatmul.mubr.bf16.gmra.mrb[0].mxu0 %v3462
      %v3779 = vpop.f32.mrb[0].mxu0
      %v3780 = vadd.f32 0.0, %v3779
      %v3781 = vpop.f32.mrb[0].mxu0
      %v3782 = vpop.f32.mrb[0].mxu0
      %v3783 = vadd.f32 0.0, %v3782
      %v3784 = vpop.f32.mrb[0].mxu0
      %3785 = vmatprep.mubr.bf16.mxu0 0
      %3786 = vmatmul.mubr.bf16.gmra.mrb[0].mxu0 %v3464
      %v3787 = vpop.f32.mrb[0].mxu0
      %v3788 = vadd.f32 0.0, %v3787
      %v3789 = vpop.f32.mrb[0].mxu0
      %v3790 = vpop.f32.mrb[0].mxu0
      %v3791 = vadd.f32 0.0, %v3790
      %v3792 = vpop.f32.mrb[0].mxu0
      %3793 = vmatprep.mubr.bf16.mxu0 0
      %3794 = vmatmul.mubr.bf16.gmra.mrb[0].mxu0 %v3466
      %v3795 = vpop.f32.mrb[0].mxu0
      %v3796 = vadd.f32 0.0, %v3795
      %v3797 = vpop.f32.mrb[0].mxu0
      %v3798 = vpop.f32.mrb[0].mxu0
      %v3799 = vadd.f32 0.0, %v3798
      %v3800 = vpop.f32.mrb[0].mxu0
      %3801 = vmatprep.mubr.bf16.mxu0 0
      %3802 = vmatmul.mubr.bf16.gmra.mrb[0].mxu0 %v3468
      %v3803 = vpop.f32.mrb[0].mxu0
      %v3804 = vadd.f32 0.0, %v3803
      %v3805 = vpop.f32.mrb[0].mxu0
      %v3806 = vpop.f32.mrb[0].mxu0
      %v3807 = vadd.f32 0.0, %v3806
      %v3808 = vpop.f32.mrb[0].mxu0
      %3809 = vmatprep.mubr.bf16.mxu0 0
      %3810 = vmatmul.mubr.bf16.gmra.mrb[0].mxu0 %v3470
      %v3811 = vpop.f32.mrb[0].mxu0
      %v3812 = vadd.f32 0.0, %v3811
      %v3813 = vpop.f32.mrb[0].mxu0
      %v3814 = vpop.f32.mrb[0].mxu0
      %v3815 = vadd.f32 0.0, %v3814
      %v3816 = vpop.f32.mrb[0].mxu0
      %3817 = vmatprep.mubr.bf16.mxu0 0
      %3818 = vmatmul.mubr.bf16.gmra.mrb[0].mxu0 %v3472
      %v3819 = vpop.f32.mrb[0].mxu0
      %v3820 = vadd.f32 0.0, %v3819
      %v3821 = vpop.f32.mrb[0].mxu0
      %v3822 = vpop.f32.mrb[0].mxu0
      %v3823 = vadd.f32 0.0, %v3822
      %v3824 = vpop.f32.mrb[0].mxu0
      %3825 = vdwg.mxu0
      %v3826 = vadd.f32 %v3648, %v3764
      %v3827 = vadd.f32 %v3649, %v3767
      %v3828 = vadd.f32 %v3650, %v3772
      %v3829 = vadd.f32 %v3651, %v3775
      %v3830 = vadd.f32 %v3652, %v3780
      %v3831 = vadd.f32 %v3653, %v3783
      %v3832 = vadd.f32 %v3654, %v3788
      %v3833 = vadd.f32 %v3655, %v3791
      %v3834 = vadd.f32 %v3656, %v3796
      %v3835 = vadd.f32 %v3657, %v3799
      %v3836 = vadd.f32 %v3658, %v3804
      %v3837 = vadd.f32 %v3659, %v3807
      %v3838 = vadd.f32 %v3660, %v3812
      %v3839 = vadd.f32 %v3661, %v3815
      %v3840 = vadd.f32 %v3662, %v3820
      %v3841 = vadd.f32 %v3663, %v3823
      %s3842 = scalar_lea.vmem %s3, 512
      %v3843 = vld [vmem:[%s3842] sm:$0xf]
      %v3844 = vld [vmem:[%s3842 + $0x4] sm:$0xf]
      %v3845 = vld [vmem:[%s3842 + $0x8] sm:$0xf]
      %v3846 = vld [vmem:[%s3842 + $0xc] sm:$0xf]
      %v3847 = vld [vmem:[%s3842 + $0x10] sm:$0xf]
      %v3848 = vld [vmem:[%s3842 + $0x14] sm:$0xf]
      %v3849 = vld [vmem:[%s3842 + $0x18] sm:$0xf]
      %v3850 = vld [vmem:[%s3842 + $0x1c] sm:$0xf]
      %v3851 = vld [vmem:[%s3842 + $0x20] sm:$0xf]
      %v3852 = vld [vmem:[%s3842 + $0x24] sm:$0xf]
      %v3853 = vld [vmem:[%s3842 + $0x28] sm:$0xf]
      %v3854 = vld [vmem:[%s3842 + $0x2c] sm:$0xf]
      %v3855 = vld [vmem:[%s3842 + $0x30] sm:$0xf]
      %v3856 = vld [vmem:[%s3842 + $0x34] sm:$0xf]
      %v3857 = vld [vmem:[%s3842 + $0x38] sm:$0xf]
      %v3858 = vld [vmem:[%s3842 + $0x3c] sm:$0xf]
      %v3875 = vunpack.c.l.b16 %v3843
      %v3876 = vunpack.c.l.b16 %v3844
      %v3877 = vunpack.c.l.b16 %v3845
      %v3878 = vunpack.c.l.b16 %v3846
      %v3879 = vunpack.c.l.b16 %v3847
      %v3880 = vunpack.c.l.b16 %v3848
      %v3881 = vunpack.c.l.b16 %v3849
      %v3882 = vunpack.c.l.b16 %v3850
      %v3883 = vunpack.c.l.b16 %v3851
      %v3884 = vunpack.c.l.b16 %v3852
      %v3885 = vunpack.c.l.b16 %v3853
      %v3886 = vunpack.c.l.b16 %v3854
      %v3887 = vunpack.c.l.b16 %v3855
      %v3888 = vunpack.c.l.b16 %v3856
      %v3889 = vunpack.c.l.b16 %v3857
      %v3890 = vunpack.c.l.b16 %v3858
      %v3891 = vpack.c.b16 %v3876, %v3875
      %v3892 = vpack.c.b16 %v3878, %v3877
      %v3893 = vpack.c.b16 %v3880, %v3879
      %v3894 = vpack.c.b16 %v3882, %v3881
      %v3895 = vpack.c.b16 %v3884, %v3883
      %v3896 = vpack.c.b16 %v3886, %v3885
      %v3897 = vpack.c.b16 %v3888, %v3887
      %v3898 = vpack.c.b16 %v3890, %v3889
      %3907 = vmatprep.subr.bf16.mxu0 0
      %3908 = vmatpush1.bf16.msra.mxu0 %v3891
      %3909 = vmatprep.subr.bf16.mxu0 0
      %3910 = vmatpush1.bf16.msra.mxu0 %v3892
      %3911 = vmatprep.subr.bf16.mxu0 0
      %3912 = vmatpush1.bf16.msra.mxu0 %v3893
      %3913 = vmatprep.subr.bf16.mxu0 0
      %3914 = vmatpush1.bf16.msra.mxu0 %v3894
      %3915 = vmatprep.subr.bf16.mxu0 0
      %3916 = vmatpush1.bf16.msra.mxu0 %v3895
      %3917 = vmatprep.subr.bf16.mxu0 0
      %3918 = vmatpush1.bf16.msra.mxu0 %v3896
      %3919 = vmatprep.subr.bf16.mxu0 0
      %3920 = vmatpush1.bf16.msra.mxu0 %v3897
      %3921 = vmatprep.subr.bf16.mxu0 0
      %3922 = vmatpush1.bf16.msra.mxu0 %v3898
      %3923 = vmatprep.subr.bf16.mxu0 0
      %3924 = vmatpush1.bf16.msra.mxu0 0
      %3925 = vmatprep.subr.bf16.mxu0 0
      %3926 = vmatpush1.bf16.msra.mxu0 0
      %3927 = vmatprep.subr.bf16.mxu0 0
      %3928 = vmatpush1.bf16.msra.mxu0 0
      %3929 = vmatprep.subr.bf16.mxu0 0
      %3930 = vmatpush1.bf16.msra.mxu0 0
      %3931 = vmatprep.subr.bf16.mxu0 0
      %3932 = vmatpush1.bf16.msra.mxu0 0
      %3933 = vmatprep.subr.bf16.mxu0 0
      %3934 = vmatpush1.bf16.msra.mxu0 0
      %3935 = vmatprep.subr.bf16.mxu0 0
      %3936 = vmatpush1.bf16.msra.mxu0 0
      %3937 = vmatprep.subr.bf16.mxu0 0
      %3938 = vmatpush1.bf16.msra.mxu0 0
      %3939 = vmatprep.mubr.bf16.mxu0 0
      %3940 = vmatmul.mubr.bf16.gmra.mrb[0].mxu0 %v3460
      %v3941 = vpop.f32.mrb[0].mxu0
      %v3942 = vadd.f32 0.0, %v3941
      %v3943 = vpop.f32.mrb[0].mxu0
      %v3944 = vpop.f32.mrb[0].mxu0
      %v3945 = vadd.f32 0.0, %v3944
      %v3946 = vpop.f32.mrb[0].mxu0
      %3947 = vmatprep.mubr.bf16.mxu0 0
      %3948 = vmatmul.mubr.bf16.gmra.mrb[0].mxu0 %v3462
      %v3949 = vpop.f32.mrb[0].mxu0
      %v3950 = vadd.f32 0.0, %v3949
      %v3951 = vpop.f32.mrb[0].mxu0
      %v3952 = vpop.f32.mrb[0].mxu0
      %v3953 = vadd.f32 0.0, %v3952
      %v3954 = vpop.f32.mrb[0].mxu0
      %3955 = vmatprep.mubr.bf16.mxu0 0
      %3956 = vmatmul.mubr.bf16.gmra.mrb[0].mxu0 %v3464
      %v3957 = vpop.f32.mrb[0].mxu0
      %v3958 = vadd.f32 0.0, %v3957
      %v3959 = vpop.f32.mrb[0].mxu0
      %v3960 = vpop.f32.mrb[0].mxu0
      %v3961 = vadd.f32 0.0, %v3960
      %v3962 = vpop.f32.mrb[0].mxu0
      %3963 = vmatprep.mubr.bf16.mxu0 0
      %3964 = vmatmul.mubr.bf16.gmra.mrb[0].mxu0 %v3466
      %v3965 = vpop.f32.mrb[0].mxu0
      %v3966 = vadd.f32 0.0, %v3965
      %v3967 = vpop.f32.mrb[0].mxu0
      %v3968 = vpop.f32.mrb[0].mxu0
      %v3969 = vadd.f32 0.0, %v3968
      %v3970 = vpop.f32.mrb[0].mxu0
      %3971 = vmatprep.mubr.bf16.mxu0 0
      %3972 = vmatmul.mubr.bf16.gmra.mrb[0].mxu0 %v3468
      %v3973 = vpop.f32.mrb[0].mxu0
      %v3974 = vadd.f32 0.0, %v3973
      %v3975 = vpop.f32.mrb[0].mxu0
      %v3976 = vpop.f32.mrb[0].mxu0
      %v3977 = vadd.f32 0.0, %v3976
      %v3978 = vpop.f32.mrb[0].mxu0
      %3979 = vmatprep.mubr.bf16.mxu0 0
      %3980 = vmatmul.mubr.bf16.gmra.mrb[0].mxu0 %v3470
      %v3981 = vpop.f32.mrb[0].mxu0
      %v3982 = vadd.f32 0.0, %v3981
      %v3983 = vpop.f32.mrb[0].mxu0
      %v3984 = vpop.f32.mrb[0].mxu0
      %v3985 = vadd.f32 0.0, %v3984
      %v3986 = vpop.f32.mrb[0].mxu0
      %3987 = vmatprep.mubr.bf16.mxu0 0
      %3988 = vmatmul.mubr.bf16.gmra.mrb[0].mxu0 %v3472
      %v3989 = vpop.f32.mrb[0].mxu0
      %v3990 = vadd.f32 0.0, %v3989
      %v3991 = vpop.f32.mrb[0].mxu0
      %v3992 = vpop.f32.mrb[0].mxu0
      %v3993 = vadd.f32 0.0, %v3992
      %v3994 = vpop.f32.mrb[0].mxu0
      %3995 = vmatprep.mubr.bf16.mxu0 0
      %3996 = vmatmul.mubr.bf16.gmra.mrb[0].mxu0 %v3484
      %v3997 = vpop.f32.mrb[0].mxu0
      %v3998 = vadd.f32 0.0, %v3997
      %v3999 = vpop.f32.mrb[0].mxu0
      %v4000 = vpop.f32.mrb[0].mxu0
      %v4001 = vadd.f32 0.0, %v4000
      %v4002 = vpop.f32.mrb[0].mxu0
      %4003 = vdwg.mxu0
      %v4004 = vadd.f32 %v3826, %v3942
      %v4005 = vadd.f32 %v3827, %v3945
      %v4006 = vadd.f32 %v3828, %v3950
      %v4007 = vadd.f32 %v3829, %v3953
      %v4008 = vadd.f32 %v3830, %v3958
      %v4009 = vadd.f32 %v3831, %v3961
      %v4010 = vadd.f32 %v3832, %v3966
      %v4011 = vadd.f32 %v3833, %v3969
      %v4012 = vadd.f32 %v3834, %v3974
      %v4013 = vadd.f32 %v3835, %v3977
      %v4014 = vadd.f32 %v3836, %v3982
      %v4015 = vadd.f32 %v3837, %v3985
      %v4016 = vadd.f32 %v3838, %v3990
      %v4017 = vadd.f32 %v3839, %v3993
      %v4018 = vadd.f32 %v3840, %v3998
      %v4019 = vadd.f32 %v3841, %v4001
      %v4021 = vlaneseq
      %v4022 = vshrl.u32 %v4021, 7
      %v4023 = vsub.s32 0, %v4022
      %v4024 = vrot.slane %v2317, %v4023
      %v4026 = vadd.f32 %v4004, %v4024
      %v4027 = vadd.f32 %v4005, %v4024
      %v4028 = vadd.f32 %v4006, %v4024
      %v4029 = vadd.f32 %v4007, %v4024
      %v4030 = vadd.f32 %v4008, %v4024
      %v4031 = vadd.f32 %v4009, %v4024
      %v4032 = vadd.f32 %v4010, %v4024
      %v4033 = vadd.f32 %v4011, %v4024
      %v4034 = vadd.f32 %v4012, %v4024
      %v4035 = vadd.f32 %v4013, %v4024
      %v4036 = vadd.f32 %v4014, %v4024
      %v4037 = vadd.f32 %v4015, %v4024
      %v4038 = vadd.f32 %v4016, %v4024
      %v4039 = vadd.f32 %v4017, %v4024
      %v4040 = vadd.f32 %v4018, %v4024
      %v4041 = vadd.f32 %v4019, %v4024
      %v4042 = vmax.f32 %v4026, 0.0
      %v4043 = vmax.f32 %v4027, 0.0
      %v4044 = vmax.f32 %v4028, 0.0
      %v4045 = vmax.f32 %v4029, 0.0
      %v4046 = vmax.f32 %v4030, 0.0
      %v4047 = vmax.f32 %v4031, 0.0
      %v4048 = vmax.f32 %v4032, 0.0
      %v4049 = vmax.f32 %v4033, 0.0
      %v4050 = vmax.f32 %v4034, 0.0
      %v4051 = vmax.f32 %v4035, 0.0
      %v4052 = vmax.f32 %v4036, 0.0
      %v4053 = vmax.f32 %v4037, 0.0
      %v4054 = vmax.f32 %v4038, 0.0
      %v4055 = vmax.f32 %v4039, 0.0
      %v4056 = vmax.f32 %v4040, 0.0
      %v4057 = vmax.f32 %v4041, 0.0
      %4058 = vst [vmem:[%s262] sm:$0xff] %v4042
      %4059 = vst [vmem:[%s262 + $0x8] sm:$0xff] %v4043
      %4060 = vst [vmem:[%s262 + $0x10] sm:$0xff] %v4044
      %4061 = vst [vmem:[%s262 + $0x18] sm:$0xff] %v4045
      %4062 = vst [vmem:[%s262 + $0x20] sm:$0xff] %v4046
      %4063 = vst [vmem:[%s262 + $0x28] sm:$0xff] %v4047
      %4064 = vst [vmem:[%s262 + $0x30] sm:$0xff] %v4048
      %4065 = vst [vmem:[%s262 + $0x38] sm:$0xff] %v4049
      %4066 = vst [vmem:[%s262 + $0x40] sm:$0xff] %v4050
      %4067 = vst [vmem:[%s262 + $0x48] sm:$0xff] %v4051
      %4068 = vst [vmem:[%s262 + $0x50] sm:$0xff] %v4052
      %4069 = vst [vmem:[%s262 + $0x58] sm:$0xff] %v4053
      %4070 = vst [vmem:[%s262 + $0x60] sm:$0xff] %v4054
      %4071 = vst [vmem:[%s262 + $0x68] sm:$0xff] %v4055
      %4072 = vst [vmem:[%s262 + $0x70] sm:$0xff] %v4056
      %4073 = vst [vmem:[%s262 + $0x78] sm:$0xff] %v4057
      %s4074 = smul.u32 8, %s21
      %p4075 = scmp.lt.s32.totalorder %s20, 1
      %s4076 = scalar_select %p4075, %s20, 1
      %p4077 = scmp.lt.s32.totalorder %s4074, 15
      %s4078 = scalar_select %p4077, %s4074, 15
      %s4079 = smul.addr %s4078, 2
      %s4080 = smul.addr %s4076, 32
      %s4081 = sadd.s32 %s4079, %s4080
      %s4082 = smul.addr %s4081, 8
      %s4083 = scalar_lea.vmem %s5, %s4082
      // Predicated region
      $region41: #{c2_forward_nchw.1} parent=39 // pred_check
        %p4084 = pneg %p160
      $region42: #{c2_forward_nchw.1} parent=39 // pred_check_branch
        %4086 = sbr.rel (%p4084) target = $region44
      $region43: #{c2_forward_nchw.1} parent=39 // pred_region
        %s4087 = smul.u32 8, %s21
      $region44: #{c2_forward_nchw.1} parent=39 // pred_fallthru
        _
    $region40: #{c2_forward_nchw.1} parent=5 // pred_fallthru
      _
    %p4088 = scmp.le.s32.totalorder 2, %s11
    // Predicated region
    $region45: #{c2_forward_nchw.1} parent=5 // pred_check
      %p4089 = pneg %p4088
    $region46: #{c2_forward_nchw.1} parent=5 // pred_check_branch
      %4091 = sbr.rel (%p4089) target = $region48
    $region47: #{c2_forward_nchw.1} parent=5 // pred_region
      %s4092 = ssub.s32 %s11, 2
      // Predicated region
      $region49: #{c2_forward_nchw.1} parent=47 // pred_check
        %p4093 = pneg %p166
      $region50: #{c2_forward_nchw.1} parent=47 // pred_check_branch
        %4095 = sbr.rel (%p4093) target = $region52
      $region51: #{c2_forward_nchw.1} parent=47 // pred_region
        %s4096 = smul.u32 8, %s23
        %p4097 = scmp.lt.s32.totalorder %s22, 1
        %s4098 = scalar_select %p4097, %s22, 1
        %p4099 = scmp.lt.s32.totalorder %s4096, 15
        %s4100 = scalar_select %p4099, %s4096, 15
        %s4101 = smul.addr %s4100, 2
        %s4102 = smul.addr %s4098, 32
        %s4103 = sadd.s32 %s4101, %s4102
        %s4104 = smul.addr %s4103, 8
        %s4105 = scalar_lea.vmem %s5, %s4104
      $region52: #{c2_forward_nchw.1} parent=47 // pred_fallthru
        _
    $region48: #{c2_forward_nchw.1} parent=5 // pred_fallthru
      _
  $region6: #{c2_forward_nchw.1} parent=0 // loop_footer
    %s15 = sadd.s32 1, %s11
  $region7: #{c2_forward_nchw.1} parent=0 // loop_footer_branch
    %10 = sbr.rel target = $region3
  $region8: #{c2_forward_nchw.1} parent=0 // loop_exit
    _

</llo_original>
